<compile_context>
chip_gen: v6e
topology: v6e:2x2x1
jax: 0.10.0
libtpu: 0.0.40
codegen_flags: <defaults>
</compile_context>

<pallas_src>
import functools

import jax
import jax.numpy as jnp
from jax.experimental import pallas as pl
from jax.experimental.pallas import tpu as pltpu

D_MODEL = 32
NHEAD = 4
DIM_FF = 64
EPS = 1e-5


# ---------------------------------------------------------------------------
# Single fused Pallas kernel: self-attn -> LN -> cross-attn -> LN -> FFN -> LN
# ---------------------------------------------------------------------------
def _decoder_layer_kernel(
    # activations, batch-major layout (B, L, D)
    tgt_ref, mem_ref, qpos_ref, pos_ref,
    # self-attention (q/k projection fused; 1/sqrt(hd) folded into q part)
    sa_wqk_ref, sa_bqk_ref, sa_wv_ref, sa_bv_ref, sa_wo_ref, sa_bo_ref,
    # cross-attention (1/sqrt(hd) folded into q projection)
    ca_wq_ref, ca_bq_ref, ca_wk_ref, ca_bk_ref, ca_wv_ref, ca_bv_ref,
    ca_wo_ref, ca_bo_ref,
    # feed-forward
    w1_ref, b1_ref, w2_ref, b2_ref,
    # layernorms
    n1g_ref, n1b_ref, n2g_ref, n2b_ref, n3g_ref, n3b_ref,
    # output (B, T, D)
    out_ref,
    *, nhead):
    B, T, D = tgt_ref.shape
    S = mem_ref.shape[1]
    HD = D // nhead

    tgt = tgt_ref[...].astype(jnp.float32)     # (B, T, D)
    mem = mem_ref[...].astype(jnp.float32)     # (B, S, D)
    qpos = qpos_ref[...].astype(jnp.float32)   # (B, T, D)
    pos = pos_ref[...].astype(jnp.float32)     # (B, S, D)

    def proj(x2, w_ref, b_ref):
        # x2: (N, Din) @ (Din, Dout) + (1, Dout)
        return jnp.dot(x2, w_ref[...], preferred_element_type=jnp.float32) + b_ref[...]

    def mha(q3, k3, v3):
        # q3: (B, Lq, D), k3/v3: (B, Lk, D).  All batches at once via batched
        # einsum; heads are unrolled static lane slices (no grid steps, no .T).
        # q already carries the 1/sqrt(head_dim) scale.
        heads = []
        for h in range(nhead):
            sl = slice(h * HD, (h + 1) * HD)
            qh, kh, vh = q3[..., sl], k3[..., sl], v3[..., sl]
            s = jnp.einsum("bqd,bkd->bqk", qh, kh,
                           preferred_element_type=jnp.float32)
            s = s - jnp.max(s, axis=-1, keepdims=True)
            p = jnp.exp(s)
            p = p * pl.reciprocal(jnp.sum(p, axis=-1, keepdims=True), approx=True)
            heads.append(jnp.einsum("bqk,bkd->bqd", p, vh,
                                    preferred_element_type=jnp.float32))
        # merge heads back to lane-dense d_model before any further use/store
        return jnp.concatenate(heads, axis=-1)          # (B, Lq, D)

    def add_ln(x2, res2, g_ref, b_ref):
        y = x2 + res2
        mean = jnp.mean(y, axis=-1, keepdims=True)
        var = jnp.mean((y - mean) ** 2, axis=-1, keepdims=True)
        return (y - mean) * jax.lax.rsqrt(var + EPS) * g_ref[...] + b_ref[...]

    tgt2d = tgt.reshape(B * T, D)

    # ------------------------- self attention -------------------------
    xqk = (tgt + qpos).reshape(B * T, D)                 # q and k share this input
    qk = proj(xqk, sa_wqk_ref, sa_bqk_ref)               # (B*T, 2D) fused q|k
    v = proj(tgt2d, sa_wv_ref, sa_bv_ref)                # (B*T, D)
    attn = mha(qk[:, :D].reshape(B, T, D),
               qk[:, D:].reshape(B, T, D),
               v.reshape(B, T, D)).reshape(B * T, D)
    attn = proj(attn, sa_wo_ref, sa_bo_ref)
    x2 = add_ln(attn, tgt2d, n1g_ref, n1b_ref)           # tgt after norm1

    # ------------------------- cross attention ------------------------
    q = proj((x2.reshape(B, T, D) + qpos).reshape(B * T, D), ca_wq_ref, ca_bq_ref)
    k = proj((mem + pos).reshape(B * S, D), ca_wk_ref, ca_bk_ref)
    v = proj(mem.reshape(B * S, D), ca_wv_ref, ca_bv_ref)
    attn = mha(q.reshape(B, T, D),
               k.reshape(B, S, D),
               v.reshape(B, S, D)).reshape(B * T, D)
    attn = proj(attn, ca_wo_ref, ca_bo_ref)
    x2 = add_ln(attn, x2, n2g_ref, n2b_ref)              # tgt after norm2

    # -------------------------- feed forward --------------------------
    h = jnp.maximum(proj(x2, w1_ref, b1_ref), 0.0)       # relu
    y = proj(h, w2_ref, b2_ref)
    x2 = add_ln(y, x2, n3g_ref, n3b_ref)                 # tgt after norm3

    out_ref[...] = x2.reshape(B, T, D).astype(out_ref.dtype)


# ---------------------------------------------------------------------------
# Wrapper: (L, B, D) PyTorch layout outside, one fused pallas_call inside
# ---------------------------------------------------------------------------
@functools.partial(jax.jit, static_argnames=("nhead",))
def decoder_layer_forward(tgt, memory, prepared, pos=None, query_pos=None,
                          nhead=NHEAD):
    t, b, d = tgt.shape

    to_bm = lambda x: jnp.transpose(x, (1, 0, 2))        # (L, B, D) -> (B, L, D)
    tgt_b = to_bm(tgt)
    mem_b = to_bm(memory)
    qpos_b = to_bm(query_pos) if query_pos is not None else jnp.zeros_like(tgt_b)
    pos_b = to_bm(pos) if pos is not None else jnp.zeros_like(mem_b)

    vmem = pl.BlockSpec(memory_space=pltpu.MemorySpace.VMEM)
    n_in = 4 + len(prepared)

    out_b = pl.pallas_call(
        functools.partial(_decoder_layer_kernel, nhead=nhead),
        out_shape=jax.ShapeDtypeStruct((b, t, d), tgt.dtype),
        in_specs=[vmem] * n_in,
        out_specs=vmem,
    )(tgt_b, mem_b, qpos_b, pos_b, *prepared)

    return jnp.transpose(out_b, (1, 0, 2))               # back to (T, B, D)


# ---------------------------------------------------------------------------
# One-time (hoisted) parameter preprocessing
# ---------------------------------------------------------------------------
def prepare_params(p, d_model=D_MODEL, nhead=NHEAD):
    """Split in_proj, transpose all weights to (in, out), fold 1/sqrt(head_dim)
    into the q projection, fuse the self-attn q/k projections (shared input),
    and reshape biases / LN params to (1, D) rows.  Done once, not per forward."""
    hd = d_model // nhead
    scale = 1.0 / float(hd) ** 0.5
    row = lambda v: v.reshape(1, -1)

    def attn(a):
        wq, wk, wv = jnp.split(a["in_proj_weight"], 3, axis=0)
        bq, bk, bv = jnp.split(a["in_proj_bias"], 3)
        return dict(wq=wq.T * scale, bq=row(bq * scale),
                    wk=wk.T, bk=row(bk),
                    wv=wv.T, bv=row(bv),
                    wo=a["out_proj_weight"].T, bo=row(a["out_proj_bias"]))

    sa, ca = attn(p["self_attn"]), attn(p["cross_attn"])
    prepared = (
        jnp.concatenate([sa["wq"], sa["wk"]], axis=1),    # (D, 2D) fused q|k
        jnp.concatenate([sa["bq"], sa["bk"]], axis=1),    # (1, 2D)
        sa["wv"], sa["bv"], sa["wo"], sa["bo"],
        ca["wq"], ca["bq"], ca["wk"], ca["bk"], ca["wv"], ca["bv"],
        ca["wo"], ca["bo"],
        p["linear1_weight"].T, row(p["linear1_bias"]),
        p["linear2_weight"].T, row(p["linear2_bias"]),
        row(p["norm1_weight"]), row(p["norm1_bias"]),
        row(p["norm2_weight"]), row(p["norm2_bias"]),
        row(p["norm3_weight"]), row(p["norm3_bias"]),
    )
    return tuple(jnp.asarray(x, jnp.float32) for x in prepared)


# ---------------------------------------------------------------------------
# Deterministic PyTorch-layout parameters + pure-JAX reference for validation
# ---------------------------------------------------------------------------
def make_params(key, d_model, nhead, dim_ff):
    keys = jax.random.split(key, 12)

    def mha_params(k):
        k1, k2, k3, k4 = jax.random.split(k, 4)
        return {
            "in_proj_weight": 0.02 * jax.random.normal(k1, (3 * d_model, d_model), jnp.float32),
            "in_proj_bias": 0.01 * jax.random.normal(k2, (3 * d_model,), jnp.float32),
            "out_proj_weight": 0.02 * jax.random.normal(k3, (d_model, d_model), jnp.float32),
            "out_proj_bias": 0.01 * jax.random.normal(k4, (d_model,), jnp.float32),
        }

    return {
        "self_attn": mha_params(keys[0]),
        "cross_attn": mha_params(keys[1]),
        "linear1_weight": 0.02 * jax.random.normal(keys[2], (dim_ff, d_model), jnp.float32),
        "linear1_bias": 0.01 * jax.random.normal(keys[3], (dim_ff,), jnp.float32),
        "linear2_weight": 0.02 * jax.random.normal(keys[4], (d_model, dim_ff), jnp.float32),
        "linear2_bias": 0.01 * jax.random.normal(keys[5], (d_model,), jnp.float32),
        "norm1_weight": 1.0 + 0.01 * jax.random.normal(keys[6], (d_model,), jnp.float32),
        "norm1_bias": 0.01 * jax.random.normal(keys[7], (d_model,), jnp.float32),
        "norm2_weight": 1.0 + 0.01 * jax.random.normal(keys[8], (d_model,), jnp.float32),
        "norm2_bias": 0.01 * jax.random.normal(keys[9], (d_model,), jnp.float32),
        "norm3_weight": 1.0 + 0.01 * jax.random.normal(keys[10], (d_model,), jnp.float32),
        "norm3_bias": 0.01 * jax.random.normal(keys[11], (d_model,), jnp.float32),
    }


def _ref_mha(query, key, value, a, nhead):
    lq, b, d = query.shape
    lk = key.shape[0]
    hd = d // nhead
    scale = 1.0 / float(hd) ** 0.5
    wq, wk, wv = jnp.split(a["in_proj_weight"], 3, axis=0)
    bq, bk, bv = jnp.split(a["in_proj_bias"], 3)
    q = (query.reshape(lq * b, d) @ wq.T + bq) * scale
    k = key.reshape(lk * b, d) @ wk.T + bk
    v = value.reshape(lk * b, d) @ wv.T + bv

    def split(x, L):
        return x.reshape(L, b, nhead, hd).transpose(1, 2, 0, 3)   # (b, h, L, hd)

    qh, kh, vh = split(q, lq), split(k, lk), split(v, lk)
    s = jnp.einsum("bhqd,bhkd->bhqk", qh, kh)
    p = jax.nn.softmax(s, axis=-1)
    o = jnp.einsum("bhqk,bhkd->bhqd", p, vh)
    o = o.transpose(2, 0, 1, 3).reshape(lq * b, d)
    o = o @ a["out_proj_weight"].T + a["out_proj_bias"]
    return o.reshape(lq, b, d)


def _ref_ln(x, g, b):
    mean = x.mean(-1, keepdims=True)
    var = ((x - mean) ** 2).mean(-1, keepdims=True)
    return (x - mean) * jax.lax.rsqrt(var + EPS) * g + b


def reference_forward(tgt, memory, params, pos, query_pos, nhead=NHEAD):
    q = tgt + query_pos
    t2 = _ref_mha(q, q, tgt, params["self_attn"], nhead)
    tgt = _ref_ln(tgt + t2, params["norm1_weight"], params["norm1_bias"])
    t2 = _ref_mha(tgt + query_pos, memory + pos, memory, params["cross_attn"], nhead)
    tgt = _ref_ln(tgt + t2, params["norm2_weight"], params["norm2_bias"])
    h = jax.nn.relu(tgt @ params["linear1_weight"].T + params["linear1_bias"])
    t2 = h @ params["linear2_weight"].T + params["linear2_bias"]
    tgt = _ref_ln(tgt + t2, params["norm3_weight"], params["norm3_bias"])
    return tgt


if __name__ == "__main__":
    T, S, B = 8, 16, 2  # num queries, memory length, batch

    key = jax.random.PRNGKey(0)
    k_tgt, k_mem, k_pos, k_qpos, k_par = jax.random.split(key, 5)

    tgt = jax.random.normal(k_tgt, (T, B, D_MODEL), jnp.float32)
    memory = jax.random.normal(k_mem, (S, B, D_MODEL), jnp.float32)
    pos = jax.random.normal(k_pos, (S, B, D_MODEL), jnp.float32)
    query_pos = jax.random.normal(k_qpos, (T, B, D_MODEL), jnp.float32)

    params = make_params(k_par, D_MODEL, NHEAD, DIM_FF)
    prepared = prepare_params(params)            # hoisted, one-time prep

    out = decoder_layer_forward(tgt, memory, prepared, pos=pos, query_pos=query_pos)
    out = jax.block_until_ready(out)
    assert out.shape == (T, B, D_MODEL)

    ref = reference_forward(tgt, memory, params, pos, query_pos)
    err = float(jnp.max(jnp.abs(out - ref)))
    assert bool(jnp.isfinite(out).all())
    assert err < 5e-2, f"max abs error vs reference: {err}"
    print("KERNEL_OK")
</pallas_src>

<mosaic_0001>
module attributes {stable_mosaic.version = 11 : i64} {
  func.func @_decoder_layer_kernel(%arg0: memref<2x8x32xf32, #tpu.memory_space<vmem>>, %arg1: memref<2x16x32xf32, #tpu.memory_space<vmem>>, %arg2: memref<2x8x32xf32, #tpu.memory_space<vmem>>, %arg3: memref<2x16x32xf32, #tpu.memory_space<vmem>>, %arg4: memref<32x64xf32, #tpu.memory_space<vmem>>, %arg5: memref<1x64xf32, #tpu.memory_space<vmem>>, %arg6: memref<32x32xf32, #tpu.memory_space<vmem>>, %arg7: memref<1x32xf32, #tpu.memory_space<vmem>>, %arg8: memref<32x32xf32, #tpu.memory_space<vmem>>, %arg9: memref<1x32xf32, #tpu.memory_space<vmem>>, %arg10: memref<32x32xf32, #tpu.memory_space<vmem>>, %arg11: memref<1x32xf32, #tpu.memory_space<vmem>>, %arg12: memref<32x32xf32, #tpu.memory_space<vmem>>, %arg13: memref<1x32xf32, #tpu.memory_space<vmem>>, %arg14: memref<32x32xf32, #tpu.memory_space<vmem>>, %arg15: memref<1x32xf32, #tpu.memory_space<vmem>>, %arg16: memref<32x32xf32, #tpu.memory_space<vmem>>, %arg17: memref<1x32xf32, #tpu.memory_space<vmem>>, %arg18: memref<32x64xf32, #tpu.memory_space<vmem>>, %arg19: memref<1x64xf32, #tpu.memory_space<vmem>>, %arg20: memref<64x32xf32, #tpu.memory_space<vmem>>, %arg21: memref<1x32xf32, #tpu.memory_space<vmem>>, %arg22: memref<1x32xf32, #tpu.memory_space<vmem>>, %arg23: memref<1x32xf32, #tpu.memory_space<vmem>>, %arg24: memref<1x32xf32, #tpu.memory_space<vmem>>, %arg25: memref<1x32xf32, #tpu.memory_space<vmem>>, %arg26: memref<1x32xf32, #tpu.memory_space<vmem>>, %arg27: memref<1x32xf32, #tpu.memory_space<vmem>>, %arg28: memref<2x8x32xf32, #tpu.memory_space<vmem>>) attributes {dimension_semantics = [], scalar_prefetch = 0 : i64, scratch_operands = 0 : i64, tpu.core_type = #tpu.core_type<tc>} {
    %c0 = arith.constant 0 : index
    %c0_0 = arith.constant 0 : index
    %c0_1 = arith.constant 0 : index
    %0 = vector.load %arg0[%c0, %c0_0, %c0_1] : memref<2x8x32xf32, #tpu.memory_space<vmem>>, vector<2x8x32xf32>
    %c0_2 = arith.constant 0 : index
    %c0_3 = arith.constant 0 : index
    %c0_4 = arith.constant 0 : index
    %1 = vector.load %arg1[%c0_2, %c0_3, %c0_4] : memref<2x16x32xf32, #tpu.memory_space<vmem>>, vector<2x16x32xf32>
    %c0_5 = arith.constant 0 : index
    %c0_6 = arith.constant 0 : index
    %c0_7 = arith.constant 0 : index
    %2 = vector.load %arg2[%c0_5, %c0_6, %c0_7] : memref<2x8x32xf32, #tpu.memory_space<vmem>>, vector<2x8x32xf32>
    %c0_8 = arith.constant 0 : index
    %c0_9 = arith.constant 0 : index
    %c0_10 = arith.constant 0 : index
    %3 = vector.load %arg3[%c0_8, %c0_9, %c0_10] : memref<2x16x32xf32, #tpu.memory_space<vmem>>, vector<2x16x32xf32>
    %4 = vector.shape_cast %0 : vector<2x8x32xf32> to vector<16x32xf32>
    %5 = arith.addf %0, %2 : vector<2x8x32xf32>
    %6 = vector.shape_cast %5 : vector<2x8x32xf32> to vector<16x32xf32>
    %c0_11 = arith.constant 0 : index
    %c0_12 = arith.constant 0 : index
    %7 = vector.load %arg4[%c0_11, %c0_12] : memref<32x64xf32, #tpu.memory_space<vmem>>, vector<32x64xf32>
    %cst = arith.constant dense<0.000000e+00> : vector<16x64xf32>
    %8 = tpu.matmul %6, %7, %cst {dimension_numbers = #tpu.dot_dimension_numbers<[1], [0], [0], [1], [0, 0, 1, 1], [], []>} : vector<16x32xf32>, vector<32x64xf32>, vector<16x64xf32> -> vector<16x64xf32>
    %c0_13 = arith.constant 0 : index
    %c0_14 = arith.constant 0 : index
    %9 = vector.load %arg5[%c0_13, %c0_14] : memref<1x64xf32, #tpu.memory_space<vmem>>, vector<1x64xf32>
    %10 = vector.broadcast %9 : vector<1x64xf32> to vector<16x64xf32>
    %11 = arith.addf %8, %10 : vector<16x64xf32>
    %c0_15 = arith.constant 0 : index
    %c0_16 = arith.constant 0 : index
    %12 = vector.load %arg6[%c0_15, %c0_16] : memref<32x32xf32, #tpu.memory_space<vmem>>, vector<32x32xf32>
    %cst_17 = arith.constant dense<0.000000e+00> : vector<16x32xf32>
    %13 = tpu.matmul %4, %12, %cst_17 {dimension_numbers = #tpu.dot_dimension_numbers<[1], [0], [0], [1], [0, 0, 1, 1], [], []>} : vector<16x32xf32>, vector<32x32xf32>, vector<16x32xf32> -> vector<16x32xf32>
    %c0_18 = arith.constant 0 : index
    %c0_19 = arith.constant 0 : index
    %14 = vector.load %arg7[%c0_18, %c0_19] : memref<1x32xf32, #tpu.memory_space<vmem>>, vector<1x32xf32>
    %15 = vector.broadcast %14 : vector<1x32xf32> to vector<16x32xf32>
    %16 = arith.addf %13, %15 : vector<16x32xf32>
    %17 = vector.extract_strided_slice %11 {offsets = [0, 0], sizes = [16, 32], strides = [1, 1]} : vector<16x64xf32> to vector<16x32xf32>
    %18 = vector.shape_cast %17 : vector<16x32xf32> to vector<2x8x32xf32>
    %19 = vector.extract_strided_slice %11 {offsets = [0, 32], sizes = [16, 32], strides = [1, 1]} : vector<16x64xf32> to vector<16x32xf32>
    %20 = vector.shape_cast %19 : vector<16x32xf32> to vector<2x8x32xf32>
    %21 = vector.shape_cast %16 : vector<16x32xf32> to vector<2x8x32xf32>
    %22 = vector.extract_strided_slice %18 {offsets = [0, 0, 0], sizes = [2, 8, 8], strides = [1, 1, 1]} : vector<2x8x32xf32> to vector<2x8x8xf32>
    %23 = vector.extract_strided_slice %20 {offsets = [0, 0, 0], sizes = [2, 8, 8], strides = [1, 1, 1]} : vector<2x8x32xf32> to vector<2x8x8xf32>
    %24 = vector.extract_strided_slice %21 {offsets = [0, 0, 0], sizes = [2, 8, 8], strides = [1, 1, 1]} : vector<2x8x32xf32> to vector<2x8x8xf32>
    "tpu.trace_start"() <{level = 10 : i32, message = "bqd,bkd->bqk"}> : () -> ()
    %cst_20 = arith.constant dense<0.000000e+00> : vector<2x8x8xf32>
    %25 = tpu.matmul %22, %23, %cst_20 {dimension_numbers = #tpu.dot_dimension_numbers<[2], [2], [1], [1], [0, 0, 0, 1, 1, 1], [0], [0]>} : vector<2x8x8xf32>, vector<2x8x8xf32>, vector<2x8x8xf32> -> vector<2x8x8xf32>
    "tpu.trace_stop"() : () -> ()
    %cst_21 = arith.constant dense<0xFF800000> : vector<2x8xf32>
    %26 = vector.multi_reduction <maximumf>, %25, %cst_21 [2] : vector<2x8x8xf32> to vector<2x8xf32>
    %27 = vector.shape_cast %26 : vector<2x8xf32> to vector<2x8x1xf32>
    %28 = vector.broadcast %27 : vector<2x8x1xf32> to vector<2x8x8xf32>
    %29 = arith.subf %25, %28 : vector<2x8x8xf32>
    %30 = math.exp %29 : vector<2x8x8xf32>
    %cst_22 = arith.constant dense<0.000000e+00> : vector<2x8xf32>
    %31 = vector.multi_reduction <add>, %30, %cst_22 [2] : vector<2x8x8xf32> to vector<2x8xf32>
    %32 = vector.shape_cast %31 : vector<2x8xf32> to vector<2x8x1xf32>
    %33 = tpu.reciprocal %32 {approx = true} : vector<2x8x1xf32> -> vector<2x8x1xf32>
    %34 = vector.broadcast %33 : vector<2x8x1xf32> to vector<2x8x8xf32>
    %35 = arith.mulf %30, %34 : vector<2x8x8xf32>
    "tpu.trace_start"() <{level = 10 : i32, message = "bqk,bkd->bqd"}> : () -> ()
    %cst_23 = arith.constant dense<0.000000e+00> : vector<2x8x8xf32>
    %36 = tpu.matmul %35, %24, %cst_23 {dimension_numbers = #tpu.dot_dimension_numbers<[2], [1], [1], [2], [0, 0, 0, 1, 1, 2], [0], [0]>} : vector<2x8x8xf32>, vector<2x8x8xf32>, vector<2x8x8xf32> -> vector<2x8x8xf32>
    "tpu.trace_stop"() : () -> ()
    %37 = vector.extract_strided_slice %18 {offsets = [0, 0, 8], sizes = [2, 8, 8], strides = [1, 1, 1]} : vector<2x8x32xf32> to vector<2x8x8xf32>
    %38 = vector.extract_strided_slice %20 {offsets = [0, 0, 8], sizes = [2, 8, 8], strides = [1, 1, 1]} : vector<2x8x32xf32> to vector<2x8x8xf32>
    %39 = vector.extract_strided_slice %21 {offsets = [0, 0, 8], sizes = [2, 8, 8], strides = [1, 1, 1]} : vector<2x8x32xf32> to vector<2x8x8xf32>
    "tpu.trace_start"() <{level = 10 : i32, message = "bqd,bkd->bqk"}> : () -> ()
    %cst_24 = arith.constant dense<0.000000e+00> : vector<2x8x8xf32>
    %40 = tpu.matmul %37, %38, %cst_24 {dimension_numbers = #tpu.dot_dimension_numbers<[2], [2], [1], [1], [0, 0, 0, 1, 1, 1], [0], [0]>} : vector<2x8x8xf32>, vector<2x8x8xf32>, vector<2x8x8xf32> -> vector<2x8x8xf32>
    "tpu.trace_stop"() : () -> ()
    %cst_25 = arith.constant dense<0xFF800000> : vector<2x8xf32>
    %41 = vector.multi_reduction <maximumf>, %40, %cst_25 [2] : vector<2x8x8xf32> to vector<2x8xf32>
    %42 = vector.shape_cast %41 : vector<2x8xf32> to vector<2x8x1xf32>
    %43 = vector.broadcast %42 : vector<2x8x1xf32> to vector<2x8x8xf32>
    %44 = arith.subf %40, %43 : vector<2x8x8xf32>
    %45 = math.exp %44 : vector<2x8x8xf32>
    %cst_26 = arith.constant dense<0.000000e+00> : vector<2x8xf32>
    %46 = vector.multi_reduction <add>, %45, %cst_26 [2] : vector<2x8x8xf32> to vector<2x8xf32>
    %47 = vector.shape_cast %46 : vector<2x8xf32> to vector<2x8x1xf32>
    %48 = tpu.reciprocal %47 {approx = true} : vector<2x8x1xf32> -> vector<2x8x1xf32>
    %49 = vector.broadcast %48 : vector<2x8x1xf32> to vector<2x8x8xf32>
    %50 = arith.mulf %45, %49 : vector<2x8x8xf32>
    "tpu.trace_start"() <{level = 10 : i32, message = "bqk,bkd->bqd"}> : () -> ()
    %cst_27 = arith.constant dense<0.000000e+00> : vector<2x8x8xf32>
    %51 = tpu.matmul %50, %39, %cst_27 {dimension_numbers = #tpu.dot_dimension_numbers<[2], [1], [1], [2], [0, 0, 0, 1, 1, 2], [0], [0]>} : vector<2x8x8xf32>, vector<2x8x8xf32>, vector<2x8x8xf32> -> vector<2x8x8xf32>
    "tpu.trace_stop"() : () -> ()
    %52 = vector.extract_strided_slice %18 {offsets = [0, 0, 16], sizes = [2, 8, 8], strides = [1, 1, 1]} : vector<2x8x32xf32> to vector<2x8x8xf32>
    %53 = vector.extract_strided_slice %20 {offsets = [0, 0, 16], sizes = [2, 8, 8], strides = [1, 1, 1]} : vector<2x8x32xf32> to vector<2x8x8xf32>
    %54 = vector.extract_strided_slice %21 {offsets = [0, 0, 16], sizes = [2, 8, 8], strides = [1, 1, 1]} : vector<2x8x32xf32> to vector<2x8x8xf32>
    "tpu.trace_start"() <{level = 10 : i32, message = "bqd,bkd->bqk"}> : () -> ()
    %cst_28 = arith.constant dense<0.000000e+00> : vector<2x8x8xf32>
    %55 = tpu.matmul %52, %53, %cst_28 {dimension_numbers = #tpu.dot_dimension_numbers<[2], [2], [1], [1], [0, 0, 0, 1, 1, 1], [0], [0]>} : vector<2x8x8xf32>, vector<2x8x8xf32>, vector<2x8x8xf32> -> vector<2x8x8xf32>
    "tpu.trace_stop"() : () -> ()
    %cst_29 = arith.constant dense<0xFF800000> : vector<2x8xf32>
    %56 = vector.multi_reduction <maximumf>, %55, %cst_29 [2] : vector<2x8x8xf32> to vector<2x8xf32>
    %57 = vector.shape_cast %56 : vector<2x8xf32> to vector<2x8x1xf32>
    %58 = vector.broadcast %57 : vector<2x8x1xf32> to vector<2x8x8xf32>
    %59 = arith.subf %55, %58 : vector<2x8x8xf32>
    %60 = math.exp %59 : vector<2x8x8xf32>
    %cst_30 = arith.constant dense<0.000000e+00> : vector<2x8xf32>
    %61 = vector.multi_reduction <add>, %60, %cst_30 [2] : vector<2x8x8xf32> to vector<2x8xf32>
    %62 = vector.shape_cast %61 : vector<2x8xf32> to vector<2x8x1xf32>
    %63 = tpu.reciprocal %62 {approx = true} : vector<2x8x1xf32> -> vector<2x8x1xf32>
    %64 = vector.broadcast %63 : vector<2x8x1xf32> to vector<2x8x8xf32>
    %65 = arith.mulf %60, %64 : vector<2x8x8xf32>
    "tpu.trace_start"() <{level = 10 : i32, message = "bqk,bkd->bqd"}> : () -> ()
    %cst_31 = arith.constant dense<0.000000e+00> : vector<2x8x8xf32>
    %66 = tpu.matmul %65, %54, %cst_31 {dimension_numbers = #tpu.dot_dimension_numbers<[2], [1], [1], [2], [0, 0, 0, 1, 1, 2], [0], [0]>} : vector<2x8x8xf32>, vector<2x8x8xf32>, vector<2x8x8xf32> -> vector<2x8x8xf32>
    "tpu.trace_stop"() : () -> ()
    %67 = vector.extract_strided_slice %18 {offsets = [0, 0, 24], sizes = [2, 8, 8], strides = [1, 1, 1]} : vector<2x8x32xf32> to vector<2x8x8xf32>
    %68 = vector.extract_strided_slice %20 {offsets = [0, 0, 24], sizes = [2, 8, 8], strides = [1, 1, 1]} : vector<2x8x32xf32> to vector<2x8x8xf32>
    %69 = vector.extract_strided_slice %21 {offsets = [0, 0, 24], sizes = [2, 8, 8], strides = [1, 1, 1]} : vector<2x8x32xf32> to vector<2x8x8xf32>
    "tpu.trace_start"() <{level = 10 : i32, message = "bqd,bkd->bqk"}> : () -> ()
    %cst_32 = arith.constant dense<0.000000e+00> : vector<2x8x8xf32>
    %70 = tpu.matmul %67, %68, %cst_32 {dimension_numbers = #tpu.dot_dimension_numbers<[2], [2], [1], [1], [0, 0, 0, 1, 1, 1], [0], [0]>} : vector<2x8x8xf32>, vector<2x8x8xf32>, vector<2x8x8xf32> -> vector<2x8x8xf32>
    "tpu.trace_stop"() : () -> ()
    %cst_33 = arith.constant dense<0xFF800000> : vector<2x8xf32>
    %71 = vector.multi_reduction <maximumf>, %70, %cst_33 [2] : vector<2x8x8xf32> to vector<2x8xf32>
    %72 = vector.shape_cast %71 : vector<2x8xf32> to vector<2x8x1xf32>
    %73 = vector.broadcast %72 : vector<2x8x1xf32> to vector<2x8x8xf32>
    %74 = arith.subf %70, %73 : vector<2x8x8xf32>
    %75 = math.exp %74 : vector<2x8x8xf32>
    %cst_34 = arith.constant dense<0.000000e+00> : vector<2x8xf32>
    %76 = vector.multi_reduction <add>, %75, %cst_34 [2] : vector<2x8x8xf32> to vector<2x8xf32>
    %77 = vector.shape_cast %76 : vector<2x8xf32> to vector<2x8x1xf32>
    %78 = tpu.reciprocal %77 {approx = true} : vector<2x8x1xf32> -> vector<2x8x1xf32>
    %79 = vector.broadcast %78 : vector<2x8x1xf32> to vector<2x8x8xf32>
    %80 = arith.mulf %75, %79 : vector<2x8x8xf32>
    "tpu.trace_start"() <{level = 10 : i32, message = "bqk,bkd->bqd"}> : () -> ()
    %cst_35 = arith.constant dense<0.000000e+00> : vector<2x8x8xf32>
    %81 = tpu.matmul %80, %69, %cst_35 {dimension_numbers = #tpu.dot_dimension_numbers<[2], [1], [1], [2], [0, 0, 0, 1, 1, 2], [0], [0]>} : vector<2x8x8xf32>, vector<2x8x8xf32>, vector<2x8x8xf32> -> vector<2x8x8xf32>
    "tpu.trace_stop"() : () -> ()
    %82 = tpu.concatenate %36, %51, %66, %81 in 2 : vector<2x8x8xf32>, vector<2x8x8xf32>, vector<2x8x8xf32>, vector<2x8x8xf32> -> vector<2x8x32xf32>
    %83 = vector.shape_cast %82 : vector<2x8x32xf32> to vector<16x32xf32>
    %c0_36 = arith.constant 0 : index
    %c0_37 = arith.constant 0 : index
    %84 = vector.load %arg8[%c0_36, %c0_37] : memref<32x32xf32, #tpu.memory_space<vmem>>, vector<32x32xf32>
    %cst_38 = arith.constant dense<0.000000e+00> : vector<16x32xf32>
    %85 = tpu.matmul %83, %84, %cst_38 {dimension_numbers = #tpu.dot_dimension_numbers<[1], [0], [0], [1], [0, 0, 1, 1], [], []>} : vector<16x32xf32>, vector<32x32xf32>, vector<16x32xf32> -> vector<16x32xf32>
    %c0_39 = arith.constant 0 : index
    %c0_40 = arith.constant 0 : index
    %86 = vector.load %arg9[%c0_39, %c0_40] : memref<1x32xf32, #tpu.memory_space<vmem>>, vector<1x32xf32>
    %87 = vector.broadcast %86 : vector<1x32xf32> to vector<16x32xf32>
    %88 = arith.addf %85, %87 : vector<16x32xf32>
    %89 = arith.addf %88, %4 : vector<16x32xf32>
    %cst_41 = arith.constant dense<0.000000e+00> : vector<16xf32>
    %90 = vector.multi_reduction <add>, %89, %cst_41 [1] : vector<16x32xf32> to vector<16xf32>
    %91 = vector.shape_cast %90 : vector<16xf32> to vector<16x1xf32>
    %cst_42 = arith.constant 3.200000e+01 : f32
    %92 = vector.broadcast %cst_42 : f32 to vector<16x1xf32>
    %93 = arith.divf %91, %92 : vector<16x1xf32>
    %94 = vector.broadcast %93 : vector<16x1xf32> to vector<16x32xf32>
    %95 = arith.subf %89, %94 : vector<16x32xf32>
    %96 = arith.mulf %95, %95 : vector<16x32xf32>
    %cst_43 = arith.constant dense<0.000000e+00> : vector<16xf32>
    %97 = vector.multi_reduction <add>, %96, %cst_43 [1] : vector<16x32xf32> to vector<16xf32>
    %98 = vector.shape_cast %97 : vector<16xf32> to vector<16x1xf32>
    %cst_44 = arith.constant 3.200000e+01 : f32
    %99 = vector.broadcast %cst_44 : f32 to vector<16x1xf32>
    %100 = arith.divf %98, %99 : vector<16x1xf32>
    %101 = vector.broadcast %93 : vector<16x1xf32> to vector<16x32xf32>
    %102 = arith.subf %89, %101 : vector<16x32xf32>
    %cst_45 = arith.constant 9.99999974E-6 : f32
    %103 = vector.broadcast %cst_45 : f32 to vector<16x1xf32>
    %104 = arith.addf %100, %103 : vector<16x1xf32>
    %105 = math.rsqrt %104 : vector<16x1xf32>
    %106 = vector.broadcast %105 : vector<16x1xf32> to vector<16x32xf32>
    %107 = arith.mulf %102, %106 : vector<16x32xf32>
    %c0_46 = arith.constant 0 : index
    %c0_47 = arith.constant 0 : index
    %108 = vector.load %arg22[%c0_46, %c0_47] : memref<1x32xf32, #tpu.memory_space<vmem>>, vector<1x32xf32>
    %109 = vector.broadcast %108 : vector<1x32xf32> to vector<16x32xf32>
    %110 = arith.mulf %107, %109 : vector<16x32xf32>
    %c0_48 = arith.constant 0 : index
    %c0_49 = arith.constant 0 : index
    %111 = vector.load %arg23[%c0_48, %c0_49] : memref<1x32xf32, #tpu.memory_space<vmem>>, vector<1x32xf32>
    %112 = vector.broadcast %111 : vector<1x32xf32> to vector<16x32xf32>
    %113 = arith.addf %110, %112 : vector<16x32xf32>
    %114 = vector.shape_cast %113 : vector<16x32xf32> to vector<2x8x32xf32>
    %115 = arith.addf %114, %2 : vector<2x8x32xf32>
    %116 = vector.shape_cast %115 : vector<2x8x32xf32> to vector<16x32xf32>
    %c0_50 = arith.constant 0 : index
    %c0_51 = arith.constant 0 : index
    %117 = vector.load %arg10[%c0_50, %c0_51] : memref<32x32xf32, #tpu.memory_space<vmem>>, vector<32x32xf32>
    %cst_52 = arith.constant dense<0.000000e+00> : vector<16x32xf32>
    %118 = tpu.matmul %116, %117, %cst_52 {dimension_numbers = #tpu.dot_dimension_numbers<[1], [0], [0], [1], [0, 0, 1, 1], [], []>} : vector<16x32xf32>, vector<32x32xf32>, vector<16x32xf32> -> vector<16x32xf32>
    %c0_53 = arith.constant 0 : index
    %c0_54 = arith.constant 0 : index
    %119 = vector.load %arg11[%c0_53, %c0_54] : memref<1x32xf32, #tpu.memory_space<vmem>>, vector<1x32xf32>
    %120 = vector.broadcast %119 : vector<1x32xf32> to vector<16x32xf32>
    %121 = arith.addf %118, %120 : vector<16x32xf32>
    %122 = arith.addf %1, %3 : vector<2x16x32xf32>
    %123 = vector.shape_cast %122 : vector<2x16x32xf32> to vector<32x32xf32>
    %c0_55 = arith.constant 0 : index
    %c0_56 = arith.constant 0 : index
    %124 = vector.load %arg12[%c0_55, %c0_56] : memref<32x32xf32, #tpu.memory_space<vmem>>, vector<32x32xf32>
    %cst_57 = arith.constant dense<0.000000e+00> : vector<32x32xf32>
    %125 = tpu.matmul %123, %124, %cst_57 {dimension_numbers = #tpu.dot_dimension_numbers<[1], [0], [0], [1], [0, 0, 1, 1], [], []>} : vector<32x32xf32>, vector<32x32xf32>, vector<32x32xf32> -> vector<32x32xf32>
    %c0_58 = arith.constant 0 : index
    %c0_59 = arith.constant 0 : index
    %126 = vector.load %arg13[%c0_58, %c0_59] : memref<1x32xf32, #tpu.memory_space<vmem>>, vector<1x32xf32>
    %127 = vector.broadcast %126 : vector<1x32xf32> to vector<32x32xf32>
    %128 = arith.addf %125, %127 : vector<32x32xf32>
    %129 = vector.shape_cast %1 : vector<2x16x32xf32> to vector<32x32xf32>
    %c0_60 = arith.constant 0 : index
    %c0_61 = arith.constant 0 : index
    %130 = vector.load %arg14[%c0_60, %c0_61] : memref<32x32xf32, #tpu.memory_space<vmem>>, vector<32x32xf32>
    %cst_62 = arith.constant dense<0.000000e+00> : vector<32x32xf32>
    %131 = tpu.matmul %129, %130, %cst_62 {dimension_numbers = #tpu.dot_dimension_numbers<[1], [0], [0], [1], [0, 0, 1, 1], [], []>} : vector<32x32xf32>, vector<32x32xf32>, vector<32x32xf32> -> vector<32x32xf32>
    %c0_63 = arith.constant 0 : index
    %c0_64 = arith.constant 0 : index
    %132 = vector.load %arg15[%c0_63, %c0_64] : memref<1x32xf32, #tpu.memory_space<vmem>>, vector<1x32xf32>
    %133 = vector.broadcast %132 : vector<1x32xf32> to vector<32x32xf32>
    %134 = arith.addf %131, %133 : vector<32x32xf32>
    %135 = vector.shape_cast %121 : vector<16x32xf32> to vector<2x8x32xf32>
    %136 = vector.shape_cast %128 : vector<32x32xf32> to vector<2x16x32xf32>
    %137 = vector.shape_cast %134 : vector<32x32xf32> to vector<2x16x32xf32>
    %138 = vector.extract_strided_slice %135 {offsets = [0, 0, 0], sizes = [2, 8, 8], strides = [1, 1, 1]} : vector<2x8x32xf32> to vector<2x8x8xf32>
    %139 = vector.extract_strided_slice %136 {offsets = [0, 0, 0], sizes = [2, 16, 8], strides = [1, 1, 1]} : vector<2x16x32xf32> to vector<2x16x8xf32>
    %140 = vector.extract_strided_slice %137 {offsets = [0, 0, 0], sizes = [2, 16, 8], strides = [1, 1, 1]} : vector<2x16x32xf32> to vector<2x16x8xf32>
    "tpu.trace_start"() <{level = 10 : i32, message = "bqd,bkd->bqk"}> : () -> ()
    %cst_65 = arith.constant dense<0.000000e+00> : vector<2x8x16xf32>
    %141 = tpu.matmul %138, %139, %cst_65 {dimension_numbers = #tpu.dot_dimension_numbers<[2], [2], [1], [1], [0, 0, 0, 1, 1, 1], [0], [0]>} : vector<2x8x8xf32>, vector<2x16x8xf32>, vector<2x8x16xf32> -> vector<2x8x16xf32>
    "tpu.trace_stop"() : () -> ()
    %cst_66 = arith.constant dense<0xFF800000> : vector<2x8xf32>
    %142 = vector.multi_reduction <maximumf>, %141, %cst_66 [2] : vector<2x8x16xf32> to vector<2x8xf32>
    %143 = vector.shape_cast %142 : vector<2x8xf32> to vector<2x8x1xf32>
    %144 = vector.broadcast %143 : vector<2x8x1xf32> to vector<2x8x16xf32>
    %145 = arith.subf %141, %144 : vector<2x8x16xf32>
    %146 = math.exp %145 : vector<2x8x16xf32>
    %cst_67 = arith.constant dense<0.000000e+00> : vector<2x8xf32>
    %147 = vector.multi_reduction <add>, %146, %cst_67 [2] : vector<2x8x16xf32> to vector<2x8xf32>
    %148 = vector.shape_cast %147 : vector<2x8xf32> to vector<2x8x1xf32>
    %149 = tpu.reciprocal %148 {approx = true} : vector<2x8x1xf32> -> vector<2x8x1xf32>
    %150 = vector.broadcast %149 : vector<2x8x1xf32> to vector<2x8x16xf32>
    %151 = arith.mulf %146, %150 : vector<2x8x16xf32>
    "tpu.trace_start"() <{level = 10 : i32, message = "bqk,bkd->bqd"}> : () -> ()
    %cst_68 = arith.constant dense<0.000000e+00> : vector<2x8x8xf32>
    %152 = tpu.matmul %151, %140, %cst_68 {dimension_numbers = #tpu.dot_dimension_numbers<[2], [1], [1], [2], [0, 0, 0, 1, 1, 2], [0], [0]>} : vector<2x8x16xf32>, vector<2x16x8xf32>, vector<2x8x8xf32> -> vector<2x8x8xf32>
    "tpu.trace_stop"() : () -> ()
    %153 = vector.extract_strided_slice %135 {offsets = [0, 0, 8], sizes = [2, 8, 8], strides = [1, 1, 1]} : vector<2x8x32xf32> to vector<2x8x8xf32>
    %154 = vector.extract_strided_slice %136 {offsets = [0, 0, 8], sizes = [2, 16, 8], strides = [1, 1, 1]} : vector<2x16x32xf32> to vector<2x16x8xf32>
    %155 = vector.extract_strided_slice %137 {offsets = [0, 0, 8], sizes = [2, 16, 8], strides = [1, 1, 1]} : vector<2x16x32xf32> to vector<2x16x8xf32>
    "tpu.trace_start"() <{level = 10 : i32, message = "bqd,bkd->bqk"}> : () -> ()
    %cst_69 = arith.constant dense<0.000000e+00> : vector<2x8x16xf32>
    %156 = tpu.matmul %153, %154, %cst_69 {dimension_numbers = #tpu.dot_dimension_numbers<[2], [2], [1], [1], [0, 0, 0, 1, 1, 1], [0], [0]>} : vector<2x8x8xf32>, vector<2x16x8xf32>, vector<2x8x16xf32> -> vector<2x8x16xf32>
    "tpu.trace_stop"() : () -> ()
    %cst_70 = arith.constant dense<0xFF800000> : vector<2x8xf32>
    %157 = vector.multi_reduction <maximumf>, %156, %cst_70 [2] : vector<2x8x16xf32> to vector<2x8xf32>
    %158 = vector.shape_cast %157 : vector<2x8xf32> to vector<2x8x1xf32>
    %159 = vector.broadcast %158 : vector<2x8x1xf32> to vector<2x8x16xf32>
    %160 = arith.subf %156, %159 : vector<2x8x16xf32>
    %161 = math.exp %160 : vector<2x8x16xf32>
    %cst_71 = arith.constant dense<0.000000e+00> : vector<2x8xf32>
    %162 = vector.multi_reduction <add>, %161, %cst_71 [2] : vector<2x8x16xf32> to vector<2x8xf32>
    %163 = vector.shape_cast %162 : vector<2x8xf32> to vector<2x8x1xf32>
    %164 = tpu.reciprocal %163 {approx = true} : vector<2x8x1xf32> -> vector<2x8x1xf32>
    %165 = vector.broadcast %164 : vector<2x8x1xf32> to vector<2x8x16xf32>
    %166 = arith.mulf %161, %165 : vector<2x8x16xf32>
    "tpu.trace_start"() <{level = 10 : i32, message = "bqk,bkd->bqd"}> : () -> ()
    %cst_72 = arith.constant dense<0.000000e+00> : vector<2x8x8xf32>
    %167 = tpu.matmul %166, %155, %cst_72 {dimension_numbers = #tpu.dot_dimension_numbers<[2], [1], [1], [2], [0, 0, 0, 1, 1, 2], [0], [0]>} : vector<2x8x16xf32>, vector<2x16x8xf32>, vector<2x8x8xf32> -> vector<2x8x8xf32>
    "tpu.trace_stop"() : () -> ()
    %168 = vector.extract_strided_slice %135 {offsets = [0, 0, 16], sizes = [2, 8, 8], strides = [1, 1, 1]} : vector<2x8x32xf32> to vector<2x8x8xf32>
    %169 = vector.extract_strided_slice %136 {offsets = [0, 0, 16], sizes = [2, 16, 8], strides = [1, 1, 1]} : vector<2x16x32xf32> to vector<2x16x8xf32>
    %170 = vector.extract_strided_slice %137 {offsets = [0, 0, 16], sizes = [2, 16, 8], strides = [1, 1, 1]} : vector<2x16x32xf32> to vector<2x16x8xf32>
    "tpu.trace_start"() <{level = 10 : i32, message = "bqd,bkd->bqk"}> : () -> ()
    %cst_73 = arith.constant dense<0.000000e+00> : vector<2x8x16xf32>
    %171 = tpu.matmul %168, %169, %cst_73 {dimension_numbers = #tpu.dot_dimension_numbers<[2], [2], [1], [1], [0, 0, 0, 1, 1, 1], [0], [0]>} : vector<2x8x8xf32>, vector<2x16x8xf32>, vector<2x8x16xf32> -> vector<2x8x16xf32>
    "tpu.trace_stop"() : () -> ()
    %cst_74 = arith.constant dense<0xFF800000> : vector<2x8xf32>
    %172 = vector.multi_reduction <maximumf>, %171, %cst_74 [2] : vector<2x8x16xf32> to vector<2x8xf32>
    %173 = vector.shape_cast %172 : vector<2x8xf32> to vector<2x8x1xf32>
    %174 = vector.broadcast %173 : vector<2x8x1xf32> to vector<2x8x16xf32>
    %175 = arith.subf %171, %174 : vector<2x8x16xf32>
    %176 = math.exp %175 : vector<2x8x16xf32>
    %cst_75 = arith.constant dense<0.000000e+00> : vector<2x8xf32>
    %177 = vector.multi_reduction <add>, %176, %cst_75 [2] : vector<2x8x16xf32> to vector<2x8xf32>
    %178 = vector.shape_cast %177 : vector<2x8xf32> to vector<2x8x1xf32>
    %179 = tpu.reciprocal %178 {approx = true} : vector<2x8x1xf32> -> vector<2x8x1xf32>
    %180 = vector.broadcast %179 : vector<2x8x1xf32> to vector<2x8x16xf32>
    %181 = arith.mulf %176, %180 : vector<2x8x16xf32>
    "tpu.trace_start"() <{level = 10 : i32, message = "bqk,bkd->bqd"}> : () -> ()
    %cst_76 = arith.constant dense<0.000000e+00> : vector<2x8x8xf32>
    %182 = tpu.matmul %181, %170, %cst_76 {dimension_numbers = #tpu.dot_dimension_numbers<[2], [1], [1], [2], [0, 0, 0, 1, 1, 2], [0], [0]>} : vector<2x8x16xf32>, vector<2x16x8xf32>, vector<2x8x8xf32> -> vector<2x8x8xf32>
    "tpu.trace_stop"() : () -> ()
    %183 = vector.extract_strided_slice %135 {offsets = [0, 0, 24], sizes = [2, 8, 8], strides = [1, 1, 1]} : vector<2x8x32xf32> to vector<2x8x8xf32>
    %184 = vector.extract_strided_slice %136 {offsets = [0, 0, 24], sizes = [2, 16, 8], strides = [1, 1, 1]} : vector<2x16x32xf32> to vector<2x16x8xf32>
    %185 = vector.extract_strided_slice %137 {offsets = [0, 0, 24], sizes = [2, 16, 8], strides = [1, 1, 1]} : vector<2x16x32xf32> to vector<2x16x8xf32>
    "tpu.trace_start"() <{level = 10 : i32, message = "bqd,bkd->bqk"}> : () -> ()
    %cst_77 = arith.constant dense<0.000000e+00> : vector<2x8x16xf32>
    %186 = tpu.matmul %183, %184, %cst_77 {dimension_numbers = #tpu.dot_dimension_numbers<[2], [2], [1], [1], [0, 0, 0, 1, 1, 1], [0], [0]>} : vector<2x8x8xf32>, vector<2x16x8xf32>, vector<2x8x16xf32> -> vector<2x8x16xf32>
    "tpu.trace_stop"() : () -> ()
    %cst_78 = arith.constant dense<0xFF800000> : vector<2x8xf32>
    %187 = vector.multi_reduction <maximumf>, %186, %cst_78 [2] : vector<2x8x16xf32> to vector<2x8xf32>
    %188 = vector.shape_cast %187 : vector<2x8xf32> to vector<2x8x1xf32>
    %189 = vector.broadcast %188 : vector<2x8x1xf32> to vector<2x8x16xf32>
    %190 = arith.subf %186, %189 : vector<2x8x16xf32>
    %191 = math.exp %190 : vector<2x8x16xf32>
    %cst_79 = arith.constant dense<0.000000e+00> : vector<2x8xf32>
    %192 = vector.multi_reduction <add>, %191, %cst_79 [2] : vector<2x8x16xf32> to vector<2x8xf32>
    %193 = vector.shape_cast %192 : vector<2x8xf32> to vector<2x8x1xf32>
    %194 = tpu.reciprocal %193 {approx = true} : vector<2x8x1xf32> -> vector<2x8x1xf32>
    %195 = vector.broadcast %194 : vector<2x8x1xf32> to vector<2x8x16xf32>
    %196 = arith.mulf %191, %195 : vector<2x8x16xf32>
    "tpu.trace_start"() <{level = 10 : i32, message = "bqk,bkd->bqd"}> : () -> ()
    %cst_80 = arith.constant dense<0.000000e+00> : vector<2x8x8xf32>
    %197 = tpu.matmul %196, %185, %cst_80 {dimension_numbers = #tpu.dot_dimension_numbers<[2], [1], [1], [2], [0, 0, 0, 1, 1, 2], [0], [0]>} : vector<2x8x16xf32>, vector<2x16x8xf32>, vector<2x8x8xf32> -> vector<2x8x8xf32>
    "tpu.trace_stop"() : () -> ()
    %198 = tpu.concatenate %152, %167, %182, %197 in 2 : vector<2x8x8xf32>, vector<2x8x8xf32>, vector<2x8x8xf32>, vector<2x8x8xf32> -> vector<2x8x32xf32>
    %199 = vector.shape_cast %198 : vector<2x8x32xf32> to vector<16x32xf32>
    %c0_81 = arith.constant 0 : index
    %c0_82 = arith.constant 0 : index
    %200 = vector.load %arg16[%c0_81, %c0_82] : memref<32x32xf32, #tpu.memory_space<vmem>>, vector<32x32xf32>
    %cst_83 = arith.constant dense<0.000000e+00> : vector<16x32xf32>
    %201 = tpu.matmul %199, %200, %cst_83 {dimension_numbers = #tpu.dot_dimension_numbers<[1], [0], [0], [1], [0, 0, 1, 1], [], []>} : vector<16x32xf32>, vector<32x32xf32>, vector<16x32xf32> -> vector<16x32xf32>
    %c0_84 = arith.constant 0 : index
    %c0_85 = arith.constant 0 : index
    %202 = vector.load %arg17[%c0_84, %c0_85] : memref<1x32xf32, #tpu.memory_space<vmem>>, vector<1x32xf32>
    %203 = vector.broadcast %202 : vector<1x32xf32> to vector<16x32xf32>
    %204 = arith.addf %201, %203 : vector<16x32xf32>
    %205 = arith.addf %204, %113 : vector<16x32xf32>
    %cst_86 = arith.constant dense<0.000000e+00> : vector<16xf32>
    %206 = vector.multi_reduction <add>, %205, %cst_86 [1] : vector<16x32xf32> to vector<16xf32>
    %207 = vector.shape_cast %206 : vector<16xf32> to vector<16x1xf32>
    %cst_87 = arith.constant 3.200000e+01 : f32
    %208 = vector.broadcast %cst_87 : f32 to vector<16x1xf32>
    %209 = arith.divf %207, %208 : vector<16x1xf32>
    %210 = vector.broadcast %209 : vector<16x1xf32> to vector<16x32xf32>
    %211 = arith.subf %205, %210 : vector<16x32xf32>
    %212 = arith.mulf %211, %211 : vector<16x32xf32>
    %cst_88 = arith.constant dense<0.000000e+00> : vector<16xf32>
    %213 = vector.multi_reduction <add>, %212, %cst_88 [1] : vector<16x32xf32> to vector<16xf32>
    %214 = vector.shape_cast %213 : vector<16xf32> to vector<16x1xf32>
    %cst_89 = arith.constant 3.200000e+01 : f32
    %215 = vector.broadcast %cst_89 : f32 to vector<16x1xf32>
    %216 = arith.divf %214, %215 : vector<16x1xf32>
    %217 = vector.broadcast %209 : vector<16x1xf32> to vector<16x32xf32>
    %218 = arith.subf %205, %217 : vector<16x32xf32>
    %cst_90 = arith.constant 9.99999974E-6 : f32
    %219 = vector.broadcast %cst_90 : f32 to vector<16x1xf32>
    %220 = arith.addf %216, %219 : vector<16x1xf32>
    %221 = math.rsqrt %220 : vector<16x1xf32>
    %222 = vector.broadcast %221 : vector<16x1xf32> to vector<16x32xf32>
    %223 = arith.mulf %218, %222 : vector<16x32xf32>
    %c0_91 = arith.constant 0 : index
    %c0_92 = arith.constant 0 : index
    %224 = vector.load %arg24[%c0_91, %c0_92] : memref<1x32xf32, #tpu.memory_space<vmem>>, vector<1x32xf32>
    %225 = vector.broadcast %224 : vector<1x32xf32> to vector<16x32xf32>
    %226 = arith.mulf %223, %225 : vector<16x32xf32>
    %c0_93 = arith.constant 0 : index
    %c0_94 = arith.constant 0 : index
    %227 = vector.load %arg25[%c0_93, %c0_94] : memref<1x32xf32, #tpu.memory_space<vmem>>, vector<1x32xf32>
    %228 = vector.broadcast %227 : vector<1x32xf32> to vector<16x32xf32>
    %229 = arith.addf %226, %228 : vector<16x32xf32>
    %c0_95 = arith.constant 0 : index
    %c0_96 = arith.constant 0 : index
    %230 = vector.load %arg18[%c0_95, %c0_96] : memref<32x64xf32, #tpu.memory_space<vmem>>, vector<32x64xf32>
    %cst_97 = arith.constant dense<0.000000e+00> : vector<16x64xf32>
    %231 = tpu.matmul %229, %230, %cst_97 {dimension_numbers = #tpu.dot_dimension_numbers<[1], [0], [0], [1], [0, 0, 1, 1], [], []>} : vector<16x32xf32>, vector<32x64xf32>, vector<16x64xf32> -> vector<16x64xf32>
    %c0_98 = arith.constant 0 : index
    %c0_99 = arith.constant 0 : index
    %232 = vector.load %arg19[%c0_98, %c0_99] : memref<1x64xf32, #tpu.memory_space<vmem>>, vector<1x64xf32>
    %233 = vector.broadcast %232 : vector<1x64xf32> to vector<16x64xf32>
    %234 = arith.addf %231, %233 : vector<16x64xf32>
    %cst_100 = arith.constant 0.000000e+00 : f32
    %235 = vector.broadcast %cst_100 : f32 to vector<16x64xf32>
    %236 = arith.maximumf %234, %235 : vector<16x64xf32>
    %c0_101 = arith.constant 0 : index
    %c0_102 = arith.constant 0 : index
    %237 = vector.load %arg20[%c0_101, %c0_102] : memref<64x32xf32, #tpu.memory_space<vmem>>, vector<64x32xf32>
    %cst_103 = arith.constant dense<0.000000e+00> : vector<16x32xf32>
    %238 = tpu.matmul %236, %237, %cst_103 {dimension_numbers = #tpu.dot_dimension_numbers<[1], [0], [0], [1], [0, 0, 1, 1], [], []>} : vector<16x64xf32>, vector<64x32xf32>, vector<16x32xf32> -> vector<16x32xf32>
    %c0_104 = arith.constant 0 : index
    %c0_105 = arith.constant 0 : index
    %239 = vector.load %arg21[%c0_104, %c0_105] : memref<1x32xf32, #tpu.memory_space<vmem>>, vector<1x32xf32>
    %240 = vector.broadcast %239 : vector<1x32xf32> to vector<16x32xf32>
    %241 = arith.addf %238, %240 : vector<16x32xf32>
    %242 = arith.addf %241, %229 : vector<16x32xf32>
    %cst_106 = arith.constant dense<0.000000e+00> : vector<16xf32>
    %243 = vector.multi_reduction <add>, %242, %cst_106 [1] : vector<16x32xf32> to vector<16xf32>
    %244 = vector.shape_cast %243 : vector<16xf32> to vector<16x1xf32>
    %cst_107 = arith.constant 3.200000e+01 : f32
    %245 = vector.broadcast %cst_107 : f32 to vector<16x1xf32>
    %246 = arith.divf %244, %245 : vector<16x1xf32>
    %247 = vector.broadcast %246 : vector<16x1xf32> to vector<16x32xf32>
    %248 = arith.subf %242, %247 : vector<16x32xf32>
    %249 = arith.mulf %248, %248 : vector<16x32xf32>
    %cst_108 = arith.constant dense<0.000000e+00> : vector<16xf32>
    %250 = vector.multi_reduction <add>, %249, %cst_108 [1] : vector<16x32xf32> to vector<16xf32>
    %251 = vector.shape_cast %250 : vector<16xf32> to vector<16x1xf32>
    %cst_109 = arith.constant 3.200000e+01 : f32
    %252 = vector.broadcast %cst_109 : f32 to vector<16x1xf32>
    %253 = arith.divf %251, %252 : vector<16x1xf32>
    %254 = vector.broadcast %246 : vector<16x1xf32> to vector<16x32xf32>
    %255 = arith.subf %242, %254 : vector<16x32xf32>
    %cst_110 = arith.constant 9.99999974E-6 : f32
    %256 = vector.broadcast %cst_110 : f32 to vector<16x1xf32>
    %257 = arith.addf %253, %256 : vector<16x1xf32>
    %258 = math.rsqrt %257 : vector<16x1xf32>
    %259 = vector.broadcast %258 : vector<16x1xf32> to vector<16x32xf32>
    %260 = arith.mulf %255, %259 : vector<16x32xf32>
    %c0_111 = arith.constant 0 : index
    %c0_112 = arith.constant 0 : index
    %261 = vector.load %arg26[%c0_111, %c0_112] : memref<1x32xf32, #tpu.memory_space<vmem>>, vector<1x32xf32>
    %262 = vector.broadcast %261 : vector<1x32xf32> to vector<16x32xf32>
    %263 = arith.mulf %260, %262 : vector<16x32xf32>
    %c0_113 = arith.constant 0 : index
    %c0_114 = arith.constant 0 : index
    %264 = vector.load %arg27[%c0_113, %c0_114] : memref<1x32xf32, #tpu.memory_space<vmem>>, vector<1x32xf32>
    %265 = vector.broadcast %264 : vector<1x32xf32> to vector<16x32xf32>
    %266 = arith.addf %263, %265 : vector<16x32xf32>
    %267 = vector.shape_cast %266 : vector<16x32xf32> to vector<2x8x32xf32>
    %c0_115 = arith.constant 0 : index
    %c0_116 = arith.constant 0 : index
    %c0_117 = arith.constant 0 : index
    %268 = vector.load %arg28[%c0_115, %c0_116, %c0_117] : memref<2x8x32xf32, #tpu.memory_space<vmem>>, vector<2x8x32xf32>
    tpu.vector_store %arg28[%c0_115, %c0_116, %c0_117], %267 {strides = array<i32>} : memref<2x8x32xf32, #tpu.memory_space<vmem>>, vector<2x8x32xf32>,
    return
  }
}

</mosaic_0001>

<llo_original>
// kernel: decoder_layer_forward.1
$region0: #{decoder_layer_forward.1}
  #allocation0 [shape = 'u32[]', space=smem, size = 0x4, offset = 0x4, fixed_abs, tag = 'smem constant byte address 0x4 - core index']
  #allocation1 [shape = 'u32[144,128]{1,0:T(1,128)}', space=vmem, size = 0x12000, scoped, tag = 'internal scratch']
  %s0 = inlined_call_operand.vmem [shape: f32[2,8,32], index: 0, kind: input, shape index: {}]
  %s1 = inlined_call_operand.vmem [shape: f32[2,16,32], index: 1, kind: input, shape index: {}]
  %s2 = inlined_call_operand.vmem [shape: f32[2,8,32], index: 2, kind: input, shape index: {}]
  %s3 = inlined_call_operand.vmem [shape: f32[2,16,32], index: 3, kind: input, shape index: {}]
  %s4 = inlined_call_operand.vmem [shape: f32[32,64], index: 4, kind: input, shape index: {}]
  %s5 = inlined_call_operand.hbm [shape: f32[1,64], index: 5, kind: input, shape index: {}]
  %s6 = inlined_call_operand.vmem [shape: f32[32,32], index: 6, kind: input, shape index: {}]
  %s7 = inlined_call_operand.hbm [shape: f32[1,32], index: 7, kind: input, shape index: {}]
  %s8 = inlined_call_operand.vmem [shape: f32[32,32], index: 8, kind: input, shape index: {}]
  %s9 = inlined_call_operand.hbm [shape: f32[1,32], index: 9, kind: input, shape index: {}]
  %s10 = inlined_call_operand.vmem [shape: f32[32,32], index: 10, kind: input, shape index: {}]
  %s11 = inlined_call_operand.hbm [shape: f32[1,32], index: 11, kind: input, shape index: {}]
  %s12 = inlined_call_operand.vmem [shape: f32[32,32], index: 12, kind: input, shape index: {}]
  %s13 = inlined_call_operand.hbm [shape: f32[1,32], index: 13, kind: input, shape index: {}]
  %s14 = inlined_call_operand.vmem [shape: f32[32,32], index: 14, kind: input, shape index: {}]
  %s15 = inlined_call_operand.hbm [shape: f32[1,32], index: 15, kind: input, shape index: {}]
  %s16 = inlined_call_operand.vmem [shape: f32[32,32], index: 16, kind: input, shape index: {}]
  %s17 = inlined_call_operand.hbm [shape: f32[1,32], index: 17, kind: input, shape index: {}]
  %s18 = inlined_call_operand.hbm [shape: f32[32,64], index: 18, kind: input, shape index: {}]
  %s19 = inlined_call_operand.vmem [shape: f32[1,64], index: 19, kind: input, shape index: {}]
  %s20 = inlined_call_operand.vmem [shape: f32[64,32], index: 20, kind: input, shape index: {}]
  %s21 = inlined_call_operand.hbm [shape: f32[1,32], index: 21, kind: input, shape index: {}]
  %s22 = inlined_call_operand.hbm [shape: f32[1,32], index: 22, kind: input, shape index: {}]
  %s23 = inlined_call_operand.hbm [shape: f32[1,32], index: 23, kind: input, shape index: {}]
  %s24 = inlined_call_operand.hbm [shape: f32[1,32], index: 24, kind: input, shape index: {}]
  %s25 = inlined_call_operand.hbm [shape: f32[1,32], index: 25, kind: input, shape index: {}]
  %s26 = inlined_call_operand.vmem [shape: f32[1,32], index: 26, kind: input, shape index: {}]
  %s27 = inlined_call_operand.vmem [shape: f32[1,32], index: 27, kind: input, shape index: {}]
  %s28 = inlined_call_operand.vmem [shape: f32[2,8,32], index: 28, kind: output, shape index: {}]
  %s29 = sld [smem:[#allocation0]]
  $region174: #{decoder_layer_forward.1} parent=0
    _
  %s31 = ssub.s32 1, %s29
  %s32 = scalar_select 0, %s31, %s29
  $region1: #{decoder_layer_forward.1} parent=0
    #allocation2 [shape = 'u8[512]{0}', space=vmem, size = 0x400, scoped, tag = 'input window, operand 5, single buffered']
    #allocation3 [shape = 's32[1]{0}', space=sflag, size = 0x4, scoped, tag = 'scoped memory for decoder_layer_forward.1']
    #allocation4 [shape = 'u8[512]{0}', space=vmem, size = 0x400, scoped, tag = 'input window, operand 7, single buffered']
    #allocation5 [shape = 's32[1]{0}', space=sflag, size = 0x4, scoped, tag = 'scoped memory for decoder_layer_forward.1']
    #allocation6 [shape = 'u8[512]{0}', space=vmem, size = 0x400, scoped, tag = 'input window, operand 9, single buffered']
    #allocation7 [shape = 'u8[512]{0}', space=vmem, size = 0x400, scoped, tag = 'input window, operand 11, single buffered']
    #allocation8 [shape = 's32[1]{0}', space=sflag, size = 0x4, scoped, tag = 'scoped memory for decoder_layer_forward.1']
    #allocation9 [shape = 'u8[512]{0}', space=vmem, size = 0x400, scoped, tag = 'input window, operand 13, single buffered']
    #allocation10 [shape = 'u8[512]{0}', space=vmem, size = 0x400, scoped, tag = 'input window, operand 15, single buffered']
    #allocation11 [shape = 's32[1]{0}', space=sflag, size = 0x4, scoped, tag = 'scoped memory for decoder_layer_forward.1']
    #allocation12 [shape = 'u8[512]{0}', space=vmem, size = 0x400, scoped, tag = 'input window, operand 17, single buffered']
    #allocation13 [shape = 'u8[16384]{0}', space=vmem, size = 0x4000, scoped, tag = 'input window, operand 18, single buffered']
    #allocation14 [shape = 's32[1]{0}', space=sflag, size = 0x4, scoped, tag = 'scoped memory for decoder_layer_forward.1']
    #allocation15 [shape = 'u8[512]{0}', space=vmem, size = 0x400, scoped, tag = 'input window, operand 21, single buffered']
    #allocation16 [shape = 'u8[512]{0}', space=vmem, size = 0x400, scoped, tag = 'input window, operand 22, single buffered']
    #allocation17 [shape = 's32[1]{0}', space=sflag, size = 0x4, scoped, tag = 'scoped memory for decoder_layer_forward.1']
    #allocation18 [shape = 'u8[512]{0}', space=vmem, size = 0x400, scoped, tag = 'input window, operand 23, single buffered']
    #allocation19 [shape = 'u8[512]{0}', space=vmem, size = 0x400, scoped, tag = 'input window, operand 24, single buffered']
    #allocation20 [shape = 's32[1]{0}', space=sflag, size = 0x4, scoped, tag = 'scoped memory for decoder_layer_forward.1']
    #allocation21 [shape = 'u8[512]{0}', space=vmem, size = 0x400, scoped, tag = 'input window, operand 25, single buffered']
    %33 = vsyncpa [#allocation3], 0
    %34 = vsyncpa [#allocation5], 0
    %35 = vsyncpa [#allocation8], 0
    %36 = vsyncpa [#allocation11], 0
    %37 = vsyncpa [#allocation14], 0
    %38 = vsyncpa [#allocation17], 0
    %39 = vsyncpa [#allocation20], 0
    // Predicated region
    $region2: #{decoder_layer_forward.1} parent=1 // pred_check
      _
    $region3: #{decoder_layer_forward.1} parent=1 // pred_check_branch
      %41 = sbr.rel (0) target = $region5
    $region4: #{decoder_layer_forward.1} parent=1 // pred_region
      _
    $region5: #{decoder_layer_forward.1} parent=1 // pred_fallthru
      _
    // Predicated region
    $region6: #{decoder_layer_forward.1} parent=1 // pred_check
      _
    $region7: #{decoder_layer_forward.1} parent=1 // pred_check_branch
      %43 = sbr.rel (0) target = $region9
    $region8: #{decoder_layer_forward.1} parent=1 // pred_region
      _
    $region9: #{decoder_layer_forward.1} parent=1 // pred_fallthru
      _
    // Predicated region
    $region10: #{decoder_layer_forward.1} parent=1 // pred_check
      _
    $region11: #{decoder_layer_forward.1} parent=1 // pred_check_branch
      %45 = sbr.rel (0) target = $region13
    $region12: #{decoder_layer_forward.1} parent=1 // pred_region
      _
    $region13: #{decoder_layer_forward.1} parent=1 // pred_fallthru
      _
    // Predicated region
    $region14: #{decoder_layer_forward.1} parent=1 // pred_check
      _
    $region15: #{decoder_layer_forward.1} parent=1 // pred_check_branch
      %47 = sbr.rel (0) target = $region17
    $region16: #{decoder_layer_forward.1} parent=1 // pred_region
      _
    $region17: #{decoder_layer_forward.1} parent=1 // pred_fallthru
      _
    // Predicated region
    $region18: #{decoder_layer_forward.1} parent=1 // pred_check
      _
    $region19: #{decoder_layer_forward.1} parent=1 // pred_check_branch
      %49 = sbr.rel (0) target = $region21
    $region20: #{decoder_layer_forward.1} parent=1 // pred_region
      _
    $region21: #{decoder_layer_forward.1} parent=1 // pred_fallthru
      _
    // Predicated region
    $region22: #{decoder_layer_forward.1} parent=1 // pred_check
      _
    $region23: #{decoder_layer_forward.1} parent=1 // pred_check_branch
      %51 = sbr.rel (0) target = $region25
    $region24: #{decoder_layer_forward.1} parent=1 // pred_region
      %s53 = ssub.s32 16, 16
      %54 = vsyncadd [#allocation3], %s53
      %s56 = sshll.u32 [#allocation2], 4
      %s57 = int_to_ptr.vmem [resolvable:$true] %s56
      %59 = dma.hbm_to_vmem [thread:$0]  %s5, 16, %s57, [#allocation3]
    $region25: #{decoder_layer_forward.1} parent=1 // pred_fallthru
      _
    // Predicated region
    $region26: #{decoder_layer_forward.1} parent=1 // pred_check
      _
    $region27: #{decoder_layer_forward.1} parent=1 // pred_check_branch
      %61 = sbr.rel (0) target = $region29
    $region28: #{decoder_layer_forward.1} parent=1 // pred_region
      _
    $region29: #{decoder_layer_forward.1} parent=1 // pred_fallthru
      _
    // Predicated region
    $region30: #{decoder_layer_forward.1} parent=1 // pred_check
      _
    $region31: #{decoder_layer_forward.1} parent=1 // pred_check_branch
      %63 = sbr.rel (0) target = $region33
    $region32: #{decoder_layer_forward.1} parent=1 // pred_region
      %s65 = ssub.s32 16, 16
      %66 = vsyncadd [#allocation5], %s65
      %s68 = sshll.u32 [#allocation4], 4
      %s69 = int_to_ptr.vmem [resolvable:$true] %s68
      %71 = dma.hbm_to_vmem [thread:$0]  %s7, 16, %s69, [#allocation5]
    $region33: #{decoder_layer_forward.1} parent=1 // pred_fallthru
      _
    // Predicated region
    $region34: #{decoder_layer_forward.1} parent=1 // pred_check
      _
    $region35: #{decoder_layer_forward.1} parent=1 // pred_check_branch
      %73 = sbr.rel (0) target = $region37
    $region36: #{decoder_layer_forward.1} parent=1 // pred_region
      _
    $region37: #{decoder_layer_forward.1} parent=1 // pred_fallthru
      _
    // Predicated region
    $region38: #{decoder_layer_forward.1} parent=1 // pred_check
      _
    $region39: #{decoder_layer_forward.1} parent=1 // pred_check_branch
      %75 = sbr.rel (0) target = $region41
    $region40: #{decoder_layer_forward.1} parent=1 // pred_region
      %s77 = ssub.s32 16, 16
      %78 = vsyncadd [#allocation5], %s77
      %s80 = sshll.u32 [#allocation6], 4
      %s81 = int_to_ptr.vmem [resolvable:$true] %s80
      %83 = dma.hbm_to_vmem [thread:$0]  %s9, 16, %s81, [#allocation5]
    $region41: #{decoder_layer_forward.1} parent=1 // pred_fallthru
      _
    // Predicated region
    $region42: #{decoder_layer_forward.1} parent=1 // pred_check
      _
    $region43: #{decoder_layer_forward.1} parent=1 // pred_check_branch
      %85 = sbr.rel (0) target = $region45
    $region44: #{decoder_layer_forward.1} parent=1 // pred_region
      _
    $region45: #{decoder_layer_forward.1} parent=1 // pred_fallthru
      _
    // Predicated region
    $region46: #{decoder_layer_forward.1} parent=1 // pred_check
      _
    $region47: #{decoder_layer_forward.1} parent=1 // pred_check_branch
      %87 = sbr.rel (0) target = $region49
    $region48: #{decoder_layer_forward.1} parent=1 // pred_region
      %s89 = ssub.s32 16, 16
      %90 = vsyncadd [#allocation8], %s89
      %s92 = sshll.u32 [#allocation7], 4
      %s93 = int_to_ptr.vmem [resolvable:$true] %s92
      %95 = dma.hbm_to_vmem [thread:$0]  %s11, 16, %s93, [#allocation8]
    $region49: #{decoder_layer_forward.1} parent=1 // pred_fallthru
      _
    // Predicated region
    $region50: #{decoder_layer_forward.1} parent=1 // pred_check
      _
    $region51: #{decoder_layer_forward.1} parent=1 // pred_check_branch
      %97 = sbr.rel (0) target = $region53
    $region52: #{decoder_layer_forward.1} parent=1 // pred_region
      _
    $region53: #{decoder_layer_forward.1} parent=1 // pred_fallthru
      _
    // Predicated region
    $region54: #{decoder_layer_forward.1} parent=1 // pred_check
      _
    $region55: #{decoder_layer_forward.1} parent=1 // pred_check_branch
      %99 = sbr.rel (0) target = $region57
    $region56: #{decoder_layer_forward.1} parent=1 // pred_region
      %s101 = ssub.s32 16, 16
      %102 = vsyncadd [#allocation8], %s101
      %s104 = sshll.u32 [#allocation9], 4
      %s105 = int_to_ptr.vmem [resolvable:$true] %s104
      %107 = dma.hbm_to_vmem [thread:$0]  %s13, 16, %s105, [#allocation8]
    $region57: #{decoder_layer_forward.1} parent=1 // pred_fallthru
      _
    // Predicated region
    $region58: #{decoder_layer_forward.1} parent=1 // pred_check
      _
    $region59: #{decoder_layer_forward.1} parent=1 // pred_check_branch
      %109 = sbr.rel (0) target = $region61
    $region60: #{decoder_layer_forward.1} parent=1 // pred_region
      _
    $region61: #{decoder_layer_forward.1} parent=1 // pred_fallthru
      _
    // Predicated region
    $region62: #{decoder_layer_forward.1} parent=1 // pred_check
      _
    $region63: #{decoder_layer_forward.1} parent=1 // pred_check_branch
      %111 = sbr.rel (0) target = $region65
    $region64: #{decoder_layer_forward.1} parent=1 // pred_region
      %s113 = ssub.s32 16, 16
      %114 = vsyncadd [#allocation11], %s113
      %s116 = sshll.u32 [#allocation10], 4
      %s117 = int_to_ptr.vmem [resolvable:$true] %s116
      %119 = dma.hbm_to_vmem [thread:$0]  %s15, 16, %s117, [#allocation11]
    $region65: #{decoder_layer_forward.1} parent=1 // pred_fallthru
      _
    // Predicated region
    $region66: #{decoder_layer_forward.1} parent=1 // pred_check
      _
    $region67: #{decoder_layer_forward.1} parent=1 // pred_check_branch
      %121 = sbr.rel (0) target = $region69
    $region68: #{decoder_layer_forward.1} parent=1 // pred_region
      _
    $region69: #{decoder_layer_forward.1} parent=1 // pred_fallthru
      _
    // Predicated region
    $region70: #{decoder_layer_forward.1} parent=1 // pred_check
      _
    $region71: #{decoder_layer_forward.1} parent=1 // pred_check_branch
      %123 = sbr.rel (0) target = $region73
    $region72: #{decoder_layer_forward.1} parent=1 // pred_region
      %s125 = ssub.s32 16, 16
      %126 = vsyncadd [#allocation11], %s125
      %s128 = sshll.u32 [#allocation12], 4
      %s129 = int_to_ptr.vmem [resolvable:$true] %s128
      %131 = dma.hbm_to_vmem [thread:$0]  %s17, 16, %s129, [#allocation11]
    $region73: #{decoder_layer_forward.1} parent=1 // pred_fallthru
      _
    // Predicated region
    $region74: #{decoder_layer_forward.1} parent=1 // pred_check
      _
    $region75: #{decoder_layer_forward.1} parent=1 // pred_check_branch
      %133 = sbr.rel (0) target = $region77
    $region76: #{decoder_layer_forward.1} parent=1 // pred_region
      %s135 = ssub.s32 512, 512
      %136 = vsyncadd [#allocation14], %s135
      %s137 = sshll.u32 [#allocation13], 4
      %s138 = int_to_ptr.vmem [resolvable:$true] %s137
      %143 = dma.hbm_to_vmem [thread:$0]  %s18, 512, %s138, [#allocation14], 128, 128, 8
    $region77: #{decoder_layer_forward.1} parent=1 // pred_fallthru
      _
    // Predicated region
    $region78: #{decoder_layer_forward.1} parent=1 // pred_check
      _
    $region79: #{decoder_layer_forward.1} parent=1 // pred_check_branch
      %145 = sbr.rel (0) target = $region81
    $region80: #{decoder_layer_forward.1} parent=1 // pred_region
      _
    $region81: #{decoder_layer_forward.1} parent=1 // pred_fallthru
      _
    // Predicated region
    $region82: #{decoder_layer_forward.1} parent=1 // pred_check
      _
    $region83: #{decoder_layer_forward.1} parent=1 // pred_check_branch
      %147 = sbr.rel (0) target = $region85
    $region84: #{decoder_layer_forward.1} parent=1 // pred_region
      _
    $region85: #{decoder_layer_forward.1} parent=1 // pred_fallthru
      _
    // Predicated region
    $region86: #{decoder_layer_forward.1} parent=1 // pred_check
      _
    $region87: #{decoder_layer_forward.1} parent=1 // pred_check_branch
      %149 = sbr.rel (0) target = $region89
    $region88: #{decoder_layer_forward.1} parent=1 // pred_region
      %s151 = ssub.s32 16, 16
      %152 = vsyncadd [#allocation14], %s151
      %s154 = sshll.u32 [#allocation15], 4
      %s155 = int_to_ptr.vmem [resolvable:$true] %s154
      %157 = dma.hbm_to_vmem [thread:$0]  %s21, 16, %s155, [#allocation14]
    $region89: #{decoder_layer_forward.1} parent=1 // pred_fallthru
      _
    // Predicated region
    $region90: #{decoder_layer_forward.1} parent=1 // pred_check
      _
    $region91: #{decoder_layer_forward.1} parent=1 // pred_check_branch
      %159 = sbr.rel (0) target = $region93
    $region92: #{decoder_layer_forward.1} parent=1 // pred_region
      %s161 = ssub.s32 16, 16
      %162 = vsyncadd [#allocation17], %s161
      %s164 = sshll.u32 [#allocation16], 4
      %s165 = int_to_ptr.vmem [resolvable:$true] %s164
      %167 = dma.hbm_to_vmem [thread:$0]  %s22, 16, %s165, [#allocation17]
    $region93: #{decoder_layer_forward.1} parent=1 // pred_fallthru
      _
    // Predicated region
    $region94: #{decoder_layer_forward.1} parent=1 // pred_check
      _
    $region95: #{decoder_layer_forward.1} parent=1 // pred_check_branch
      %169 = sbr.rel (0) target = $region97
    $region96: #{decoder_layer_forward.1} parent=1 // pred_region
      %s171 = ssub.s32 16, 16
      %172 = vsyncadd [#allocation17], %s171
      %s174 = sshll.u32 [#allocation18], 4
      %s175 = int_to_ptr.vmem [resolvable:$true] %s174
      %177 = dma.hbm_to_vmem [thread:$0]  %s23, 16, %s175, [#allocation17]
    $region97: #{decoder_layer_forward.1} parent=1 // pred_fallthru
      _
    // Predicated region
    $region98: #{decoder_layer_forward.1} parent=1 // pred_check
      _
    $region99: #{decoder_layer_forward.1} parent=1 // pred_check_branch
      %179 = sbr.rel (0) target = $region101
    $region100: #{decoder_layer_forward.1} parent=1 // pred_region
      %s181 = ssub.s32 16, 16
      %182 = vsyncadd [#allocation20], %s181
      %s184 = sshll.u32 [#allocation19], 4
      %s185 = int_to_ptr.vmem [resolvable:$true] %s184
      %187 = dma.hbm_to_vmem [thread:$0]  %s24, 16, %s185, [#allocation20]
    $region101: #{decoder_layer_forward.1} parent=1 // pred_fallthru
      _
    // Predicated region
    $region102: #{decoder_layer_forward.1} parent=1 // pred_check
      _
    $region103: #{decoder_layer_forward.1} parent=1 // pred_check_branch
      %189 = sbr.rel (0) target = $region105
    $region104: #{decoder_layer_forward.1} parent=1 // pred_region
      %s191 = ssub.s32 16, 16
      %192 = vsyncadd [#allocation20], %s191
      %s194 = sshll.u32 [#allocation21], 4
      %s195 = int_to_ptr.vmem [resolvable:$true] %s194
      %197 = dma.hbm_to_vmem [thread:$0]  %s25, 16, %s195, [#allocation20]
    $region105: #{decoder_layer_forward.1} parent=1 // pred_fallthru
      _
    // Predicated region
    $region106: #{decoder_layer_forward.1} parent=1 // pred_check
      _
    $region107: #{decoder_layer_forward.1} parent=1 // pred_check_branch
      %199 = sbr.rel (0) target = $region109
    $region108: #{decoder_layer_forward.1} parent=1 // pred_region
      _
    $region109: #{decoder_layer_forward.1} parent=1 // pred_fallthru
      _
    // Predicated region
    $region110: #{decoder_layer_forward.1} parent=1 // pred_check
      _
    $region111: #{decoder_layer_forward.1} parent=1 // pred_check_branch
      %201 = sbr.rel (0) target = $region113
    $region112: #{decoder_layer_forward.1} parent=1 // pred_region
      _
    $region113: #{decoder_layer_forward.1} parent=1 // pred_fallthru
      _
    // Predicated region
    $region114: #{decoder_layer_forward.1} parent=1 // pred_check
      _
    $region115: #{decoder_layer_forward.1} parent=1 // pred_check_branch
      %203 = sbr.rel (0) target = $region117
    $region116: #{decoder_layer_forward.1} parent=1 // pred_region
      %204 = dma.done [#allocation3], 16
    $region117: #{decoder_layer_forward.1} parent=1 // pred_fallthru
      _
    // Predicated region
    $region118: #{decoder_layer_forward.1} parent=1 // pred_check
      _
    $region119: #{decoder_layer_forward.1} parent=1 // pred_check_branch
      %206 = sbr.rel (0) target = $region121
    $region120: #{decoder_layer_forward.1} parent=1 // pred_region
      %207 = dma.done [#allocation5], 16
    $region121: #{decoder_layer_forward.1} parent=1 // pred_fallthru
      _
    // Predicated region
    $region122: #{decoder_layer_forward.1} parent=1 // pred_check
      _
    $region123: #{decoder_layer_forward.1} parent=1 // pred_check_branch
      %209 = sbr.rel (0) target = $region125
    $region124: #{decoder_layer_forward.1} parent=1 // pred_region
      %210 = dma.done [#allocation5], 16
    $region125: #{decoder_layer_forward.1} parent=1 // pred_fallthru
      _
    // Predicated region
    $region126: #{decoder_layer_forward.1} parent=1 // pred_check
      _
    $region127: #{decoder_layer_forward.1} parent=1 // pred_check_branch
      %212 = sbr.rel (0) target = $region129
    $region128: #{decoder_layer_forward.1} parent=1 // pred_region
      %213 = dma.done [#allocation8], 16
    $region129: #{decoder_layer_forward.1} parent=1 // pred_fallthru
      _
    // Predicated region
    $region130: #{decoder_layer_forward.1} parent=1 // pred_check
      _
    $region131: #{decoder_layer_forward.1} parent=1 // pred_check_branch
      %215 = sbr.rel (0) target = $region133
    $region132: #{decoder_layer_forward.1} parent=1 // pred_region
      %216 = dma.done [#allocation8], 16
    $region133: #{decoder_layer_forward.1} parent=1 // pred_fallthru
      _
    // Predicated region
    $region134: #{decoder_layer_forward.1} parent=1 // pred_check
      _
    $region135: #{decoder_layer_forward.1} parent=1 // pred_check_branch
      %218 = sbr.rel (0) target = $region137
    $region136: #{decoder_layer_forward.1} parent=1 // pred_region
      %219 = dma.done [#allocation11], 16
    $region137: #{decoder_layer_forward.1} parent=1 // pred_fallthru
      _
    // Predicated region
    $region138: #{decoder_layer_forward.1} parent=1 // pred_check
      _
    $region139: #{decoder_layer_forward.1} parent=1 // pred_check_branch
      %221 = sbr.rel (0) target = $region141
    $region140: #{decoder_layer_forward.1} parent=1 // pred_region
      %222 = dma.done [#allocation11], 16
    $region141: #{decoder_layer_forward.1} parent=1 // pred_fallthru
      _
    // Predicated region
    $region142: #{decoder_layer_forward.1} parent=1 // pred_check
      _
    $region143: #{decoder_layer_forward.1} parent=1 // pred_check_branch
      %224 = sbr.rel (0) target = $region145
    $region144: #{decoder_layer_forward.1} parent=1 // pred_region
      %225 = dma.done [#allocation14], 512
    $region145: #{decoder_layer_forward.1} parent=1 // pred_fallthru
      _
    // Predicated region
    $region146: #{decoder_layer_forward.1} parent=1 // pred_check
      _
    $region147: #{decoder_layer_forward.1} parent=1 // pred_check_branch
      %227 = sbr.rel (0) target = $region149
    $region148: #{decoder_layer_forward.1} parent=1 // pred_region
      %228 = dma.done [#allocation14], 16
    $region149: #{decoder_layer_forward.1} parent=1 // pred_fallthru
      _
    // Predicated region
    $region150: #{decoder_layer_forward.1} parent=1 // pred_check
      _
    $region151: #{decoder_layer_forward.1} parent=1 // pred_check_branch
      %230 = sbr.rel (0) target = $region153
    $region152: #{decoder_layer_forward.1} parent=1 // pred_region
      %231 = dma.done [#allocation17], 16
    $region153: #{decoder_layer_forward.1} parent=1 // pred_fallthru
      _
    // Predicated region
    $region154: #{decoder_layer_forward.1} parent=1 // pred_check
      _
    $region155: #{decoder_layer_forward.1} parent=1 // pred_check_branch
      %233 = sbr.rel (0) target = $region157
    $region156: #{decoder_layer_forward.1} parent=1 // pred_region
      %234 = dma.done [#allocation17], 16
    $region157: #{decoder_layer_forward.1} parent=1 // pred_fallthru
      _
    // Predicated region
    $region158: #{decoder_layer_forward.1} parent=1 // pred_check
      _
    $region159: #{decoder_layer_forward.1} parent=1 // pred_check_branch
      %236 = sbr.rel (0) target = $region161
    $region160: #{decoder_layer_forward.1} parent=1 // pred_region
      %237 = dma.done [#allocation20], 16
    $region161: #{decoder_layer_forward.1} parent=1 // pred_fallthru
      _
    // Predicated region
    $region162: #{decoder_layer_forward.1} parent=1 // pred_check
      _
    $region163: #{decoder_layer_forward.1} parent=1 // pred_check_branch
      %239 = sbr.rel (0) target = $region165
    $region164: #{decoder_layer_forward.1} parent=1 // pred_region
      %240 = dma.done [#allocation20], 16
    $region165: #{decoder_layer_forward.1} parent=1 // pred_fallthru
      _
    %v241 = vld [vmem:[%s0] sm:$0xff]
    %v242 = vld [vmem:[%s0 + $0x8] sm:$0xff]
    %v243 = vld [vmem:[%s1] sm:$0xff]
    %v244 = vld [vmem:[%s1 + $0x8] sm:$0xff]
    %v245 = vld [vmem:[%s1 + $0x10] sm:$0xff]
    %v246 = vld [vmem:[%s1 + $0x18] sm:$0xff]
    %v247 = vld [vmem:[%s2] sm:$0xff]
    %v248 = vld [vmem:[%s2 + $0x8] sm:$0xff]
    %v249 = vld [vmem:[%s3] sm:$0xff]
    %v250 = vld [vmem:[%s3 + $0x8] sm:$0xff]
    %v251 = vld [vmem:[%s3 + $0x10] sm:$0xff]
    %v252 = vld [vmem:[%s3 + $0x18] sm:$0xff]
    %v253 = vadd.f32 %v241, %v247
    %v254 = vadd.f32 %v242, %v248
    %v255 = vld [vmem:[%s4] sm:$0xff]
    %v256 = vld [vmem:[%s4 + $0x8] sm:$0xff]
    %v257 = vld [vmem:[%s4 + $0x10] sm:$0xff]
    %v258 = vld [vmem:[%s4 + $0x18] sm:$0xff]
    %v259 = vld [vmem:[#allocation2] sm:$0x1]
    %v261 = vlaneseq
    %v262 = vshrl.u32 %v261, 7
    %v263 = vsub.s32 0, %v262
    %v264 = vrot.slane %v259, %v263
    %vm266 = vcmask 261120
    %v268 = vsel %vm266, %v253, 0
    %v271 = vsel %vm266, %v254, 0
    %273 = vmatprep.subr.mxu0 0.0
    %274 = vmatpush1.msra.mxu0 0.0
    %275 = vmatprep.subr.mxu0 0.0
    %276 = vmatpush1.msra.mxu0 0.0
    %277 = vmatprep.subr.mxu0 0.0
    %278 = vmatpush1.msra.mxu0 0.0
    %279 = vmatprep.subr.mxu0 0.0
    %280 = vmatpush1.msra.mxu0 0.0
    %281 = vmatprep.subr.mxu0 0.0
    %282 = vmatpush1.msra.mxu0 0.0
    %283 = vmatprep.subr.mxu0 0.0
    %284 = vmatpush1.msra.mxu0 0.0
    %285 = vmatprep.subr.mxu0 0.0
    %286 = vmatpush1.msra.mxu0 0.0
    %287 = vmatprep.subr.mxu0 0.0
    %288 = vmatpush1.msra.mxu0 0.0
    %289 = vmatprep.subr.mxu0 0.0
    %290 = vmatpush1.msra.mxu0 0.0
    %291 = vmatprep.subr.mxu0 0.0
    %292 = vmatpush1.msra.mxu0 0.0
    %293 = vmatprep.subr.mxu0 0.0
    %294 = vmatpush1.msra.mxu0 0.0
    %295 = vmatprep.subr.mxu0 0.0
    %296 = vmatpush1.msra.mxu0 0.0
    %297 = vmatprep.subr.mxu0 0.0
    %298 = vmatpush1.msra.mxu0 %v258
    %299 = vmatprep.subr.mxu0 0.0
    %300 = vmatpush1.msra.mxu0 %v257
    %301 = vmatprep.subr.mxu0 0.0
    %302 = vmatpush1.msra.mxu0 %v256
    %303 = vmatprep.subr.mxu0 0.0
    %304 = vmatpush1.msra.mxu0 %v255
    %305 = vmatprep.subr.mxu0 0.0
    %306 = vmatpush2.msra.mxu0 0.0
    %307 = vmatprep.subr.mxu0 0.0
    %308 = vmatpush2.msra.mxu0 0.0
    %309 = vmatprep.subr.mxu0 0.0
    %310 = vmatpush2.msra.mxu0 0.0
    %311 = vmatprep.subr.mxu0 0.0
    %312 = vmatpush2.msra.mxu0 0.0
    %313 = vmatprep.subr.mxu0 0.0
    %314 = vmatpush2.msra.mxu0 0.0
    %315 = vmatprep.subr.mxu0 0.0
    %316 = vmatpush2.msra.mxu0 0.0
    %317 = vmatprep.subr.mxu0 0.0
    %318 = vmatpush2.msra.mxu0 0.0
    %319 = vmatprep.subr.mxu0 0.0
    %320 = vmatpush2.msra.mxu0 0.0
    %321 = vmatprep.subr.mxu0 0.0
    %322 = vmatpush2.msra.mxu0 0.0
    %323 = vmatprep.subr.mxu0 0.0
    %324 = vmatpush2.msra.mxu0 0.0
    %325 = vmatprep.subr.mxu0 0.0
    %326 = vmatpush2.msra.mxu0 0.0
    %327 = vmatprep.subr.mxu0 0.0
    %328 = vmatpush2.msra.mxu0 0.0
    %329 = vmatprep.subr.mxu0 0.0
    %330 = vmatpush2.msra.mxu0 0.0
    %331 = vmatprep.subr.mxu0 0.0
    %332 = vmatpush2.msra.mxu0 0.0
    %333 = vmatprep.subr.mxu0 0.0
    %334 = vmatpush2.msra.mxu0 0.0
    %335 = vmatprep.subr.mxu0 0.0
    %336 = vmatpush2.msra.mxu0 0.0
    %337 = vmatprep.mubr.f32.mxu0 0.0
    %338 = vmatmul.mubr.f32.gmra.mxu0 %v268
    %v339 = vpop.f32.mrf.mxu0
    %v340 = vadd.f32 %v264, %v339
    %v341 = vpop.f32.mrf.mxu0
    %342 = vmatprep.mubr.f32.mxu0 0.0
    %343 = vmatmul.mubr.f32.gmra.mxu0 %v271
    %v344 = vpop.f32.mrf.mxu0
    %v345 = vadd.f32 %v264, %v344
    %v346 = vpop.f32.mrf.mxu0
    %347 = vdwg.mxu0
    %v348 = vld [vmem:[%s6] sm:$0xff]
    %v349 = vld [vmem:[%s6 + $0x8] sm:$0xff]
    %v350 = vld [vmem:[%s6 + $0x10] sm:$0xff]
    %v351 = vld [vmem:[%s6 + $0x18] sm:$0xff]
    %v352 = vld [vmem:[#allocation4] sm:$0x1]
    %v354 = vlaneseq
    %v355 = vshrl.u32 %v354, 7
    %v356 = vsub.s32 0, %v355
    %v357 = vrot.slane %v352, %v356
    %v360 = vsel %vm266, %v241, 0
    %v363 = vsel %vm266, %v242, 0
    %365 = vmatprep.subr.mxu0 0.0
    %366 = vmatpush1.msra.mxu0 0.0
    %367 = vmatprep.subr.mxu0 0.0
    %368 = vmatpush1.msra.mxu0 0.0
    %369 = vmatprep.subr.mxu0 0.0
    %370 = vmatpush1.msra.mxu0 0.0
    %371 = vmatprep.subr.mxu0 0.0
    %372 = vmatpush1.msra.mxu0 0.0
    %373 = vmatprep.subr.mxu0 0.0
    %374 = vmatpush1.msra.mxu0 0.0
    %375 = vmatprep.subr.mxu0 0.0
    %376 = vmatpush1.msra.mxu0 0.0
    %377 = vmatprep.subr.mxu0 0.0
    %378 = vmatpush1.msra.mxu0 0.0
    %379 = vmatprep.subr.mxu0 0.0
    %380 = vmatpush1.msra.mxu0 0.0
    %381 = vmatprep.subr.mxu0 0.0
    %382 = vmatpush1.msra.mxu0 0.0
    %383 = vmatprep.subr.mxu0 0.0
    %384 = vmatpush1.msra.mxu0 0.0
    %385 = vmatprep.subr.mxu0 0.0
    %386 = vmatpush1.msra.mxu0 0.0
    %387 = vmatprep.subr.mxu0 0.0
    %388 = vmatpush1.msra.mxu0 0.0
    %389 = vmatprep.subr.mxu0 0.0
    %390 = vmatpush1.msra.mxu0 %v351
    %391 = vmatprep.subr.mxu0 0.0
    %392 = vmatpush1.msra.mxu0 %v350
    %393 = vmatprep.subr.mxu0 0.0
    %394 = vmatpush1.msra.mxu0 %v349
    %395 = vmatprep.subr.mxu0 0.0
    %396 = vmatpush1.msra.mxu0 %v348
    %397 = vmatprep.subr.mxu0 0.0
    %398 = vmatpush2.msra.mxu0 0.0
    %399 = vmatprep.subr.mxu0 0.0
    %400 = vmatpush2.msra.mxu0 0.0
    %401 = vmatprep.subr.mxu0 0.0
    %402 = vmatpush2.msra.mxu0 0.0
    %403 = vmatprep.subr.mxu0 0.0
    %404 = vmatpush2.msra.mxu0 0.0
    %405 = vmatprep.subr.mxu0 0.0
    %406 = vmatpush2.msra.mxu0 0.0
    %407 = vmatprep.subr.mxu0 0.0
    %408 = vmatpush2.msra.mxu0 0.0
    %409 = vmatprep.subr.mxu0 0.0
    %410 = vmatpush2.msra.mxu0 0.0
    %411 = vmatprep.subr.mxu0 0.0
    %412 = vmatpush2.msra.mxu0 0.0
    %413 = vmatprep.subr.mxu0 0.0
    %414 = vmatpush2.msra.mxu0 0.0
    %415 = vmatprep.subr.mxu0 0.0
    %416 = vmatpush2.msra.mxu0 0.0
    %417 = vmatprep.subr.mxu0 0.0
    %418 = vmatpush2.msra.mxu0 0.0
    %419 = vmatprep.subr.mxu0 0.0
    %420 = vmatpush2.msra.mxu0 0.0
    %421 = vmatprep.subr.mxu0 0.0
    %422 = vmatpush2.msra.mxu0 0.0
    %423 = vmatprep.subr.mxu0 0.0
    %424 = vmatpush2.msra.mxu0 0.0
    %425 = vmatprep.subr.mxu0 0.0
    %426 = vmatpush2.msra.mxu0 0.0
    %427 = vmatprep.subr.mxu0 0.0
    %428 = vmatpush2.msra.mxu0 0.0
    %429 = vmatprep.mubr.f32.mxu0 0.0
    %430 = vmatmul.mubr.f32.gmra.mxu0 %v360
    %v431 = vpop.f32.mrf.mxu0
    %v432 = vadd.f32 %v357, %v431
    %v433 = vpop.f32.mrf.mxu0
    %434 = vmatprep.mubr.f32.mxu0 0.0
    %435 = vmatmul.mubr.f32.gmra.mxu0 %v363
    %v436 = vpop.f32.mrf.mxu0
    %v437 = vadd.f32 %v357, %v436
    %v438 = vpop.f32.mrf.mxu0
    %439 = vdwg.mxu0
    %441 = vrot.lane.b32.xlu0 %v340, 96
    %v442 = vpop.permute.xlu0 %441
    %vm443 = vcmask 64512
    %v444 = vsel %vm443, %v340, 0
    %v446 = vsel %vm443, %v442, 0
    %448 = vmatprep.subr.mxu0 0.0
    %449 = vmatpush1.xpose.msra.mxu0 0.0
    %450 = vmatprep.subr.mxu0 0.0
    %451 = vmatpush1.xpose.msra.mxu0 0.0
    %452 = vmatprep.subr.mxu0 0.0
    %453 = vmatpush1.xpose.msra.mxu0 0.0
    %454 = vmatprep.subr.mxu0 0.0
    %455 = vmatpush1.xpose.msra.mxu0 0.0
    %456 = vmatprep.subr.mxu0 0.0
    %457 = vmatpush1.xpose.msra.mxu0 0.0
    %458 = vmatprep.subr.mxu0 0.0
    %459 = vmatpush1.xpose.msra.mxu0 0.0
    %460 = vmatprep.subr.mxu0 0.0
    %461 = vmatpush1.xpose.msra.mxu0 0.0
    %462 = vmatprep.subr.mxu0 0.0
    %463 = vmatpush1.xpose.msra.mxu0 0.0
    %464 = vmatprep.subr.mxu0 0.0
    %465 = vmatpush1.xpose.msra.mxu0 0.0
    %466 = vmatprep.subr.mxu0 0.0
    %467 = vmatpush1.xpose.msra.mxu0 0.0
    %468 = vmatprep.subr.mxu0 0.0
    %469 = vmatpush1.xpose.msra.mxu0 0.0
    %470 = vmatprep.subr.mxu0 0.0
    %471 = vmatpush1.xpose.msra.mxu0 0.0
    %472 = vmatprep.subr.mxu0 0.0
    %473 = vmatpush1.xpose.msra.mxu0 0.0
    %474 = vmatprep.subr.mxu0 0.0
    %475 = vmatpush1.xpose.msra.mxu0 0.0
    %476 = vmatprep.subr.mxu0 0.0
    %477 = vmatpush1.xpose.msra.mxu0 0.0
    %478 = vmatprep.subr.mxu0 0.0
    %479 = vmatpush1.xpose.msra.mxu0 %v446
    %480 = vmatprep.subr.mxu0 0.0
    %481 = vmatpush2.xpose.msra.mxu0 0.0
    %482 = vmatprep.subr.mxu0 0.0
    %483 = vmatpush2.xpose.msra.mxu0 0.0
    %484 = vmatprep.subr.mxu0 0.0
    %485 = vmatpush2.xpose.msra.mxu0 0.0
    %486 = vmatprep.subr.mxu0 0.0
    %487 = vmatpush2.xpose.msra.mxu0 0.0
    %488 = vmatprep.subr.mxu0 0.0
    %489 = vmatpush2.xpose.msra.mxu0 0.0
    %490 = vmatprep.subr.mxu0 0.0
    %491 = vmatpush2.xpose.msra.mxu0 0.0
    %492 = vmatprep.subr.mxu0 0.0
    %493 = vmatpush2.xpose.msra.mxu0 0.0
    %494 = vmatprep.subr.mxu0 0.0
    %495 = vmatpush2.xpose.msra.mxu0 0.0
    %496 = vmatprep.subr.mxu0 0.0
    %497 = vmatpush2.xpose.msra.mxu0 0.0
    %498 = vmatprep.subr.mxu0 0.0
    %499 = vmatpush2.xpose.msra.mxu0 0.0
    %500 = vmatprep.subr.mxu0 0.0
    %501 = vmatpush2.xpose.msra.mxu0 0.0
    %502 = vmatprep.subr.mxu0 0.0
    %503 = vmatpush2.xpose.msra.mxu0 0.0
    %504 = vmatprep.subr.mxu0 0.0
    %505 = vmatpush2.xpose.msra.mxu0 0.0
    %506 = vmatprep.subr.mxu0 0.0
    %507 = vmatpush2.xpose.msra.mxu0 0.0
    %508 = vmatprep.subr.mxu0 0.0
    %509 = vmatpush2.xpose.msra.mxu0 0.0
    %510 = vmatprep.subr.mxu0 0.0
    %511 = vmatpush2.xpose.msra.mxu0 0.0
    %512 = vmatprep.mubr.f32.mxu0 0.0
    %513 = vmatmul.mubr.f32.gmra.mxu0 %v444
    %v514 = vpop.f32.mrf.mxu0
    %v515 = vadd.f32 0.0, %v514
    %v516 = vpop.f32.mrf.mxu0
    %517 = vdwg.mxu0
    %519 = vrot.lane.b32.xlu0 %v345, 96
    %v520 = vpop.permute.xlu0 %519
    %v521 = vsel %vm443, %v345, 0
    %v523 = vsel %vm443, %v520, 0
    %525 = vmatprep.subr.mxu0 0.0
    %526 = vmatpush1.xpose.msra.mxu0 0.0
    %527 = vmatprep.subr.mxu0 0.0
    %528 = vmatpush1.xpose.msra.mxu0 0.0
    %529 = vmatprep.subr.mxu0 0.0
    %530 = vmatpush1.xpose.msra.mxu0 0.0
    %531 = vmatprep.subr.mxu0 0.0
    %532 = vmatpush1.xpose.msra.mxu0 0.0
    %533 = vmatprep.subr.mxu0 0.0
    %534 = vmatpush1.xpose.msra.mxu0 0.0
    %535 = vmatprep.subr.mxu0 0.0
    %536 = vmatpush1.xpose.msra.mxu0 0.0
    %537 = vmatprep.subr.mxu0 0.0
    %538 = vmatpush1.xpose.msra.mxu0 0.0
    %539 = vmatprep.subr.mxu0 0.0
    %540 = vmatpush1.xpose.msra.mxu0 0.0
    %541 = vmatprep.subr.mxu0 0.0
    %542 = vmatpush1.xpose.msra.mxu0 0.0
    %543 = vmatprep.subr.mxu0 0.0
    %544 = vmatpush1.xpose.msra.mxu0 0.0
    %545 = vmatprep.subr.mxu0 0.0
    %546 = vmatpush1.xpose.msra.mxu0 0.0
    %547 = vmatprep.subr.mxu0 0.0
    %548 = vmatpush1.xpose.msra.mxu0 0.0
    %549 = vmatprep.subr.mxu0 0.0
    %550 = vmatpush1.xpose.msra.mxu0 0.0
    %551 = vmatprep.subr.mxu0 0.0
    %552 = vmatpush1.xpose.msra.mxu0 0.0
    %553 = vmatprep.subr.mxu0 0.0
    %554 = vmatpush1.xpose.msra.mxu0 0.0
    %555 = vmatprep.subr.mxu0 0.0
    %556 = vmatpush1.xpose.msra.mxu0 %v523
    %557 = vmatprep.subr.mxu0 0.0
    %558 = vmatpush2.xpose.msra.mxu0 0.0
    %559 = vmatprep.subr.mxu0 0.0
    %560 = vmatpush2.xpose.msra.mxu0 0.0
    %561 = vmatprep.subr.mxu0 0.0
    %562 = vmatpush2.xpose.msra.mxu0 0.0
    %563 = vmatprep.subr.mxu0 0.0
    %564 = vmatpush2.xpose.msra.mxu0 0.0
    %565 = vmatprep.subr.mxu0 0.0
    %566 = vmatpush2.xpose.msra.mxu0 0.0
    %567 = vmatprep.subr.mxu0 0.0
    %568 = vmatpush2.xpose.msra.mxu0 0.0
    %569 = vmatprep.subr.mxu0 0.0
    %570 = vmatpush2.xpose.msra.mxu0 0.0
    %571 = vmatprep.subr.mxu0 0.0
    %572 = vmatpush2.xpose.msra.mxu0 0.0
    %573 = vmatprep.subr.mxu0 0.0
    %574 = vmatpush2.xpose.msra.mxu0 0.0
    %575 = vmatprep.subr.mxu0 0.0
    %576 = vmatpush2.xpose.msra.mxu0 0.0
    %577 = vmatprep.subr.mxu0 0.0
    %578 = vmatpush2.xpose.msra.mxu0 0.0
    %579 = vmatprep.subr.mxu0 0.0
    %580 = vmatpush2.xpose.msra.mxu0 0.0
    %581 = vmatprep.subr.mxu0 0.0
    %582 = vmatpush2.xpose.msra.mxu0 0.0
    %583 = vmatprep.subr.mxu0 0.0
    %584 = vmatpush2.xpose.msra.mxu0 0.0
    %585 = vmatprep.subr.mxu0 0.0
    %586 = vmatpush2.xpose.msra.mxu0 0.0
    %587 = vmatprep.subr.mxu0 0.0
    %588 = vmatpush2.xpose.msra.mxu0 0.0
    %589 = vmatprep.mubr.f32.mxu0 0.0
    %590 = vmatmul.mubr.f32.gmra.mxu0 %v521
    %v591 = vpop.f32.mrf.mxu0
    %v592 = vadd.f32 0.0, %v591
    %v593 = vpop.f32.mrf.mxu0
    %594 = vdwg.mxu0
    %v595 = vsel %vm443, %v515, -inf
    %596 = vmax.xlane.f32.xlu0 %v595
    %v597 = vpop.xlane.xlu0 %596
    %v598 = vsel %vm443, %v592, -inf
    %599 = vmax.xlane.f32.xlu0 %v598
    %v600 = vpop.xlane.xlu0 %599
    %v601 = vsub.f32 %v515, %v597
    %v602 = vsub.f32 %v592, %v600
    %v603 = vmul.f32 %v601, 1.442695
    %v604 = vpow.pop %v603
    %v605 = vmul.f32 %v602, 1.442695
    %v606 = vpow.pop %v605
    %v607 = vsel %vm443, %v604, 0.0
    %608 = vadd.xlane.f32.xlu0 %v607
    %v609 = vpop.xlane.xlu0 %608
    %v610 = vsel %vm443, %v606, 0.0
    %611 = vadd.xlane.f32.xlu0 %v610
    %v612 = vpop.xlane.xlu0 %611
    %v613 = vrcp.pop %v609
    %v614 = vrcp.pop %v612
    %v615 = vmul.f32 %v604, %v613
    %v616 = vmul.f32 %v606, %v614
    %v618 = vsel %vm443, %v615, 0
    %620 = vmatprep.subr.mxu0 0.0
    %621 = vmatpush1.msra.mxu0 0.0
    %622 = vmatprep.subr.mxu0 0.0
    %623 = vmatpush1.msra.mxu0 0.0
    %624 = vmatprep.subr.mxu0 0.0
    %625 = vmatpush1.msra.mxu0 0.0
    %626 = vmatprep.subr.mxu0 0.0
    %627 = vmatpush1.msra.mxu0 0.0
    %628 = vmatprep.subr.mxu0 0.0
    %629 = vmatpush1.msra.mxu0 0.0
    %630 = vmatprep.subr.mxu0 0.0
    %631 = vmatpush1.msra.mxu0 0.0
    %632 = vmatprep.subr.mxu0 0.0
    %633 = vmatpush1.msra.mxu0 0.0
    %634 = vmatprep.subr.mxu0 0.0
    %635 = vmatpush1.msra.mxu0 0.0
    %636 = vmatprep.subr.mxu0 0.0
    %637 = vmatpush1.msra.mxu0 0.0
    %638 = vmatprep.subr.mxu0 0.0
    %639 = vmatpush1.msra.mxu0 0.0
    %640 = vmatprep.subr.mxu0 0.0
    %641 = vmatpush1.msra.mxu0 0.0
    %642 = vmatprep.subr.mxu0 0.0
    %643 = vmatpush1.msra.mxu0 0.0
    %644 = vmatprep.subr.mxu0 0.0
    %645 = vmatpush1.msra.mxu0 0.0
    %646 = vmatprep.subr.mxu0 0.0
    %647 = vmatpush1.msra.mxu0 0.0
    %648 = vmatprep.subr.mxu0 0.0
    %649 = vmatpush1.msra.mxu0 0.0
    %650 = vmatprep.subr.mxu0 0.0
    %651 = vmatpush1.msra.mxu0 %v432
    %652 = vmatprep.subr.mxu0 0.0
    %653 = vmatpush2.msra.mxu0 0.0
    %654 = vmatprep.subr.mxu0 0.0
    %655 = vmatpush2.msra.mxu0 0.0
    %656 = vmatprep.subr.mxu0 0.0
    %657 = vmatpush2.msra.mxu0 0.0
    %658 = vmatprep.subr.mxu0 0.0
    %659 = vmatpush2.msra.mxu0 0.0
    %660 = vmatprep.subr.mxu0 0.0
    %661 = vmatpush2.msra.mxu0 0.0
    %662 = vmatprep.subr.mxu0 0.0
    %663 = vmatpush2.msra.mxu0 0.0
    %664 = vmatprep.subr.mxu0 0.0
    %665 = vmatpush2.msra.mxu0 0.0
    %666 = vmatprep.subr.mxu0 0.0
    %667 = vmatpush2.msra.mxu0 0.0
    %668 = vmatprep.subr.mxu0 0.0
    %669 = vmatpush2.msra.mxu0 0.0
    %670 = vmatprep.subr.mxu0 0.0
    %671 = vmatpush2.msra.mxu0 0.0
    %672 = vmatprep.subr.mxu0 0.0
    %673 = vmatpush2.msra.mxu0 0.0
    %674 = vmatprep.subr.mxu0 0.0
    %675 = vmatpush2.msra.mxu0 0.0
    %676 = vmatprep.subr.mxu0 0.0
    %677 = vmatpush2.msra.mxu0 0.0
    %678 = vmatprep.subr.mxu0 0.0
    %679 = vmatpush2.msra.mxu0 0.0
    %680 = vmatprep.subr.mxu0 0.0
    %681 = vmatpush2.msra.mxu0 0.0
    %682 = vmatprep.subr.mxu0 0.0
    %683 = vmatpush2.msra.mxu0 0.0
    %684 = vmatprep.mubr.f32.mxu0 0.0
    %685 = vmatmul.mubr.f32.gmra.mxu0 %v618
    %v686 = vpop.f32.mrf.mxu0
    %v687 = vadd.f32 0.0, %v686
    %v688 = vpop.f32.mrf.mxu0
    %689 = vdwg.mxu0
    %v691 = vsel %vm443, %v616, 0
    %693 = vmatprep.subr.mxu0 0.0
    %694 = vmatpush1.msra.mxu0 0.0
    %695 = vmatprep.subr.mxu0 0.0
    %696 = vmatpush1.msra.mxu0 0.0
    %697 = vmatprep.subr.mxu0 0.0
    %698 = vmatpush1.msra.mxu0 0.0
    %699 = vmatprep.subr.mxu0 0.0
    %700 = vmatpush1.msra.mxu0 0.0
    %701 = vmatprep.subr.mxu0 0.0
    %702 = vmatpush1.msra.mxu0 0.0
    %703 = vmatprep.subr.mxu0 0.0
    %704 = vmatpush1.msra.mxu0 0.0
    %705 = vmatprep.subr.mxu0 0.0
    %706 = vmatpush1.msra.mxu0 0.0
    %707 = vmatprep.subr.mxu0 0.0
    %708 = vmatpush1.msra.mxu0 0.0
    %709 = vmatprep.subr.mxu0 0.0
    %710 = vmatpush1.msra.mxu0 0.0
    %711 = vmatprep.subr.mxu0 0.0
    %712 = vmatpush1.msra.mxu0 0.0
    %713 = vmatprep.subr.mxu0 0.0
    %714 = vmatpush1.msra.mxu0 0.0
    %715 = vmatprep.subr.mxu0 0.0
    %716 = vmatpush1.msra.mxu0 0.0
    %717 = vmatprep.subr.mxu0 0.0
    %718 = vmatpush1.msra.mxu0 0.0
    %719 = vmatprep.subr.mxu0 0.0
    %720 = vmatpush1.msra.mxu0 0.0
    %721 = vmatprep.subr.mxu0 0.0
    %722 = vmatpush1.msra.mxu0 0.0
    %723 = vmatprep.subr.mxu0 0.0
    %724 = vmatpush1.msra.mxu0 %v437
    %725 = vmatprep.subr.mxu0 0.0
    %726 = vmatpush2.msra.mxu0 0.0
    %727 = vmatprep.subr.mxu0 0.0
    %728 = vmatpush2.msra.mxu0 0.0
    %729 = vmatprep.subr.mxu0 0.0
    %730 = vmatpush2.msra.mxu0 0.0
    %731 = vmatprep.subr.mxu0 0.0
    %732 = vmatpush2.msra.mxu0 0.0
    %733 = vmatprep.subr.mxu0 0.0
    %734 = vmatpush2.msra.mxu0 0.0
    %735 = vmatprep.subr.mxu0 0.0
    %736 = vmatpush2.msra.mxu0 0.0
    %737 = vmatprep.subr.mxu0 0.0
    %738 = vmatpush2.msra.mxu0 0.0
    %739 = vmatprep.subr.mxu0 0.0
    %740 = vmatpush2.msra.mxu0 0.0
    %741 = vmatprep.subr.mxu0 0.0
    %742 = vmatpush2.msra.mxu0 0.0
    %743 = vmatprep.subr.mxu0 0.0
    %744 = vmatpush2.msra.mxu0 0.0
    %745 = vmatprep.subr.mxu0 0.0
    %746 = vmatpush2.msra.mxu0 0.0
    %747 = vmatprep.subr.mxu0 0.0
    %748 = vmatpush2.msra.mxu0 0.0
    %749 = vmatprep.subr.mxu0 0.0
    %750 = vmatpush2.msra.mxu0 0.0
    %751 = vmatprep.subr.mxu0 0.0
    %752 = vmatpush2.msra.mxu0 0.0
    %753 = vmatprep.subr.mxu0 0.0
    %754 = vmatpush2.msra.mxu0 0.0
    %755 = vmatprep.subr.mxu0 0.0
    %756 = vmatpush2.msra.mxu0 0.0
    %757 = vmatprep.mubr.f32.mxu0 0.0
    %758 = vmatmul.mubr.f32.gmra.mxu0 %v691
    %v759 = vpop.f32.mrf.mxu0
    %v760 = vadd.f32 0.0, %v759
    %v761 = vpop.f32.mrf.mxu0
    %762 = vdwg.mxu0
    %763 = vrot.lane.b32.xlu0 %v340, 120
    %v764 = vpop.permute.xlu0 %763
    %765 = vrot.lane.b32.xlu0 %v340, 88
    %v766 = vpop.permute.xlu0 %765
    %v767 = vsel %vm443, %v764, 0
    %v769 = vsel %vm443, %v766, 0
    %771 = vmatprep.subr.mxu0 0.0
    %772 = vmatpush1.xpose.msra.mxu0 0.0
    %773 = vmatprep.subr.mxu0 0.0
    %774 = vmatpush1.xpose.msra.mxu0 0.0
    %775 = vmatprep.subr.mxu0 0.0
    %776 = vmatpush1.xpose.msra.mxu0 0.0
    %777 = vmatprep.subr.mxu0 0.0
    %778 = vmatpush1.xpose.msra.mxu0 0.0
    %779 = vmatprep.subr.mxu0 0.0
    %780 = vmatpush1.xpose.msra.mxu0 0.0
    %781 = vmatprep.subr.mxu0 0.0
    %782 = vmatpush1.xpose.msra.mxu0 0.0
    %783 = vmatprep.subr.mxu0 0.0
    %784 = vmatpush1.xpose.msra.mxu0 0.0
    %785 = vmatprep.subr.mxu0 0.0
    %786 = vmatpush1.xpose.msra.mxu0 0.0
    %787 = vmatprep.subr.mxu0 0.0
    %788 = vmatpush1.xpose.msra.mxu0 0.0
    %789 = vmatprep.subr.mxu0 0.0
    %790 = vmatpush1.xpose.msra.mxu0 0.0
    %791 = vmatprep.subr.mxu0 0.0
    %792 = vmatpush1.xpose.msra.mxu0 0.0
    %793 = vmatprep.subr.mxu0 0.0
    %794 = vmatpush1.xpose.msra.mxu0 0.0
    %795 = vmatprep.subr.mxu0 0.0
    %796 = vmatpush1.xpose.msra.mxu0 0.0
    %797 = vmatprep.subr.mxu0 0.0
    %798 = vmatpush1.xpose.msra.mxu0 0.0
    %799 = vmatprep.subr.mxu0 0.0
    %800 = vmatpush1.xpose.msra.mxu0 0.0
    %801 = vmatprep.subr.mxu0 0.0
    %802 = vmatpush1.xpose.msra.mxu0 %v769
    %803 = vmatprep.subr.mxu0 0.0
    %804 = vmatpush2.xpose.msra.mxu0 0.0
    %805 = vmatprep.subr.mxu0 0.0
    %806 = vmatpush2.xpose.msra.mxu0 0.0
    %807 = vmatprep.subr.mxu0 0.0
    %808 = vmatpush2.xpose.msra.mxu0 0.0
    %809 = vmatprep.subr.mxu0 0.0
    %810 = vmatpush2.xpose.msra.mxu0 0.0
    %811 = vmatprep.subr.mxu0 0.0
    %812 = vmatpush2.xpose.msra.mxu0 0.0
    %813 = vmatprep.subr.mxu0 0.0
    %814 = vmatpush2.xpose.msra.mxu0 0.0
    %815 = vmatprep.subr.mxu0 0.0
    %816 = vmatpush2.xpose.msra.mxu0 0.0
    %817 = vmatprep.subr.mxu0 0.0
    %818 = vmatpush2.xpose.msra.mxu0 0.0
    %819 = vmatprep.subr.mxu0 0.0
    %820 = vmatpush2.xpose.msra.mxu0 0.0
    %821 = vmatprep.subr.mxu0 0.0
    %822 = vmatpush2.xpose.msra.mxu0 0.0
    %823 = vmatprep.subr.mxu0 0.0
    %824 = vmatpush2.xpose.msra.mxu0 0.0
    %825 = vmatprep.subr.mxu0 0.0
    %826 = vmatpush2.xpose.msra.mxu0 0.0
    %827 = vmatprep.subr.mxu0 0.0
    %828 = vmatpush2.xpose.msra.mxu0 0.0
    %829 = vmatprep.subr.mxu0 0.0
    %830 = vmatpush2.xpose.msra.mxu0 0.0
    %831 = vmatprep.subr.mxu0 0.0
    %832 = vmatpush2.xpose.msra.mxu0 0.0
    %833 = vmatprep.subr.mxu0 0.0
    %834 = vmatpush2.xpose.msra.mxu0 0.0
    %835 = vmatprep.mubr.f32.mxu0 0.0
    %836 = vmatmul.mubr.f32.gmra.mxu0 %v767
    %v837 = vpop.f32.mrf.mxu0
    %v838 = vadd.f32 0.0, %v837
    %v839 = vpop.f32.mrf.mxu0
    %840 = vdwg.mxu0
    %841 = vrot.lane.b32.xlu0 %v345, 120
    %v842 = vpop.permute.xlu0 %841
    %843 = vrot.lane.b32.xlu0 %v345, 88
    %v844 = vpop.permute.xlu0 %843
    %v845 = vsel %vm443, %v842, 0
    %v847 = vsel %vm443, %v844, 0
    %849 = vmatprep.subr.mxu0 0.0
    %850 = vmatpush1.xpose.msra.mxu0 0.0
    %851 = vmatprep.subr.mxu0 0.0
    %852 = vmatpush1.xpose.msra.mxu0 0.0
    %853 = vmatprep.subr.mxu0 0.0
    %854 = vmatpush1.xpose.msra.mxu0 0.0
    %855 = vmatprep.subr.mxu0 0.0
    %856 = vmatpush1.xpose.msra.mxu0 0.0
    %857 = vmatprep.subr.mxu0 0.0
    %858 = vmatpush1.xpose.msra.mxu0 0.0
    %859 = vmatprep.subr.mxu0 0.0
    %860 = vmatpush1.xpose.msra.mxu0 0.0
    %861 = vmatprep.subr.mxu0 0.0
    %862 = vmatpush1.xpose.msra.mxu0 0.0
    %863 = vmatprep.subr.mxu0 0.0
    %864 = vmatpush1.xpose.msra.mxu0 0.0
    %865 = vmatprep.subr.mxu0 0.0
    %866 = vmatpush1.xpose.msra.mxu0 0.0
    %867 = vmatprep.subr.mxu0 0.0
    %868 = vmatpush1.xpose.msra.mxu0 0.0
    %869 = vmatprep.subr.mxu0 0.0
    %870 = vmatpush1.xpose.msra.mxu0 0.0
    %871 = vmatprep.subr.mxu0 0.0
    %872 = vmatpush1.xpose.msra.mxu0 0.0
    %873 = vmatprep.subr.mxu0 0.0
    %874 = vmatpush1.xpose.msra.mxu0 0.0
    %875 = vmatprep.subr.mxu0 0.0
    %876 = vmatpush1.xpose.msra.mxu0 0.0
    %877 = vmatprep.subr.mxu0 0.0
    %878 = vmatpush1.xpose.msra.mxu0 0.0
    %879 = vmatprep.subr.mxu0 0.0
    %880 = vmatpush1.xpose.msra.mxu0 %v847
    %881 = vmatprep.subr.mxu0 0.0
    %882 = vmatpush2.xpose.msra.mxu0 0.0
    %883 = vmatprep.subr.mxu0 0.0
    %884 = vmatpush2.xpose.msra.mxu0 0.0
    %885 = vmatprep.subr.mxu0 0.0
    %886 = vmatpush2.xpose.msra.mxu0 0.0
    %887 = vmatprep.subr.mxu0 0.0
    %888 = vmatpush2.xpose.msra.mxu0 0.0
    %889 = vmatprep.subr.mxu0 0.0
    %890 = vmatpush2.xpose.msra.mxu0 0.0
    %891 = vmatprep.subr.mxu0 0.0
    %892 = vmatpush2.xpose.msra.mxu0 0.0
    %893 = vmatprep.subr.mxu0 0.0
    %894 = vmatpush2.xpose.msra.mxu0 0.0
    %895 = vmatprep.subr.mxu0 0.0
    %896 = vmatpush2.xpose.msra.mxu0 0.0
    %897 = vmatprep.subr.mxu0 0.0
    %898 = vmatpush2.xpose.msra.mxu0 0.0
    %899 = vmatprep.subr.mxu0 0.0
    %900 = vmatpush2.xpose.msra.mxu0 0.0
    %901 = vmatprep.subr.mxu0 0.0
    %902 = vmatpush2.xpose.msra.mxu0 0.0
    %903 = vmatprep.subr.mxu0 0.0
    %904 = vmatpush2.xpose.msra.mxu0 0.0
    %905 = vmatprep.subr.mxu0 0.0
    %906 = vmatpush2.xpose.msra.mxu0 0.0
    %907 = vmatprep.subr.mxu0 0.0
    %908 = vmatpush2.xpose.msra.mxu0 0.0
    %909 = vmatprep.subr.mxu0 0.0
    %910 = vmatpush2.xpose.msra.mxu0 0.0
    %911 = vmatprep.subr.mxu0 0.0
    %912 = vmatpush2.xpose.msra.mxu0 0.0
    %913 = vmatprep.mubr.f32.mxu0 0.0
    %914 = vmatmul.mubr.f32.gmra.mxu0 %v845
    %v915 = vpop.f32.mrf.mxu0
    %v916 = vadd.f32 0.0, %v915
    %v917 = vpop.f32.mrf.mxu0
    %918 = vdwg.mxu0
    %v919 = vsel %vm443, %v838, -inf
    %920 = vmax.xlane.f32.xlu0 %v919
    %v921 = vpop.xlane.xlu0 %920
    %v922 = vsel %vm443, %v916, -inf
    %923 = vmax.xlane.f32.xlu0 %v922
    %v924 = vpop.xlane.xlu0 %923
    %v925 = vsub.f32 %v838, %v921
    %v926 = vsub.f32 %v916, %v924
    %v927 = vmul.f32 %v925, 1.442695
    %v928 = vpow.pop %v927
    %v929 = vmul.f32 %v926, 1.442695
    %v930 = vpow.pop %v929
    %v931 = vsel %vm443, %v928, 0.0
    %932 = vadd.xlane.f32.xlu0 %v931
    %v933 = vpop.xlane.xlu0 %932
    %v934 = vsel %vm443, %v930, 0.0
    %935 = vadd.xlane.f32.xlu0 %v934
    %v936 = vpop.xlane.xlu0 %935
    %v937 = vrcp.pop %v933
    %v938 = vrcp.pop %v936
    %v939 = vmul.f32 %v928, %v937
    %v940 = vmul.f32 %v930, %v938
    %942 = vrot.lane.b32.xlu0 %v432, 120
    %v943 = vpop.permute.xlu0 %942
    %v946 = vsel %vm443, %v939, 0
    %948 = vmatprep.subr.mxu0 0.0
    %949 = vmatpush1.msra.mxu0 0.0
    %950 = vmatprep.subr.mxu0 0.0
    %951 = vmatpush1.msra.mxu0 0.0
    %952 = vmatprep.subr.mxu0 0.0
    %953 = vmatpush1.msra.mxu0 0.0
    %954 = vmatprep.subr.mxu0 0.0
    %955 = vmatpush1.msra.mxu0 0.0
    %956 = vmatprep.subr.mxu0 0.0
    %957 = vmatpush1.msra.mxu0 0.0
    %958 = vmatprep.subr.mxu0 0.0
    %959 = vmatpush1.msra.mxu0 0.0
    %960 = vmatprep.subr.mxu0 0.0
    %961 = vmatpush1.msra.mxu0 0.0
    %962 = vmatprep.subr.mxu0 0.0
    %963 = vmatpush1.msra.mxu0 0.0
    %964 = vmatprep.subr.mxu0 0.0
    %965 = vmatpush1.msra.mxu0 0.0
    %966 = vmatprep.subr.mxu0 0.0
    %967 = vmatpush1.msra.mxu0 0.0
    %968 = vmatprep.subr.mxu0 0.0
    %969 = vmatpush1.msra.mxu0 0.0
    %970 = vmatprep.subr.mxu0 0.0
    %971 = vmatpush1.msra.mxu0 0.0
    %972 = vmatprep.subr.mxu0 0.0
    %973 = vmatpush1.msra.mxu0 0.0
    %974 = vmatprep.subr.mxu0 0.0
    %975 = vmatpush1.msra.mxu0 0.0
    %976 = vmatprep.subr.mxu0 0.0
    %977 = vmatpush1.msra.mxu0 0.0
    %978 = vmatprep.subr.mxu0 0.0
    %979 = vmatpush1.msra.mxu0 %v943
    %980 = vmatprep.subr.mxu0 0.0
    %981 = vmatpush2.msra.mxu0 0.0
    %982 = vmatprep.subr.mxu0 0.0
    %983 = vmatpush2.msra.mxu0 0.0
    %984 = vmatprep.subr.mxu0 0.0
    %985 = vmatpush2.msra.mxu0 0.0
    %986 = vmatprep.subr.mxu0 0.0
    %987 = vmatpush2.msra.mxu0 0.0
    %988 = vmatprep.subr.mxu0 0.0
    %989 = vmatpush2.msra.mxu0 0.0
    %990 = vmatprep.subr.mxu0 0.0
    %991 = vmatpush2.msra.mxu0 0.0
    %992 = vmatprep.subr.mxu0 0.0
    %993 = vmatpush2.msra.mxu0 0.0
    %994 = vmatprep.subr.mxu0 0.0
    %995 = vmatpush2.msra.mxu0 0.0
    %996 = vmatprep.subr.mxu0 0.0
    %997 = vmatpush2.msra.mxu0 0.0
    %998 = vmatprep.subr.mxu0 0.0
    %999 = vmatpush2.msra.mxu0 0.0
    %1000 = vmatprep.subr.mxu0 0.0
    %1001 = vmatpush2.msra.mxu0 0.0
    %1002 = vmatprep.subr.mxu0 0.0
    %1003 = vmatpush2.msra.mxu0 0.0
    %1004 = vmatprep.subr.mxu0 0.0
    %1005 = vmatpush2.msra.mxu0 0.0
    %1006 = vmatprep.subr.mxu0 0.0
    %1007 = vmatpush2.msra.mxu0 0.0
    %1008 = vmatprep.subr.mxu0 0.0
    %1009 = vmatpush2.msra.mxu0 0.0
    %1010 = vmatprep.subr.mxu0 0.0
    %1011 = vmatpush2.msra.mxu0 0.0
    %1012 = vmatprep.mubr.f32.mxu0 0.0
    %1013 = vmatmul.mubr.f32.gmra.mxu0 %v946
    %v1014 = vpop.f32.mrf.mxu0
    %v1015 = vadd.f32 0.0, %v1014
    %v1016 = vpop.f32.mrf.mxu0
    %1017 = vdwg.mxu0
    %1019 = vrot.lane.b32.xlu0 %v437, 120
    %v1020 = vpop.permute.xlu0 %1019
    %v1023 = vsel %vm443, %v940, 0
    %1025 = vmatprep.subr.mxu0 0.0
    %1026 = vmatpush1.msra.mxu0 0.0
    %1027 = vmatprep.subr.mxu0 0.0
    %1028 = vmatpush1.msra.mxu0 0.0
    %1029 = vmatprep.subr.mxu0 0.0
    %1030 = vmatpush1.msra.mxu0 0.0
    %1031 = vmatprep.subr.mxu0 0.0
    %1032 = vmatpush1.msra.mxu0 0.0
    %1033 = vmatprep.subr.mxu0 0.0
    %1034 = vmatpush1.msra.mxu0 0.0
    %1035 = vmatprep.subr.mxu0 0.0
    %1036 = vmatpush1.msra.mxu0 0.0
    %1037 = vmatprep.subr.mxu0 0.0
    %1038 = vmatpush1.msra.mxu0 0.0
    %1039 = vmatprep.subr.mxu0 0.0
    %1040 = vmatpush1.msra.mxu0 0.0
    %1041 = vmatprep.subr.mxu0 0.0
    %1042 = vmatpush1.msra.mxu0 0.0
    %1043 = vmatprep.subr.mxu0 0.0
    %1044 = vmatpush1.msra.mxu0 0.0
    %1045 = vmatprep.subr.mxu0 0.0
    %1046 = vmatpush1.msra.mxu0 0.0
    %1047 = vmatprep.subr.mxu0 0.0
    %1048 = vmatpush1.msra.mxu0 0.0
    %1049 = vmatprep.subr.mxu0 0.0
    %1050 = vmatpush1.msra.mxu0 0.0
    %1051 = vmatprep.subr.mxu0 0.0
    %1052 = vmatpush1.msra.mxu0 0.0
    %1053 = vmatprep.subr.mxu0 0.0
    %1054 = vmatpush1.msra.mxu0 0.0
    %1055 = vmatprep.subr.mxu0 0.0
    %1056 = vmatpush1.msra.mxu0 %v1020
    %1057 = vmatprep.subr.mxu0 0.0
    %1058 = vmatpush2.msra.mxu0 0.0
    %1059 = vmatprep.subr.mxu0 0.0
    %1060 = vmatpush2.msra.mxu0 0.0
    %1061 = vmatprep.subr.mxu0 0.0
    %1062 = vmatpush2.msra.mxu0 0.0
    %1063 = vmatprep.subr.mxu0 0.0
    %1064 = vmatpush2.msra.mxu0 0.0
    %1065 = vmatprep.subr.mxu0 0.0
    %1066 = vmatpush2.msra.mxu0 0.0
    %1067 = vmatprep.subr.mxu0 0.0
    %1068 = vmatpush2.msra.mxu0 0.0
    %1069 = vmatprep.subr.mxu0 0.0
    %1070 = vmatpush2.msra.mxu0 0.0
    %1071 = vmatprep.subr.mxu0 0.0
    %1072 = vmatpush2.msra.mxu0 0.0
    %1073 = vmatprep.subr.mxu0 0.0
    %1074 = vmatpush2.msra.mxu0 0.0
    %1075 = vmatprep.subr.mxu0 0.0
    %1076 = vmatpush2.msra.mxu0 0.0
    %1077 = vmatprep.subr.mxu0 0.0
    %1078 = vmatpush2.msra.mxu0 0.0
    %1079 = vmatprep.subr.mxu0 0.0
    %1080 = vmatpush2.msra.mxu0 0.0
    %1081 = vmatprep.subr.mxu0 0.0
    %1082 = vmatpush2.msra.mxu0 0.0
    %1083 = vmatprep.subr.mxu0 0.0
    %1084 = vmatpush2.msra.mxu0 0.0
    %1085 = vmatprep.subr.mxu0 0.0
    %1086 = vmatpush2.msra.mxu0 0.0
    %1087 = vmatprep.subr.mxu0 0.0
    %1088 = vmatpush2.msra.mxu0 0.0
    %1089 = vmatprep.mubr.f32.mxu0 0.0
    %1090 = vmatmul.mubr.f32.gmra.mxu0 %v1023
    %v1091 = vpop.f32.mrf.mxu0
    %v1092 = vadd.f32 0.0, %v1091
    %v1093 = vpop.f32.mrf.mxu0
    %1094 = vdwg.mxu0
    %1095 = vrot.lane.b32.xlu0 %v340, 112
    %v1096 = vpop.permute.xlu0 %1095
    %1097 = vrot.lane.b32.xlu0 %v340, 80
    %v1098 = vpop.permute.xlu0 %1097
    %v1099 = vsel %vm443, %v1096, 0
    %v1101 = vsel %vm443, %v1098, 0
    %1103 = vmatprep.subr.mxu0 0.0
    %1104 = vmatpush1.xpose.msra.mxu0 0.0
    %1105 = vmatprep.subr.mxu0 0.0
    %1106 = vmatpush1.xpose.msra.mxu0 0.0
    %1107 = vmatprep.subr.mxu0 0.0
    %1108 = vmatpush1.xpose.msra.mxu0 0.0
    %1109 = vmatprep.subr.mxu0 0.0
    %1110 = vmatpush1.xpose.msra.mxu0 0.0
    %1111 = vmatprep.subr.mxu0 0.0
    %1112 = vmatpush1.xpose.msra.mxu0 0.0
    %1113 = vmatprep.subr.mxu0 0.0
    %1114 = vmatpush1.xpose.msra.mxu0 0.0
    %1115 = vmatprep.subr.mxu0 0.0
    %1116 = vmatpush1.xpose.msra.mxu0 0.0
    %1117 = vmatprep.subr.mxu0 0.0
    %1118 = vmatpush1.xpose.msra.mxu0 0.0
    %1119 = vmatprep.subr.mxu0 0.0
    %1120 = vmatpush1.xpose.msra.mxu0 0.0
    %1121 = vmatprep.subr.mxu0 0.0
    %1122 = vmatpush1.xpose.msra.mxu0 0.0
    %1123 = vmatprep.subr.mxu0 0.0
    %1124 = vmatpush1.xpose.msra.mxu0 0.0
    %1125 = vmatprep.subr.mxu0 0.0
    %1126 = vmatpush1.xpose.msra.mxu0 0.0
    %1127 = vmatprep.subr.mxu0 0.0
    %1128 = vmatpush1.xpose.msra.mxu0 0.0
    %1129 = vmatprep.subr.mxu0 0.0
    %1130 = vmatpush1.xpose.msra.mxu0 0.0
    %1131 = vmatprep.subr.mxu0 0.0
    %1132 = vmatpush1.xpose.msra.mxu0 0.0
    %1133 = vmatprep.subr.mxu0 0.0
    %1134 = vmatpush1.xpose.msra.mxu0 %v1101
    %1135 = vmatprep.subr.mxu0 0.0
    %1136 = vmatpush2.xpose.msra.mxu0 0.0
    %1137 = vmatprep.subr.mxu0 0.0
    %1138 = vmatpush2.xpose.msra.mxu0 0.0
    %1139 = vmatprep.subr.mxu0 0.0
    %1140 = vmatpush2.xpose.msra.mxu0 0.0
    %1141 = vmatprep.subr.mxu0 0.0
    %1142 = vmatpush2.xpose.msra.mxu0 0.0
    %1143 = vmatprep.subr.mxu0 0.0
    %1144 = vmatpush2.xpose.msra.mxu0 0.0
    %1145 = vmatprep.subr.mxu0 0.0
    %1146 = vmatpush2.xpose.msra.mxu0 0.0
    %1147 = vmatprep.subr.mxu0 0.0
    %1148 = vmatpush2.xpose.msra.mxu0 0.0
    %1149 = vmatprep.subr.mxu0 0.0
    %1150 = vmatpush2.xpose.msra.mxu0 0.0
    %1151 = vmatprep.subr.mxu0 0.0
    %1152 = vmatpush2.xpose.msra.mxu0 0.0
    %1153 = vmatprep.subr.mxu0 0.0
    %1154 = vmatpush2.xpose.msra.mxu0 0.0
    %1155 = vmatprep.subr.mxu0 0.0
    %1156 = vmatpush2.xpose.msra.mxu0 0.0
    %1157 = vmatprep.subr.mxu0 0.0
    %1158 = vmatpush2.xpose.msra.mxu0 0.0
    %1159 = vmatprep.subr.mxu0 0.0
    %1160 = vmatpush2.xpose.msra.mxu0 0.0
    %1161 = vmatprep.subr.mxu0 0.0
    %1162 = vmatpush2.xpose.msra.mxu0 0.0
    %1163 = vmatprep.subr.mxu0 0.0
    %1164 = vmatpush2.xpose.msra.mxu0 0.0
    %1165 = vmatprep.subr.mxu0 0.0
    %1166 = vmatpush2.xpose.msra.mxu0 0.0
    %1167 = vmatprep.mubr.f32.mxu0 0.0
    %1168 = vmatmul.mubr.f32.gmra.mxu0 %v1099
    %v1169 = vpop.f32.mrf.mxu0
    %v1170 = vadd.f32 0.0, %v1169
    %v1171 = vpop.f32.mrf.mxu0
    %1172 = vdwg.mxu0
    %1173 = vrot.lane.b32.xlu0 %v345, 112
    %v1174 = vpop.permute.xlu0 %1173
    %1175 = vrot.lane.b32.xlu0 %v345, 80
    %v1176 = vpop.permute.xlu0 %1175
    %v1177 = vsel %vm443, %v1174, 0
    %v1179 = vsel %vm443, %v1176, 0
    %1181 = vmatprep.subr.mxu0 0.0
    %1182 = vmatpush1.xpose.msra.mxu0 0.0
    %1183 = vmatprep.subr.mxu0 0.0
    %1184 = vmatpush1.xpose.msra.mxu0 0.0
    %1185 = vmatprep.subr.mxu0 0.0
    %1186 = vmatpush1.xpose.msra.mxu0 0.0
    %1187 = vmatprep.subr.mxu0 0.0
    %1188 = vmatpush1.xpose.msra.mxu0 0.0
    %1189 = vmatprep.subr.mxu0 0.0
    %1190 = vmatpush1.xpose.msra.mxu0 0.0
    %1191 = vmatprep.subr.mxu0 0.0
    %1192 = vmatpush1.xpose.msra.mxu0 0.0
    %1193 = vmatprep.subr.mxu0 0.0
    %1194 = vmatpush1.xpose.msra.mxu0 0.0
    %1195 = vmatprep.subr.mxu0 0.0
    %1196 = vmatpush1.xpose.msra.mxu0 0.0
    %1197 = vmatprep.subr.mxu0 0.0
    %1198 = vmatpush1.xpose.msra.mxu0 0.0
    %1199 = vmatprep.subr.mxu0 0.0
    %1200 = vmatpush1.xpose.msra.mxu0 0.0
    %1201 = vmatprep.subr.mxu0 0.0
    %1202 = vmatpush1.xpose.msra.mxu0 0.0
    %1203 = vmatprep.subr.mxu0 0.0
    %1204 = vmatpush1.xpose.msra.mxu0 0.0
    %1205 = vmatprep.subr.mxu0 0.0
    %1206 = vmatpush1.xpose.msra.mxu0 0.0
    %1207 = vmatprep.subr.mxu0 0.0
    %1208 = vmatpush1.xpose.msra.mxu0 0.0
    %1209 = vmatprep.subr.mxu0 0.0
    %1210 = vmatpush1.xpose.msra.mxu0 0.0
    %1211 = vmatprep.subr.mxu0 0.0
    %1212 = vmatpush1.xpose.msra.mxu0 %v1179
    %1213 = vmatprep.subr.mxu0 0.0
    %1214 = vmatpush2.xpose.msra.mxu0 0.0
    %1215 = vmatprep.subr.mxu0 0.0
    %1216 = vmatpush2.xpose.msra.mxu0 0.0
    %1217 = vmatprep.subr.mxu0 0.0
    %1218 = vmatpush2.xpose.msra.mxu0 0.0
    %1219 = vmatprep.subr.mxu0 0.0
    %1220 = vmatpush2.xpose.msra.mxu0 0.0
    %1221 = vmatprep.subr.mxu0 0.0
    %1222 = vmatpush2.xpose.msra.mxu0 0.0
    %1223 = vmatprep.subr.mxu0 0.0
    %1224 = vmatpush2.xpose.msra.mxu0 0.0
    %1225 = vmatprep.subr.mxu0 0.0
    %1226 = vmatpush2.xpose.msra.mxu0 0.0
    %1227 = vmatprep.subr.mxu0 0.0
    %1228 = vmatpush2.xpose.msra.mxu0 0.0
    %1229 = vmatprep.subr.mxu0 0.0
    %1230 = vmatpush2.xpose.msra.mxu0 0.0
    %1231 = vmatprep.subr.mxu0 0.0
    %1232 = vmatpush2.xpose.msra.mxu0 0.0
    %1233 = vmatprep.subr.mxu0 0.0
    %1234 = vmatpush2.xpose.msra.mxu0 0.0
    %1235 = vmatprep.subr.mxu0 0.0
    %1236 = vmatpush2.xpose.msra.mxu0 0.0
    %1237 = vmatprep.subr.mxu0 0.0
    %1238 = vmatpush2.xpose.msra.mxu0 0.0
    %1239 = vmatprep.subr.mxu0 0.0
    %1240 = vmatpush2.xpose.msra.mxu0 0.0
    %1241 = vmatprep.subr.mxu0 0.0
    %1242 = vmatpush2.xpose.msra.mxu0 0.0
    %1243 = vmatprep.subr.mxu0 0.0
    %1244 = vmatpush2.xpose.msra.mxu0 0.0
    %1245 = vmatprep.mubr.f32.mxu0 0.0
    %1246 = vmatmul.mubr.f32.gmra.mxu0 %v1177
    %v1247 = vpop.f32.mrf.mxu0
    %v1248 = vadd.f32 0.0, %v1247
    %v1249 = vpop.f32.mrf.mxu0
    %1250 = vdwg.mxu0
    %v1251 = vsel %vm443, %v1170, -inf
    %1252 = vmax.xlane.f32.xlu0 %v1251
    %v1253 = vpop.xlane.xlu0 %1252
    %v1254 = vsel %vm443, %v1248, -inf
    %1255 = vmax.xlane.f32.xlu0 %v1254
    %v1256 = vpop.xlane.xlu0 %1255
    %v1257 = vsub.f32 %v1170, %v1253
    %v1258 = vsub.f32 %v1248, %v1256
    %v1259 = vmul.f32 %v1257, 1.442695
    %v1260 = vpow.pop %v1259
    %v1261 = vmul.f32 %v1258, 1.442695
    %v1262 = vpow.pop %v1261
    %v1263 = vsel %vm443, %v1260, 0.0
    %1264 = vadd.xlane.f32.xlu0 %v1263
    %v1265 = vpop.xlane.xlu0 %1264
    %v1266 = vsel %vm443, %v1262, 0.0
    %1267 = vadd.xlane.f32.xlu0 %v1266
    %v1268 = vpop.xlane.xlu0 %1267
    %v1269 = vrcp.pop %v1265
    %v1270 = vrcp.pop %v1268
    %v1271 = vmul.f32 %v1260, %v1269
    %v1272 = vmul.f32 %v1262, %v1270
    %1273 = vrot.lane.b32.xlu0 %v432, 112
    %v1274 = vpop.permute.xlu0 %1273
    %v1277 = vsel %vm443, %v1271, 0
    %1279 = vmatprep.subr.mxu0 0.0
    %1280 = vmatpush1.msra.mxu0 0.0
    %1281 = vmatprep.subr.mxu0 0.0
    %1282 = vmatpush1.msra.mxu0 0.0
    %1283 = vmatprep.subr.mxu0 0.0
    %1284 = vmatpush1.msra.mxu0 0.0
    %1285 = vmatprep.subr.mxu0 0.0
    %1286 = vmatpush1.msra.mxu0 0.0
    %1287 = vmatprep.subr.mxu0 0.0
    %1288 = vmatpush1.msra.mxu0 0.0
    %1289 = vmatprep.subr.mxu0 0.0
    %1290 = vmatpush1.msra.mxu0 0.0
    %1291 = vmatprep.subr.mxu0 0.0
    %1292 = vmatpush1.msra.mxu0 0.0
    %1293 = vmatprep.subr.mxu0 0.0
    %1294 = vmatpush1.msra.mxu0 0.0
    %1295 = vmatprep.subr.mxu0 0.0
    %1296 = vmatpush1.msra.mxu0 0.0
    %1297 = vmatprep.subr.mxu0 0.0
    %1298 = vmatpush1.msra.mxu0 0.0
    %1299 = vmatprep.subr.mxu0 0.0
    %1300 = vmatpush1.msra.mxu0 0.0
    %1301 = vmatprep.subr.mxu0 0.0
    %1302 = vmatpush1.msra.mxu0 0.0
    %1303 = vmatprep.subr.mxu0 0.0
    %1304 = vmatpush1.msra.mxu0 0.0
    %1305 = vmatprep.subr.mxu0 0.0
    %1306 = vmatpush1.msra.mxu0 0.0
    %1307 = vmatprep.subr.mxu0 0.0
    %1308 = vmatpush1.msra.mxu0 0.0
    %1309 = vmatprep.subr.mxu0 0.0
    %1310 = vmatpush1.msra.mxu0 %v1274
    %1311 = vmatprep.subr.mxu0 0.0
    %1312 = vmatpush2.msra.mxu0 0.0
    %1313 = vmatprep.subr.mxu0 0.0
    %1314 = vmatpush2.msra.mxu0 0.0
    %1315 = vmatprep.subr.mxu0 0.0
    %1316 = vmatpush2.msra.mxu0 0.0
    %1317 = vmatprep.subr.mxu0 0.0
    %1318 = vmatpush2.msra.mxu0 0.0
    %1319 = vmatprep.subr.mxu0 0.0
    %1320 = vmatpush2.msra.mxu0 0.0
    %1321 = vmatprep.subr.mxu0 0.0
    %1322 = vmatpush2.msra.mxu0 0.0
    %1323 = vmatprep.subr.mxu0 0.0
    %1324 = vmatpush2.msra.mxu0 0.0
    %1325 = vmatprep.subr.mxu0 0.0
    %1326 = vmatpush2.msra.mxu0 0.0
    %1327 = vmatprep.subr.mxu0 0.0
    %1328 = vmatpush2.msra.mxu0 0.0
    %1329 = vmatprep.subr.mxu0 0.0
    %1330 = vmatpush2.msra.mxu0 0.0
    %1331 = vmatprep.subr.mxu0 0.0
    %1332 = vmatpush2.msra.mxu0 0.0
    %1333 = vmatprep.subr.mxu0 0.0
    %1334 = vmatpush2.msra.mxu0 0.0
    %1335 = vmatprep.subr.mxu0 0.0
    %1336 = vmatpush2.msra.mxu0 0.0
    %1337 = vmatprep.subr.mxu0 0.0
    %1338 = vmatpush2.msra.mxu0 0.0
    %1339 = vmatprep.subr.mxu0 0.0
    %1340 = vmatpush2.msra.mxu0 0.0
    %1341 = vmatprep.subr.mxu0 0.0
    %1342 = vmatpush2.msra.mxu0 0.0
    %1343 = vmatprep.mubr.f32.mxu0 0.0
    %1344 = vmatmul.mubr.f32.gmra.mxu0 %v1277
    %v1345 = vpop.f32.mrf.mxu0
    %v1346 = vadd.f32 0.0, %v1345
    %v1347 = vpop.f32.mrf.mxu0
    %1348 = vdwg.mxu0
    %1349 = vrot.lane.b32.xlu0 %v437, 112
    %v1350 = vpop.permute.xlu0 %1349
    %v1353 = vsel %vm443, %v1272, 0
    %1355 = vmatprep.subr.mxu0 0.0
    %1356 = vmatpush1.msra.mxu0 0.0
    %1357 = vmatprep.subr.mxu0 0.0
    %1358 = vmatpush1.msra.mxu0 0.0
    %1359 = vmatprep.subr.mxu0 0.0
    %1360 = vmatpush1.msra.mxu0 0.0
    %1361 = vmatprep.subr.mxu0 0.0
    %1362 = vmatpush1.msra.mxu0 0.0
    %1363 = vmatprep.subr.mxu0 0.0
    %1364 = vmatpush1.msra.mxu0 0.0
    %1365 = vmatprep.subr.mxu0 0.0
    %1366 = vmatpush1.msra.mxu0 0.0
    %1367 = vmatprep.subr.mxu0 0.0
    %1368 = vmatpush1.msra.mxu0 0.0
    %1369 = vmatprep.subr.mxu0 0.0
    %1370 = vmatpush1.msra.mxu0 0.0
    %1371 = vmatprep.subr.mxu0 0.0
    %1372 = vmatpush1.msra.mxu0 0.0
    %1373 = vmatprep.subr.mxu0 0.0
    %1374 = vmatpush1.msra.mxu0 0.0
    %1375 = vmatprep.subr.mxu0 0.0
    %1376 = vmatpush1.msra.mxu0 0.0
    %1377 = vmatprep.subr.mxu0 0.0
    %1378 = vmatpush1.msra.mxu0 0.0
    %1379 = vmatprep.subr.mxu0 0.0
    %1380 = vmatpush1.msra.mxu0 0.0
    %1381 = vmatprep.subr.mxu0 0.0
    %1382 = vmatpush1.msra.mxu0 0.0
    %1383 = vmatprep.subr.mxu0 0.0
    %1384 = vmatpush1.msra.mxu0 0.0
    %1385 = vmatprep.subr.mxu0 0.0
    %1386 = vmatpush1.msra.mxu0 %v1350
    %1387 = vmatprep.subr.mxu0 0.0
    %1388 = vmatpush2.msra.mxu0 0.0
    %1389 = vmatprep.subr.mxu0 0.0
    %1390 = vmatpush2.msra.mxu0 0.0
    %1391 = vmatprep.subr.mxu0 0.0
    %1392 = vmatpush2.msra.mxu0 0.0
    %1393 = vmatprep.subr.mxu0 0.0
    %1394 = vmatpush2.msra.mxu0 0.0
    %1395 = vmatprep.subr.mxu0 0.0
    %1396 = vmatpush2.msra.mxu0 0.0
    %1397 = vmatprep.subr.mxu0 0.0
    %1398 = vmatpush2.msra.mxu0 0.0
    %1399 = vmatprep.subr.mxu0 0.0
    %1400 = vmatpush2.msra.mxu0 0.0
    %1401 = vmatprep.subr.mxu0 0.0
    %1402 = vmatpush2.msra.mxu0 0.0
    %1403 = vmatprep.subr.mxu0 0.0
    %1404 = vmatpush2.msra.mxu0 0.0
    %1405 = vmatprep.subr.mxu0 0.0
    %1406 = vmatpush2.msra.mxu0 0.0
    %1407 = vmatprep.subr.mxu0 0.0
    %1408 = vmatpush2.msra.mxu0 0.0
    %1409 = vmatprep.subr.mxu0 0.0
    %1410 = vmatpush2.msra.mxu0 0.0
    %1411 = vmatprep.subr.mxu0 0.0
    %1412 = vmatpush2.msra.mxu0 0.0
    %1413 = vmatprep.subr.mxu0 0.0
    %1414 = vmatpush2.msra.mxu0 0.0
    %1415 = vmatprep.subr.mxu0 0.0
    %1416 = vmatpush2.msra.mxu0 0.0
    %1417 = vmatprep.subr.mxu0 0.0
    %1418 = vmatpush2.msra.mxu0 0.0
    %1419 = vmatprep.mubr.f32.mxu0 0.0
    %1420 = vmatmul.mubr.f32.gmra.mxu0 %v1353
    %v1421 = vpop.f32.mrf.mxu0
    %v1422 = vadd.f32 0.0, %v1421
    %v1423 = vpop.f32.mrf.mxu0
    %1424 = vdwg.mxu0
    %1425 = vrot.lane.b32.xlu0 %v340, 104
    %v1426 = vpop.permute.xlu0 %1425
    %1427 = vrot.lane.b32.xlu0 %v340, 72
    %v1428 = vpop.permute.xlu0 %1427
    %v1429 = vsel %vm443, %v1426, 0
    %v1431 = vsel %vm443, %v1428, 0
    %1433 = vmatprep.subr.mxu0 0.0
    %1434 = vmatpush1.xpose.msra.mxu0 0.0
    %1435 = vmatprep.subr.mxu0 0.0
    %1436 = vmatpush1.xpose.msra.mxu0 0.0
    %1437 = vmatprep.subr.mxu0 0.0
    %1438 = vmatpush1.xpose.msra.mxu0 0.0
    %1439 = vmatprep.subr.mxu0 0.0
    %1440 = vmatpush1.xpose.msra.mxu0 0.0
    %1441 = vmatprep.subr.mxu0 0.0
    %1442 = vmatpush1.xpose.msra.mxu0 0.0
    %1443 = vmatprep.subr.mxu0 0.0
    %1444 = vmatpush1.xpose.msra.mxu0 0.0
    %1445 = vmatprep.subr.mxu0 0.0
    %1446 = vmatpush1.xpose.msra.mxu0 0.0
    %1447 = vmatprep.subr.mxu0 0.0
    %1448 = vmatpush1.xpose.msra.mxu0 0.0
    %1449 = vmatprep.subr.mxu0 0.0
    %1450 = vmatpush1.xpose.msra.mxu0 0.0
    %1451 = vmatprep.subr.mxu0 0.0
    %1452 = vmatpush1.xpose.msra.mxu0 0.0
    %1453 = vmatprep.subr.mxu0 0.0
    %1454 = vmatpush1.xpose.msra.mxu0 0.0
    %1455 = vmatprep.subr.mxu0 0.0
    %1456 = vmatpush1.xpose.msra.mxu0 0.0
    %1457 = vmatprep.subr.mxu0 0.0
    %1458 = vmatpush1.xpose.msra.mxu0 0.0
    %1459 = vmatprep.subr.mxu0 0.0
    %1460 = vmatpush1.xpose.msra.mxu0 0.0
    %1461 = vmatprep.subr.mxu0 0.0
    %1462 = vmatpush1.xpose.msra.mxu0 0.0
    %1463 = vmatprep.subr.mxu0 0.0
    %1464 = vmatpush1.xpose.msra.mxu0 %v1431
    %1465 = vmatprep.subr.mxu0 0.0
    %1466 = vmatpush2.xpose.msra.mxu0 0.0
    %1467 = vmatprep.subr.mxu0 0.0
    %1468 = vmatpush2.xpose.msra.mxu0 0.0
    %1469 = vmatprep.subr.mxu0 0.0
    %1470 = vmatpush2.xpose.msra.mxu0 0.0
    %1471 = vmatprep.subr.mxu0 0.0
    %1472 = vmatpush2.xpose.msra.mxu0 0.0
    %1473 = vmatprep.subr.mxu0 0.0
    %1474 = vmatpush2.xpose.msra.mxu0 0.0
    %1475 = vmatprep.subr.mxu0 0.0
    %1476 = vmatpush2.xpose.msra.mxu0 0.0
    %1477 = vmatprep.subr.mxu0 0.0
    %1478 = vmatpush2.xpose.msra.mxu0 0.0
    %1479 = vmatprep.subr.mxu0 0.0
    %1480 = vmatpush2.xpose.msra.mxu0 0.0
    %1481 = vmatprep.subr.mxu0 0.0
    %1482 = vmatpush2.xpose.msra.mxu0 0.0
    %1483 = vmatprep.subr.mxu0 0.0
    %1484 = vmatpush2.xpose.msra.mxu0 0.0
    %1485 = vmatprep.subr.mxu0 0.0
    %1486 = vmatpush2.xpose.msra.mxu0 0.0
    %1487 = vmatprep.subr.mxu0 0.0
    %1488 = vmatpush2.xpose.msra.mxu0 0.0
    %1489 = vmatprep.subr.mxu0 0.0
    %1490 = vmatpush2.xpose.msra.mxu0 0.0
    %1491 = vmatprep.subr.mxu0 0.0
    %1492 = vmatpush2.xpose.msra.mxu0 0.0
    %1493 = vmatprep.subr.mxu0 0.0
    %1494 = vmatpush2.xpose.msra.mxu0 0.0
    %1495 = vmatprep.subr.mxu0 0.0
    %1496 = vmatpush2.xpose.msra.mxu0 0.0
    %1497 = vmatprep.mubr.f32.mxu0 0.0
    %1498 = vmatmul.mubr.f32.gmra.mxu0 %v1429
    %v1499 = vpop.f32.mrf.mxu0
    %v1500 = vadd.f32 0.0, %v1499
    %v1501 = vpop.f32.mrf.mxu0
    %1502 = vdwg.mxu0
    %1503 = vrot.lane.b32.xlu0 %v345, 104
    %v1504 = vpop.permute.xlu0 %1503
    %1505 = vrot.lane.b32.xlu0 %v345, 72
    %v1506 = vpop.permute.xlu0 %1505
    %v1507 = vsel %vm443, %v1504, 0
    %v1509 = vsel %vm443, %v1506, 0
    %1511 = vmatprep.subr.mxu0 0.0
    %1512 = vmatpush1.xpose.msra.mxu0 0.0
    %1513 = vmatprep.subr.mxu0 0.0
    %1514 = vmatpush1.xpose.msra.mxu0 0.0
    %1515 = vmatprep.subr.mxu0 0.0
    %1516 = vmatpush1.xpose.msra.mxu0 0.0
    %1517 = vmatprep.subr.mxu0 0.0
    %1518 = vmatpush1.xpose.msra.mxu0 0.0
    %1519 = vmatprep.subr.mxu0 0.0
    %1520 = vmatpush1.xpose.msra.mxu0 0.0
    %1521 = vmatprep.subr.mxu0 0.0
    %1522 = vmatpush1.xpose.msra.mxu0 0.0
    %1523 = vmatprep.subr.mxu0 0.0
    %1524 = vmatpush1.xpose.msra.mxu0 0.0
    %1525 = vmatprep.subr.mxu0 0.0
    %1526 = vmatpush1.xpose.msra.mxu0 0.0
    %1527 = vmatprep.subr.mxu0 0.0
    %1528 = vmatpush1.xpose.msra.mxu0 0.0
    %1529 = vmatprep.subr.mxu0 0.0
    %1530 = vmatpush1.xpose.msra.mxu0 0.0
    %1531 = vmatprep.subr.mxu0 0.0
    %1532 = vmatpush1.xpose.msra.mxu0 0.0
    %1533 = vmatprep.subr.mxu0 0.0
    %1534 = vmatpush1.xpose.msra.mxu0 0.0
    %1535 = vmatprep.subr.mxu0 0.0
    %1536 = vmatpush1.xpose.msra.mxu0 0.0
    %1537 = vmatprep.subr.mxu0 0.0
    %1538 = vmatpush1.xpose.msra.mxu0 0.0
    %1539 = vmatprep.subr.mxu0 0.0
    %1540 = vmatpush1.xpose.msra.mxu0 0.0
    %1541 = vmatprep.subr.mxu0 0.0
    %1542 = vmatpush1.xpose.msra.mxu0 %v1509
    %1543 = vmatprep.subr.mxu0 0.0
    %1544 = vmatpush2.xpose.msra.mxu0 0.0
    %1545 = vmatprep.subr.mxu0 0.0
    %1546 = vmatpush2.xpose.msra.mxu0 0.0
    %1547 = vmatprep.subr.mxu0 0.0
    %1548 = vmatpush2.xpose.msra.mxu0 0.0
    %1549 = vmatprep.subr.mxu0 0.0
    %1550 = vmatpush2.xpose.msra.mxu0 0.0
    %1551 = vmatprep.subr.mxu0 0.0
    %1552 = vmatpush2.xpose.msra.mxu0 0.0
    %1553 = vmatprep.subr.mxu0 0.0
    %1554 = vmatpush2.xpose.msra.mxu0 0.0
    %1555 = vmatprep.subr.mxu0 0.0
    %1556 = vmatpush2.xpose.msra.mxu0 0.0
    %1557 = vmatprep.subr.mxu0 0.0
    %1558 = vmatpush2.xpose.msra.mxu0 0.0
    %1559 = vmatprep.subr.mxu0 0.0
    %1560 = vmatpush2.xpose.msra.mxu0 0.0
    %1561 = vmatprep.subr.mxu0 0.0
    %1562 = vmatpush2.xpose.msra.mxu0 0.0
    %1563 = vmatprep.subr.mxu0 0.0
    %1564 = vmatpush2.xpose.msra.mxu0 0.0
    %1565 = vmatprep.subr.mxu0 0.0
    %1566 = vmatpush2.xpose.msra.mxu0 0.0
    %1567 = vmatprep.subr.mxu0 0.0
    %1568 = vmatpush2.xpose.msra.mxu0 0.0
    %1569 = vmatprep.subr.mxu0 0.0
    %1570 = vmatpush2.xpose.msra.mxu0 0.0
    %1571 = vmatprep.subr.mxu0 0.0
    %1572 = vmatpush2.xpose.msra.mxu0 0.0
    %1573 = vmatprep.subr.mxu0 0.0
    %1574 = vmatpush2.xpose.msra.mxu0 0.0
    %1575 = vmatprep.mubr.f32.mxu0 0.0
    %1576 = vmatmul.mubr.f32.gmra.mxu0 %v1507
    %v1577 = vpop.f32.mrf.mxu0
    %v1578 = vadd.f32 0.0, %v1577
    %v1579 = vpop.f32.mrf.mxu0
    %1580 = vdwg.mxu0
    %v1581 = vsel %vm443, %v1500, -inf
    %1582 = vmax.xlane.f32.xlu0 %v1581
    %v1583 = vpop.xlane.xlu0 %1582
    %v1584 = vsel %vm443, %v1578, -inf
    %1585 = vmax.xlane.f32.xlu0 %v1584
    %v1586 = vpop.xlane.xlu0 %1585
    %v1587 = vsub.f32 %v1500, %v1583
    %v1588 = vsub.f32 %v1578, %v1586
    %v1589 = vmul.f32 %v1587, 1.442695
    %v1590 = vpow.pop %v1589
    %v1591 = vmul.f32 %v1588, 1.442695
    %v1592 = vpow.pop %v1591
    %v1593 = vsel %vm443, %v1590, 0.0
    %1594 = vadd.xlane.f32.xlu0 %v1593
    %v1595 = vpop.xlane.xlu0 %1594
    %v1596 = vsel %vm443, %v1592, 0.0
    %1597 = vadd.xlane.f32.xlu0 %v1596
    %v1598 = vpop.xlane.xlu0 %1597
    %v1599 = vrcp.pop %v1595
    %v1600 = vrcp.pop %v1598
    %v1601 = vmul.f32 %v1590, %v1599
    %v1602 = vmul.f32 %v1592, %v1600
    %1603 = vrot.lane.b32.xlu0 %v432, 104
    %v1604 = vpop.permute.xlu0 %1603
    %v1607 = vsel %vm443, %v1601, 0
    %1609 = vmatprep.subr.mxu0 0.0
    %1610 = vmatpush1.msra.mxu0 0.0
    %1611 = vmatprep.subr.mxu0 0.0
    %1612 = vmatpush1.msra.mxu0 0.0
    %1613 = vmatprep.subr.mxu0 0.0
    %1614 = vmatpush1.msra.mxu0 0.0
    %1615 = vmatprep.subr.mxu0 0.0
    %1616 = vmatpush1.msra.mxu0 0.0
    %1617 = vmatprep.subr.mxu0 0.0
    %1618 = vmatpush1.msra.mxu0 0.0
    %1619 = vmatprep.subr.mxu0 0.0
    %1620 = vmatpush1.msra.mxu0 0.0
    %1621 = vmatprep.subr.mxu0 0.0
    %1622 = vmatpush1.msra.mxu0 0.0
    %1623 = vmatprep.subr.mxu0 0.0
    %1624 = vmatpush1.msra.mxu0 0.0
    %1625 = vmatprep.subr.mxu0 0.0
    %1626 = vmatpush1.msra.mxu0 0.0
    %1627 = vmatprep.subr.mxu0 0.0
    %1628 = vmatpush1.msra.mxu0 0.0
    %1629 = vmatprep.subr.mxu0 0.0
    %1630 = vmatpush1.msra.mxu0 0.0
    %1631 = vmatprep.subr.mxu0 0.0
    %1632 = vmatpush1.msra.mxu0 0.0
    %1633 = vmatprep.subr.mxu0 0.0
    %1634 = vmatpush1.msra.mxu0 0.0
    %1635 = vmatprep.subr.mxu0 0.0
    %1636 = vmatpush1.msra.mxu0 0.0
    %1637 = vmatprep.subr.mxu0 0.0
    %1638 = vmatpush1.msra.mxu0 0.0
    %1639 = vmatprep.subr.mxu0 0.0
    %1640 = vmatpush1.msra.mxu0 %v1604
    %1641 = vmatprep.subr.mxu0 0.0
    %1642 = vmatpush2.msra.mxu0 0.0
    %1643 = vmatprep.subr.mxu0 0.0
    %1644 = vmatpush2.msra.mxu0 0.0
    %1645 = vmatprep.subr.mxu0 0.0
    %1646 = vmatpush2.msra.mxu0 0.0
    %1647 = vmatprep.subr.mxu0 0.0
    %1648 = vmatpush2.msra.mxu0 0.0
    %1649 = vmatprep.subr.mxu0 0.0
    %1650 = vmatpush2.msra.mxu0 0.0
    %1651 = vmatprep.subr.mxu0 0.0
    %1652 = vmatpush2.msra.mxu0 0.0
    %1653 = vmatprep.subr.mxu0 0.0
    %1654 = vmatpush2.msra.mxu0 0.0
    %1655 = vmatprep.subr.mxu0 0.0
    %1656 = vmatpush2.msra.mxu0 0.0
    %1657 = vmatprep.subr.mxu0 0.0
    %1658 = vmatpush2.msra.mxu0 0.0
    %1659 = vmatprep.subr.mxu0 0.0
    %1660 = vmatpush2.msra.mxu0 0.0
    %1661 = vmatprep.subr.mxu0 0.0
    %1662 = vmatpush2.msra.mxu0 0.0
    %1663 = vmatprep.subr.mxu0 0.0
    %1664 = vmatpush2.msra.mxu0 0.0
    %1665 = vmatprep.subr.mxu0 0.0
    %1666 = vmatpush2.msra.mxu0 0.0
    %1667 = vmatprep.subr.mxu0 0.0
    %1668 = vmatpush2.msra.mxu0 0.0
    %1669 = vmatprep.subr.mxu0 0.0
    %1670 = vmatpush2.msra.mxu0 0.0
    %1671 = vmatprep.subr.mxu0 0.0
    %1672 = vmatpush2.msra.mxu0 0.0
    %1673 = vmatprep.mubr.f32.mxu0 0.0
    %1674 = vmatmul.mubr.f32.gmra.mxu0 %v1607
    %v1675 = vpop.f32.mrf.mxu0
    %v1676 = vadd.f32 0.0, %v1675
    %v1677 = vpop.f32.mrf.mxu0
    %1678 = vdwg.mxu0
    %1679 = vrot.lane.b32.xlu0 %v437, 104
    %v1680 = vpop.permute.xlu0 %1679
    %v1683 = vsel %vm443, %v1602, 0
    %1685 = vmatprep.subr.mxu0 0.0
    %1686 = vmatpush1.msra.mxu0 0.0
    %1687 = vmatprep.subr.mxu0 0.0
    %1688 = vmatpush1.msra.mxu0 0.0
    %1689 = vmatprep.subr.mxu0 0.0
    %1690 = vmatpush1.msra.mxu0 0.0
    %1691 = vmatprep.subr.mxu0 0.0
    %1692 = vmatpush1.msra.mxu0 0.0
    %1693 = vmatprep.subr.mxu0 0.0
    %1694 = vmatpush1.msra.mxu0 0.0
    %1695 = vmatprep.subr.mxu0 0.0
    %1696 = vmatpush1.msra.mxu0 0.0
    %1697 = vmatprep.subr.mxu0 0.0
    %1698 = vmatpush1.msra.mxu0 0.0
    %1699 = vmatprep.subr.mxu0 0.0
    %1700 = vmatpush1.msra.mxu0 0.0
    %1701 = vmatprep.subr.mxu0 0.0
    %1702 = vmatpush1.msra.mxu0 0.0
    %1703 = vmatprep.subr.mxu0 0.0
    %1704 = vmatpush1.msra.mxu0 0.0
    %1705 = vmatprep.subr.mxu0 0.0
    %1706 = vmatpush1.msra.mxu0 0.0
    %1707 = vmatprep.subr.mxu0 0.0
    %1708 = vmatpush1.msra.mxu0 0.0
    %1709 = vmatprep.subr.mxu0 0.0
    %1710 = vmatpush1.msra.mxu0 0.0
    %1711 = vmatprep.subr.mxu0 0.0
    %1712 = vmatpush1.msra.mxu0 0.0
    %1713 = vmatprep.subr.mxu0 0.0
    %1714 = vmatpush1.msra.mxu0 0.0
    %1715 = vmatprep.subr.mxu0 0.0
    %1716 = vmatpush1.msra.mxu0 %v1680
    %1717 = vmatprep.subr.mxu0 0.0
    %1718 = vmatpush2.msra.mxu0 0.0
    %1719 = vmatprep.subr.mxu0 0.0
    %1720 = vmatpush2.msra.mxu0 0.0
    %1721 = vmatprep.subr.mxu0 0.0
    %1722 = vmatpush2.msra.mxu0 0.0
    %1723 = vmatprep.subr.mxu0 0.0
    %1724 = vmatpush2.msra.mxu0 0.0
    %1725 = vmatprep.subr.mxu0 0.0
    %1726 = vmatpush2.msra.mxu0 0.0
    %1727 = vmatprep.subr.mxu0 0.0
    %1728 = vmatpush2.msra.mxu0 0.0
    %1729 = vmatprep.subr.mxu0 0.0
    %1730 = vmatpush2.msra.mxu0 0.0
    %1731 = vmatprep.subr.mxu0 0.0
    %1732 = vmatpush2.msra.mxu0 0.0
    %1733 = vmatprep.subr.mxu0 0.0
    %1734 = vmatpush2.msra.mxu0 0.0
    %1735 = vmatprep.subr.mxu0 0.0
    %1736 = vmatpush2.msra.mxu0 0.0
    %1737 = vmatprep.subr.mxu0 0.0
    %1738 = vmatpush2.msra.mxu0 0.0
    %1739 = vmatprep.subr.mxu0 0.0
    %1740 = vmatpush2.msra.mxu0 0.0
    %1741 = vmatprep.subr.mxu0 0.0
    %1742 = vmatpush2.msra.mxu0 0.0
    %1743 = vmatprep.subr.mxu0 0.0
    %1744 = vmatpush2.msra.mxu0 0.0
    %1745 = vmatprep.subr.mxu0 0.0
    %1746 = vmatpush2.msra.mxu0 0.0
    %1747 = vmatprep.subr.mxu0 0.0
    %1748 = vmatpush2.msra.mxu0 0.0
    %1749 = vmatprep.mubr.f32.mxu0 0.0
    %1750 = vmatmul.mubr.f32.gmra.mxu0 %v1683
    %v1751 = vpop.f32.mrf.mxu0
    %v1752 = vadd.f32 0.0, %v1751
    %v1753 = vpop.f32.mrf.mxu0
    %1754 = vdwg.mxu0
    %1757 = vrot.lane.b32.xlu0 %v1015, 8
    %v1758 = vpop.permute.xlu0 %1757
    %1759 = vrot.lane.b32.xlu0 %v1092, 8
    %v1760 = vpop.permute.xlu0 %1759
    %1765 = vrot.lane.b32.xlu0 %v1346, 16
    %v1766 = vpop.permute.xlu0 %1765
    %1767 = vrot.lane.b32.xlu0 %v1422, 16
    %v1768 = vpop.permute.xlu0 %1767
    %1773 = vrot.lane.b32.xlu0 %v1676, 24
    %v1774 = vpop.permute.xlu0 %1773
    %1775 = vrot.lane.b32.xlu0 %v1752, 24
    %v1776 = vpop.permute.xlu0 %1775
    %v1779 = vsel %vm443, %v687, %v1758
    %v1780 = vsel %vm443, %v760, %v1760
    %vm1781 = vcmask 130048
    %v1782 = vsel %vm1781, %v1779, %v1766
    %v1783 = vsel %vm1781, %v1780, %v1768
    %vm1784 = vcmask 195584
    %v1785 = vsel %vm1784, %v1782, %v1774
    %v1786 = vsel %vm1784, %v1783, %v1776
    %v1787 = vld [vmem:[%s8] sm:$0xff]
    %v1788 = vld [vmem:[%s8 + $0x8] sm:$0xff]
    %v1789 = vld [vmem:[%s8 + $0x10] sm:$0xff]
    %v1790 = vld [vmem:[%s8 + $0x18] sm:$0xff]
    %v1791 = vld [vmem:[#allocation6] sm:$0x1]
    %v1793 = vlaneseq
    %v1794 = vshrl.u32 %v1793, 7
    %v1795 = vsub.s32 0, %v1794
    %v1796 = vrot.slane %v1791, %v1795
    %v1799 = vsel %vm266, %v1785, 0
    %v1802 = vsel %vm266, %v1786, 0
    %1804 = vmatprep.subr.mxu0 0.0
    %1805 = vmatpush1.msra.mxu0 0.0
    %1806 = vmatprep.subr.mxu0 0.0
    %1807 = vmatpush1.msra.mxu0 0.0
    %1808 = vmatprep.subr.mxu0 0.0
    %1809 = vmatpush1.msra.mxu0 0.0
    %1810 = vmatprep.subr.mxu0 0.0
    %1811 = vmatpush1.msra.mxu0 0.0
    %1812 = vmatprep.subr.mxu0 0.0
    %1813 = vmatpush1.msra.mxu0 0.0
    %1814 = vmatprep.subr.mxu0 0.0
    %1815 = vmatpush1.msra.mxu0 0.0
    %1816 = vmatprep.subr.mxu0 0.0
    %1817 = vmatpush1.msra.mxu0 0.0
    %1818 = vmatprep.subr.mxu0 0.0
    %1819 = vmatpush1.msra.mxu0 0.0
    %1820 = vmatprep.subr.mxu0 0.0
    %1821 = vmatpush1.msra.mxu0 0.0
    %1822 = vmatprep.subr.mxu0 0.0
    %1823 = vmatpush1.msra.mxu0 0.0
    %1824 = vmatprep.subr.mxu0 0.0
    %1825 = vmatpush1.msra.mxu0 0.0
    %1826 = vmatprep.subr.mxu0 0.0
    %1827 = vmatpush1.msra.mxu0 0.0
    %1828 = vmatprep.subr.mxu0 0.0
    %1829 = vmatpush1.msra.mxu0 %v1790
    %1830 = vmatprep.subr.mxu0 0.0
    %1831 = vmatpush1.msra.mxu0 %v1789
    %1832 = vmatprep.subr.mxu0 0.0
    %1833 = vmatpush1.msra.mxu0 %v1788
    %1834 = vmatprep.subr.mxu0 0.0
    %1835 = vmatpush1.msra.mxu0 %v1787
    %1836 = vmatprep.subr.mxu0 0.0
    %1837 = vmatpush2.msra.mxu0 0.0
    %1838 = vmatprep.subr.mxu0 0.0
    %1839 = vmatpush2.msra.mxu0 0.0
    %1840 = vmatprep.subr.mxu0 0.0
    %1841 = vmatpush2.msra.mxu0 0.0
    %1842 = vmatprep.subr.mxu0 0.0
    %1843 = vmatpush2.msra.mxu0 0.0
    %1844 = vmatprep.subr.mxu0 0.0
    %1845 = vmatpush2.msra.mxu0 0.0
    %1846 = vmatprep.subr.mxu0 0.0
    %1847 = vmatpush2.msra.mxu0 0.0
    %1848 = vmatprep.subr.mxu0 0.0
    %1849 = vmatpush2.msra.mxu0 0.0
    %1850 = vmatprep.subr.mxu0 0.0
    %1851 = vmatpush2.msra.mxu0 0.0
    %1852 = vmatprep.subr.mxu0 0.0
    %1853 = vmatpush2.msra.mxu0 0.0
    %1854 = vmatprep.subr.mxu0 0.0
    %1855 = vmatpush2.msra.mxu0 0.0
    %1856 = vmatprep.subr.mxu0 0.0
    %1857 = vmatpush2.msra.mxu0 0.0
    %1858 = vmatprep.subr.mxu0 0.0
    %1859 = vmatpush2.msra.mxu0 0.0
    %1860 = vmatprep.subr.mxu0 0.0
    %1861 = vmatpush2.msra.mxu0 0.0
    %1862 = vmatprep.subr.mxu0 0.0
    %1863 = vmatpush2.msra.mxu0 0.0
    %1864 = vmatprep.subr.mxu0 0.0
    %1865 = vmatpush2.msra.mxu0 0.0
    %1866 = vmatprep.subr.mxu0 0.0
    %1867 = vmatpush2.msra.mxu0 0.0
    %1868 = vmatprep.mubr.f32.mxu0 0.0
    %1869 = vmatmul.mubr.f32.gmra.mxu0 %v1799
    %v1870 = vpop.f32.mrf.mxu0
    %v1871 = vadd.f32 %v1796, %v1870
    %v1872 = vpop.f32.mrf.mxu0
    %1873 = vmatprep.mubr.f32.mxu0 0.0
    %1874 = vmatmul.mubr.f32.gmra.mxu0 %v1802
    %v1875 = vpop.f32.mrf.mxu0
    %v1876 = vadd.f32 %v1796, %v1875
    %v1877 = vpop.f32.mrf.mxu0
    %1878 = vdwg.mxu0
    %v1879 = vadd.f32 %v1871, %v241
    %v1880 = vadd.f32 %v1876, %v242
    %v1881 = vsel %vm266, %v1879, 0.0
    %1882 = vadd.xlane.f32.xlu0 %v1881
    %v1883 = vpop.xlane.xlu0 %1882
    %v1884 = vsel %vm266, %v1880, 0.0
    %1885 = vadd.xlane.f32.xlu0 %v1884
    %v1886 = vpop.xlane.xlu0 %1885
    %v1887 = vrcp.pop 32.0
    %v1888 = vmul.f32 %v1883, %v1887
    %v1889 = vmul.f32 %v1886, %v1887
    %v1890 = vsub.f32 %v1879, %v1888
    %v1891 = vsub.f32 %v1880, %v1889
    %v1892 = vmul.f32 %v1890, %v1890
    %v1893 = vmul.f32 %v1891, %v1891
    %v1894 = vsel %vm266, %v1892, 0.0
    %1895 = vadd.xlane.f32.xlu0 %v1894
    %v1896 = vpop.xlane.xlu0 %1895
    %v1897 = vsel %vm266, %v1893, 0.0
    %1898 = vadd.xlane.f32.xlu0 %v1897
    %v1899 = vpop.xlane.xlu0 %1898
    %v1900 = vmul.f32 %v1896, %v1887
    %v1901 = vmul.f32 %v1899, %v1887
    %v1902 = vadd.f32 %v1900, 1e-05
    %v1903 = vadd.f32 %v1901, 1e-05
    %v1904 = vrsqrt.pop %v1902
    %v1905 = vrsqrt.pop %v1903
    %v1906 = vmul.f32 %v1890, %v1904
    %v1907 = vmul.f32 %v1891, %v1905
    %v1908 = vld [vmem:[#allocation16] sm:$0x1]
    %v1910 = vlaneseq
    %v1911 = vshrl.u32 %v1910, 7
    %v1912 = vsub.s32 0, %v1911
    %v1913 = vrot.slane %v1908, %v1912
    %v1915 = vmul.f32 %v1906, %v1913
    %v1916 = vmul.f32 %v1907, %v1913
    %v1917 = vld [vmem:[#allocation18] sm:$0x1]
    %v1919 = vlaneseq
    %v1920 = vshrl.u32 %v1919, 7
    %v1921 = vsub.s32 0, %v1920
    %v1922 = vrot.slane %v1917, %v1921
    %v1924 = vadd.f32 %v1915, %v1922
    %v1925 = vadd.f32 %v1916, %v1922
    %v1926 = vadd.f32 %v1924, %v247
    %v1927 = vadd.f32 %v1925, %v248
    %v1928 = vld [vmem:[%s10] sm:$0xff]
    %v1929 = vld [vmem:[%s10 + $0x8] sm:$0xff]
    %v1930 = vld [vmem:[%s10 + $0x10] sm:$0xff]
    %v1931 = vld [vmem:[%s10 + $0x18] sm:$0xff]
    %v1932 = vld [vmem:[#allocation7] sm:$0x1]
    %v1934 = vlaneseq
    %v1935 = vshrl.u32 %v1934, 7
    %v1936 = vsub.s32 0, %v1935
    %v1937 = vrot.slane %v1932, %v1936
    %v1940 = vsel %vm266, %v1926, 0
    %v1943 = vsel %vm266, %v1927, 0
    %1945 = vmatprep.subr.mxu0 0.0
    %1946 = vmatpush1.msra.mxu0 0.0
    %1947 = vmatprep.subr.mxu0 0.0
    %1948 = vmatpush1.msra.mxu0 0.0
    %1949 = vmatprep.subr.mxu0 0.0
    %1950 = vmatpush1.msra.mxu0 0.0
    %1951 = vmatprep.subr.mxu0 0.0
    %1952 = vmatpush1.msra.mxu0 0.0
    %1953 = vmatprep.subr.mxu0 0.0
    %1954 = vmatpush1.msra.mxu0 0.0
    %1955 = vmatprep.subr.mxu0 0.0
    %1956 = vmatpush1.msra.mxu0 0.0
    %1957 = vmatprep.subr.mxu0 0.0
    %1958 = vmatpush1.msra.mxu0 0.0
    %1959 = vmatprep.subr.mxu0 0.0
    %1960 = vmatpush1.msra.mxu0 0.0
    %1961 = vmatprep.subr.mxu0 0.0
    %1962 = vmatpush1.msra.mxu0 0.0
    %1963 = vmatprep.subr.mxu0 0.0
    %1964 = vmatpush1.msra.mxu0 0.0
    %1965 = vmatprep.subr.mxu0 0.0
    %1966 = vmatpush1.msra.mxu0 0.0
    %1967 = vmatprep.subr.mxu0 0.0
    %1968 = vmatpush1.msra.mxu0 0.0
    %1969 = vmatprep.subr.mxu0 0.0
    %1970 = vmatpush1.msra.mxu0 %v1931
    %1971 = vmatprep.subr.mxu0 0.0
    %1972 = vmatpush1.msra.mxu0 %v1930
    %1973 = vmatprep.subr.mxu0 0.0
    %1974 = vmatpush1.msra.mxu0 %v1929
    %1975 = vmatprep.subr.mxu0 0.0
    %1976 = vmatpush1.msra.mxu0 %v1928
    %1977 = vmatprep.subr.mxu0 0.0
    %1978 = vmatpush2.msra.mxu0 0.0
    %1979 = vmatprep.subr.mxu0 0.0
    %1980 = vmatpush2.msra.mxu0 0.0
    %1981 = vmatprep.subr.mxu0 0.0
    %1982 = vmatpush2.msra.mxu0 0.0
    %1983 = vmatprep.subr.mxu0 0.0
    %1984 = vmatpush2.msra.mxu0 0.0
    %1985 = vmatprep.subr.mxu0 0.0
    %1986 = vmatpush2.msra.mxu0 0.0
    %1987 = vmatprep.subr.mxu0 0.0
    %1988 = vmatpush2.msra.mxu0 0.0
    %1989 = vmatprep.subr.mxu0 0.0
    %1990 = vmatpush2.msra.mxu0 0.0
    %1991 = vmatprep.subr.mxu0 0.0
    %1992 = vmatpush2.msra.mxu0 0.0
    %1993 = vmatprep.subr.mxu0 0.0
    %1994 = vmatpush2.msra.mxu0 0.0
    %1995 = vmatprep.subr.mxu0 0.0
    %1996 = vmatpush2.msra.mxu0 0.0
    %1997 = vmatprep.subr.mxu0 0.0
    %1998 = vmatpush2.msra.mxu0 0.0
    %1999 = vmatprep.subr.mxu0 0.0
    %2000 = vmatpush2.msra.mxu0 0.0
    %2001 = vmatprep.subr.mxu0 0.0
    %2002 = vmatpush2.msra.mxu0 0.0
    %2003 = vmatprep.subr.mxu0 0.0
    %2004 = vmatpush2.msra.mxu0 0.0
    %2005 = vmatprep.subr.mxu0 0.0
    %2006 = vmatpush2.msra.mxu0 0.0
    %2007 = vmatprep.subr.mxu0 0.0
    %2008 = vmatpush2.msra.mxu0 0.0
    %2009 = vmatprep.mubr.f32.mxu0 0.0
    %2010 = vmatmul.mubr.f32.gmra.mxu0 %v1940
    %v2011 = vpop.f32.mrf.mxu0
    %v2012 = vadd.f32 %v1937, %v2011
    %v2013 = vpop.f32.mrf.mxu0
    %2014 = vmatprep.mubr.f32.mxu0 0.0
    %2015 = vmatmul.mubr.f32.gmra.mxu0 %v1943
    %v2016 = vpop.f32.mrf.mxu0
    %v2017 = vadd.f32 %v1937, %v2016
    %v2018 = vpop.f32.mrf.mxu0
    %2019 = vdwg.mxu0
    %v2020 = vadd.f32 %v243, %v249
    %v2021 = vadd.f32 %v244, %v250
    %v2022 = vadd.f32 %v245, %v251
    %v2023 = vadd.f32 %v246, %v252
    %v2024 = vld [vmem:[%s12] sm:$0xff]
    %v2025 = vld [vmem:[%s12 + $0x8] sm:$0xff]
    %v2026 = vld [vmem:[%s12 + $0x10] sm:$0xff]
    %v2027 = vld [vmem:[%s12 + $0x18] sm:$0xff]
    %v2028 = vld [vmem:[#allocation9] sm:$0x1]
    %v2030 = vlaneseq
    %v2031 = vshrl.u32 %v2030, 7
    %v2032 = vsub.s32 0, %v2031
    %v2033 = vrot.slane %v2028, %v2032
    %v2036 = vsel %vm266, %v2020, 0
    %v2039 = vsel %vm266, %v2021, 0
    %v2042 = vsel %vm266, %v2022, 0
    %v2045 = vsel %vm266, %v2023, 0
    %2047 = vmatprep.subr.mxu0 0.0
    %2048 = vmatpush1.msra.mxu0 0.0
    %2049 = vmatprep.subr.mxu0 0.0
    %2050 = vmatpush1.msra.mxu0 0.0
    %2051 = vmatprep.subr.mxu0 0.0
    %2052 = vmatpush1.msra.mxu0 0.0
    %2053 = vmatprep.subr.mxu0 0.0
    %2054 = vmatpush1.msra.mxu0 0.0
    %2055 = vmatprep.subr.mxu0 0.0
    %2056 = vmatpush1.msra.mxu0 0.0
    %2057 = vmatprep.subr.mxu0 0.0
    %2058 = vmatpush1.msra.mxu0 0.0
    %2059 = vmatprep.subr.mxu0 0.0
    %2060 = vmatpush1.msra.mxu0 0.0
    %2061 = vmatprep.subr.mxu0 0.0
    %2062 = vmatpush1.msra.mxu0 0.0
    %2063 = vmatprep.subr.mxu0 0.0
    %2064 = vmatpush1.msra.mxu0 0.0
    %2065 = vmatprep.subr.mxu0 0.0
    %2066 = vmatpush1.msra.mxu0 0.0
    %2067 = vmatprep.subr.mxu0 0.0
    %2068 = vmatpush1.msra.mxu0 0.0
    %2069 = vmatprep.subr.mxu0 0.0
    %2070 = vmatpush1.msra.mxu0 0.0
    %2071 = vmatprep.subr.mxu0 0.0
    %2072 = vmatpush1.msra.mxu0 %v2027
    %2073 = vmatprep.subr.mxu0 0.0
    %2074 = vmatpush1.msra.mxu0 %v2026
    %2075 = vmatprep.subr.mxu0 0.0
    %2076 = vmatpush1.msra.mxu0 %v2025
    %2077 = vmatprep.subr.mxu0 0.0
    %2078 = vmatpush1.msra.mxu0 %v2024
    %2079 = vmatprep.subr.mxu0 0.0
    %2080 = vmatpush2.msra.mxu0 0.0
    %2081 = vmatprep.subr.mxu0 0.0
    %2082 = vmatpush2.msra.mxu0 0.0
    %2083 = vmatprep.subr.mxu0 0.0
    %2084 = vmatpush2.msra.mxu0 0.0
    %2085 = vmatprep.subr.mxu0 0.0
    %2086 = vmatpush2.msra.mxu0 0.0
    %2087 = vmatprep.subr.mxu0 0.0
    %2088 = vmatpush2.msra.mxu0 0.0
    %2089 = vmatprep.subr.mxu0 0.0
    %2090 = vmatpush2.msra.mxu0 0.0
    %2091 = vmatprep.subr.mxu0 0.0
    %2092 = vmatpush2.msra.mxu0 0.0
    %2093 = vmatprep.subr.mxu0 0.0
    %2094 = vmatpush2.msra.mxu0 0.0
    %2095 = vmatprep.subr.mxu0 0.0
    %2096 = vmatpush2.msra.mxu0 0.0
    %2097 = vmatprep.subr.mxu0 0.0
    %2098 = vmatpush2.msra.mxu0 0.0
    %2099 = vmatprep.subr.mxu0 0.0
    %2100 = vmatpush2.msra.mxu0 0.0
    %2101 = vmatprep.subr.mxu0 0.0
    %2102 = vmatpush2.msra.mxu0 0.0
    %2103 = vmatprep.subr.mxu0 0.0
    %2104 = vmatpush2.msra.mxu0 0.0
    %2105 = vmatprep.subr.mxu0 0.0
    %2106 = vmatpush2.msra.mxu0 0.0
    %2107 = vmatprep.subr.mxu0 0.0
    %2108 = vmatpush2.msra.mxu0 0.0
    %2109 = vmatprep.subr.mxu0 0.0
    %2110 = vmatpush2.msra.mxu0 0.0
    %2111 = vmatprep.mubr.f32.mxu0 0.0
    %2112 = vmatmul.mubr.f32.gmra.mxu0 %v2036
    %v2113 = vpop.f32.mrf.mxu0
    %v2114 = vadd.f32 %v2033, %v2113
    %v2115 = vpop.f32.mrf.mxu0
    %2116 = vmatprep.mubr.f32.mxu0 0.0
    %2117 = vmatmul.mubr.f32.gmra.mxu0 %v2039
    %v2118 = vpop.f32.mrf.mxu0
    %v2119 = vadd.f32 %v2033, %v2118
    %v2120 = vpop.f32.mrf.mxu0
    %2121 = vmatprep.mubr.f32.mxu0 0.0
    %2122 = vmatmul.mubr.f32.gmra.mxu0 %v2042
    %v2123 = vpop.f32.mrf.mxu0
    %v2124 = vadd.f32 %v2033, %v2123
    %v2125 = vpop.f32.mrf.mxu0
    %2126 = vmatprep.mubr.f32.mxu0 0.0
    %2127 = vmatmul.mubr.f32.gmra.mxu0 %v2045
    %v2128 = vpop.f32.mrf.mxu0
    %v2129 = vadd.f32 %v2033, %v2128
    %v2130 = vpop.f32.mrf.mxu0
    %2131 = vdwg.mxu0
    %v2132 = vld [vmem:[%s14] sm:$0xff]
    %v2133 = vld [vmem:[%s14 + $0x8] sm:$0xff]
    %v2134 = vld [vmem:[%s14 + $0x10] sm:$0xff]
    %v2135 = vld [vmem:[%s14 + $0x18] sm:$0xff]
    %v2136 = vld [vmem:[#allocation10] sm:$0x1]
    %v2138 = vlaneseq
    %v2139 = vshrl.u32 %v2138, 7
    %v2140 = vsub.s32 0, %v2139
    %v2141 = vrot.slane %v2136, %v2140
    %v2144 = vsel %vm266, %v243, 0
    %v2147 = vsel %vm266, %v244, 0
    %v2150 = vsel %vm266, %v245, 0
    %v2153 = vsel %vm266, %v246, 0
    %2155 = vmatprep.subr.mxu0 0.0
    %2156 = vmatpush1.msra.mxu0 0.0
    %2157 = vmatprep.subr.mxu0 0.0
    %2158 = vmatpush1.msra.mxu0 0.0
    %2159 = vmatprep.subr.mxu0 0.0
    %2160 = vmatpush1.msra.mxu0 0.0
    %2161 = vmatprep.subr.mxu0 0.0
    %2162 = vmatpush1.msra.mxu0 0.0
    %2163 = vmatprep.subr.mxu0 0.0
    %2164 = vmatpush1.msra.mxu0 0.0
    %2165 = vmatprep.subr.mxu0 0.0
    %2166 = vmatpush1.msra.mxu0 0.0
    %2167 = vmatprep.subr.mxu0 0.0
    %2168 = vmatpush1.msra.mxu0 0.0
    %2169 = vmatprep.subr.mxu0 0.0
    %2170 = vmatpush1.msra.mxu0 0.0
    %2171 = vmatprep.subr.mxu0 0.0
    %2172 = vmatpush1.msra.mxu0 0.0
    %2173 = vmatprep.subr.mxu0 0.0
    %2174 = vmatpush1.msra.mxu0 0.0
    %2175 = vmatprep.subr.mxu0 0.0
    %2176 = vmatpush1.msra.mxu0 0.0
    %2177 = vmatprep.subr.mxu0 0.0
    %2178 = vmatpush1.msra.mxu0 0.0
    %2179 = vmatprep.subr.mxu0 0.0
    %2180 = vmatpush1.msra.mxu0 %v2135
    %2181 = vmatprep.subr.mxu0 0.0
    %2182 = vmatpush1.msra.mxu0 %v2134
    %2183 = vmatprep.subr.mxu0 0.0
    %2184 = vmatpush1.msra.mxu0 %v2133
    %2185 = vmatprep.subr.mxu0 0.0
    %2186 = vmatpush1.msra.mxu0 %v2132
    %2187 = vmatprep.subr.mxu0 0.0
    %2188 = vmatpush2.msra.mxu0 0.0
    %2189 = vmatprep.subr.mxu0 0.0
    %2190 = vmatpush2.msra.mxu0 0.0
    %2191 = vmatprep.subr.mxu0 0.0
    %2192 = vmatpush2.msra.mxu0 0.0
    %2193 = vmatprep.subr.mxu0 0.0
    %2194 = vmatpush2.msra.mxu0 0.0
    %2195 = vmatprep.subr.mxu0 0.0
    %2196 = vmatpush2.msra.mxu0 0.0
    %2197 = vmatprep.subr.mxu0 0.0
    %2198 = vmatpush2.msra.mxu0 0.0
    %2199 = vmatprep.subr.mxu0 0.0
    %2200 = vmatpush2.msra.mxu0 0.0
    %2201 = vmatprep.subr.mxu0 0.0
    %2202 = vmatpush2.msra.mxu0 0.0
    %2203 = vmatprep.subr.mxu0 0.0
    %2204 = vmatpush2.msra.mxu0 0.0
    %2205 = vmatprep.subr.mxu0 0.0
    %2206 = vmatpush2.msra.mxu0 0.0
    %2207 = vmatprep.subr.mxu0 0.0
    %2208 = vmatpush2.msra.mxu0 0.0
    %2209 = vmatprep.subr.mxu0 0.0
    %2210 = vmatpush2.msra.mxu0 0.0
    %2211 = vmatprep.subr.mxu0 0.0
    %2212 = vmatpush2.msra.mxu0 0.0
    %2213 = vmatprep.subr.mxu0 0.0
    %2214 = vmatpush2.msra.mxu0 0.0
    %2215 = vmatprep.subr.mxu0 0.0
    %2216 = vmatpush2.msra.mxu0 0.0
    %2217 = vmatprep.subr.mxu0 0.0
    %2218 = vmatpush2.msra.mxu0 0.0
    %2219 = vmatprep.mubr.f32.mxu0 0.0
    %2220 = vmatmul.mubr.f32.gmra.mxu0 %v2144
    %v2221 = vpop.f32.mrf.mxu0
    %v2222 = vadd.f32 %v2141, %v2221
    %v2223 = vpop.f32.mrf.mxu0
    %2224 = vmatprep.mubr.f32.mxu0 0.0
    %2225 = vmatmul.mubr.f32.gmra.mxu0 %v2147
    %v2226 = vpop.f32.mrf.mxu0
    %v2227 = vadd.f32 %v2141, %v2226
    %v2228 = vpop.f32.mrf.mxu0
    %2229 = vmatprep.mubr.f32.mxu0 0.0
    %2230 = vmatmul.mubr.f32.gmra.mxu0 %v2150
    %v2231 = vpop.f32.mrf.mxu0
    %v2232 = vadd.f32 %v2141, %v2231
    %v2233 = vpop.f32.mrf.mxu0
    %2234 = vmatprep.mubr.f32.mxu0 0.0
    %2235 = vmatmul.mubr.f32.gmra.mxu0 %v2153
    %v2236 = vpop.f32.mrf.mxu0
    %v2237 = vadd.f32 %v2141, %v2236
    %v2238 = vpop.f32.mrf.mxu0
    %2239 = vdwg.mxu0
    %v2241 = vsel %vm443, %v2012, 0
    %v2244 = vsel %vm443, %v2114, 0
    %v2247 = vsel %vm443, %v2119, 0
    %2249 = vmatprep.subr.mxu0 0.0
    %2250 = vmatpush1.xpose.msra.mxu0 0.0
    %2251 = vmatprep.subr.mxu0 0.0
    %2252 = vmatpush1.xpose.msra.mxu0 0.0
    %2253 = vmatprep.subr.mxu0 0.0
    %2254 = vmatpush1.xpose.msra.mxu0 0.0
    %2255 = vmatprep.subr.mxu0 0.0
    %2256 = vmatpush1.xpose.msra.mxu0 0.0
    %2257 = vmatprep.subr.mxu0 0.0
    %2258 = vmatpush1.xpose.msra.mxu0 0.0
    %2259 = vmatprep.subr.mxu0 0.0
    %2260 = vmatpush1.xpose.msra.mxu0 0.0
    %2261 = vmatprep.subr.mxu0 0.0
    %2262 = vmatpush1.xpose.msra.mxu0 0.0
    %2263 = vmatprep.subr.mxu0 0.0
    %2264 = vmatpush1.xpose.msra.mxu0 0.0
    %2265 = vmatprep.subr.mxu0 0.0
    %2266 = vmatpush1.xpose.msra.mxu0 0.0
    %2267 = vmatprep.subr.mxu0 0.0
    %2268 = vmatpush1.xpose.msra.mxu0 0.0
    %2269 = vmatprep.subr.mxu0 0.0
    %2270 = vmatpush1.xpose.msra.mxu0 0.0
    %2271 = vmatprep.subr.mxu0 0.0
    %2272 = vmatpush1.xpose.msra.mxu0 0.0
    %2273 = vmatprep.subr.mxu0 0.0
    %2274 = vmatpush1.xpose.msra.mxu0 0.0
    %2275 = vmatprep.subr.mxu0 0.0
    %2276 = vmatpush1.xpose.msra.mxu0 0.0
    %2277 = vmatprep.subr.mxu0 0.0
    %2278 = vmatpush1.xpose.msra.mxu0 %v2247
    %2279 = vmatprep.subr.mxu0 0.0
    %2280 = vmatpush1.xpose.msra.mxu0 %v2244
    %2281 = vmatprep.subr.mxu0 0.0
    %2282 = vmatpush2.xpose.msra.mxu0 0.0
    %2283 = vmatprep.subr.mxu0 0.0
    %2284 = vmatpush2.xpose.msra.mxu0 0.0
    %2285 = vmatprep.subr.mxu0 0.0
    %2286 = vmatpush2.xpose.msra.mxu0 0.0
    %2287 = vmatprep.subr.mxu0 0.0
    %2288 = vmatpush2.xpose.msra.mxu0 0.0
    %2289 = vmatprep.subr.mxu0 0.0
    %2290 = vmatpush2.xpose.msra.mxu0 0.0
    %2291 = vmatprep.subr.mxu0 0.0
    %2292 = vmatpush2.xpose.msra.mxu0 0.0
    %2293 = vmatprep.subr.mxu0 0.0
    %2294 = vmatpush2.xpose.msra.mxu0 0.0
    %2295 = vmatprep.subr.mxu0 0.0
    %2296 = vmatpush2.xpose.msra.mxu0 0.0
    %2297 = vmatprep.subr.mxu0 0.0
    %2298 = vmatpush2.xpose.msra.mxu0 0.0
    %2299 = vmatprep.subr.mxu0 0.0
    %2300 = vmatpush2.xpose.msra.mxu0 0.0
    %2301 = vmatprep.subr.mxu0 0.0
    %2302 = vmatpush2.xpose.msra.mxu0 0.0
    %2303 = vmatprep.subr.mxu0 0.0
    %2304 = vmatpush2.xpose.msra.mxu0 0.0
    %2305 = vmatprep.subr.mxu0 0.0
    %2306 = vmatpush2.xpose.msra.mxu0 0.0
    %2307 = vmatprep.subr.mxu0 0.0
    %2308 = vmatpush2.xpose.msra.mxu0 0.0
    %2309 = vmatprep.subr.mxu0 0.0
    %2310 = vmatpush2.xpose.msra.mxu0 0.0
    %2311 = vmatprep.subr.mxu0 0.0
    %2312 = vmatpush2.xpose.msra.mxu0 0.0
    %2313 = vmatprep.mubr.f32.mxu0 0.0
    %2314 = vmatmul.mubr.f32.gmra.mxu0 %v2241
    %v2315 = vpop.f32.mrf.mxu0
    %v2316 = vadd.f32 0.0, %v2315
    %v2317 = vpop.f32.mrf.mxu0
    %2318 = vdwg.mxu0
    %v2320 = vsel %vm443, %v2017, 0
    %v2323 = vsel %vm443, %v2124, 0
    %v2326 = vsel %vm443, %v2129, 0
    %2328 = vmatprep.subr.mxu0 0.0
    %2329 = vmatpush1.xpose.msra.mxu0 0.0
    %2330 = vmatprep.subr.mxu0 0.0
    %2331 = vmatpush1.xpose.msra.mxu0 0.0
    %2332 = vmatprep.subr.mxu0 0.0
    %2333 = vmatpush1.xpose.msra.mxu0 0.0
    %2334 = vmatprep.subr.mxu0 0.0
    %2335 = vmatpush1.xpose.msra.mxu0 0.0
    %2336 = vmatprep.subr.mxu0 0.0
    %2337 = vmatpush1.xpose.msra.mxu0 0.0
    %2338 = vmatprep.subr.mxu0 0.0
    %2339 = vmatpush1.xpose.msra.mxu0 0.0
    %2340 = vmatprep.subr.mxu0 0.0
    %2341 = vmatpush1.xpose.msra.mxu0 0.0
    %2342 = vmatprep.subr.mxu0 0.0
    %2343 = vmatpush1.xpose.msra.mxu0 0.0
    %2344 = vmatprep.subr.mxu0 0.0
    %2345 = vmatpush1.xpose.msra.mxu0 0.0
    %2346 = vmatprep.subr.mxu0 0.0
    %2347 = vmatpush1.xpose.msra.mxu0 0.0
    %2348 = vmatprep.subr.mxu0 0.0
    %2349 = vmatpush1.xpose.msra.mxu0 0.0
    %2350 = vmatprep.subr.mxu0 0.0
    %2351 = vmatpush1.xpose.msra.mxu0 0.0
    %2352 = vmatprep.subr.mxu0 0.0
    %2353 = vmatpush1.xpose.msra.mxu0 0.0
    %2354 = vmatprep.subr.mxu0 0.0
    %2355 = vmatpush1.xpose.msra.mxu0 0.0
    %2356 = vmatprep.subr.mxu0 0.0
    %2357 = vmatpush1.xpose.msra.mxu0 %v2326
    %2358 = vmatprep.subr.mxu0 0.0
    %2359 = vmatpush1.xpose.msra.mxu0 %v2323
    %2360 = vmatprep.subr.mxu0 0.0
    %2361 = vmatpush2.xpose.msra.mxu0 0.0
    %2362 = vmatprep.subr.mxu0 0.0
    %2363 = vmatpush2.xpose.msra.mxu0 0.0
    %2364 = vmatprep.subr.mxu0 0.0
    %2365 = vmatpush2.xpose.msra.mxu0 0.0
    %2366 = vmatprep.subr.mxu0 0.0
    %2367 = vmatpush2.xpose.msra.mxu0 0.0
    %2368 = vmatprep.subr.mxu0 0.0
    %2369 = vmatpush2.xpose.msra.mxu0 0.0
    %2370 = vmatprep.subr.mxu0 0.0
    %2371 = vmatpush2.xpose.msra.mxu0 0.0
    %2372 = vmatprep.subr.mxu0 0.0
    %2373 = vmatpush2.xpose.msra.mxu0 0.0
    %2374 = vmatprep.subr.mxu0 0.0
    %2375 = vmatpush2.xpose.msra.mxu0 0.0
    %2376 = vmatprep.subr.mxu0 0.0
    %2377 = vmatpush2.xpose.msra.mxu0 0.0
    %2378 = vmatprep.subr.mxu0 0.0
    %2379 = vmatpush2.xpose.msra.mxu0 0.0
    %2380 = vmatprep.subr.mxu0 0.0
    %2381 = vmatpush2.xpose.msra.mxu0 0.0
    %2382 = vmatprep.subr.mxu0 0.0
    %2383 = vmatpush2.xpose.msra.mxu0 0.0
    %2384 = vmatprep.subr.mxu0 0.0
    %2385 = vmatpush2.xpose.msra.mxu0 0.0
    %2386 = vmatprep.subr.mxu0 0.0
    %2387 = vmatpush2.xpose.msra.mxu0 0.0
    %2388 = vmatprep.subr.mxu0 0.0
    %2389 = vmatpush2.xpose.msra.mxu0 0.0
    %2390 = vmatprep.subr.mxu0 0.0
    %2391 = vmatpush2.xpose.msra.mxu0 0.0
    %2392 = vmatprep.mubr.f32.mxu0 0.0
    %2393 = vmatmul.mubr.f32.gmra.mxu0 %v2320
    %v2394 = vpop.f32.mrf.mxu0
    %v2395 = vadd.f32 0.0, %v2394
    %v2396 = vpop.f32.mrf.mxu0
    %2397 = vdwg.mxu0
    %v2398 = vsel %vm1781, %v2316, -inf
    %2399 = vmax.xlane.f32.xlu0 %v2398
    %v2400 = vpop.xlane.xlu0 %2399
    %v2401 = vsel %vm1781, %v2395, -inf
    %2402 = vmax.xlane.f32.xlu0 %v2401
    %v2403 = vpop.xlane.xlu0 %2402
    %v2404 = vsub.f32 %v2316, %v2400
    %v2405 = vsub.f32 %v2395, %v2403
    %v2406 = vmul.f32 %v2404, 1.442695
    %v2407 = vpow.pop %v2406
    %v2408 = vmul.f32 %v2405, 1.442695
    %v2409 = vpow.pop %v2408
    %v2410 = vsel %vm1781, %v2407, 0.0
    %2411 = vadd.xlane.f32.xlu0 %v2410
    %v2412 = vpop.xlane.xlu0 %2411
    %v2413 = vsel %vm1781, %v2409, 0.0
    %2414 = vadd.xlane.f32.xlu0 %v2413
    %v2415 = vpop.xlane.xlu0 %2414
    %v2416 = vrcp.pop %v2412
    %v2417 = vrcp.pop %v2415
    %v2418 = vmul.f32 %v2407, %v2416
    %v2419 = vmul.f32 %v2409, %v2417
    %v2421 = vsel %vm1781, %v2418, 0
    %2423 = vmatprep.subr.mxu0 0.0
    %2424 = vmatpush1.msra.mxu0 0.0
    %2425 = vmatprep.subr.mxu0 0.0
    %2426 = vmatpush1.msra.mxu0 0.0
    %2427 = vmatprep.subr.mxu0 0.0
    %2428 = vmatpush1.msra.mxu0 0.0
    %2429 = vmatprep.subr.mxu0 0.0
    %2430 = vmatpush1.msra.mxu0 0.0
    %2431 = vmatprep.subr.mxu0 0.0
    %2432 = vmatpush1.msra.mxu0 0.0
    %2433 = vmatprep.subr.mxu0 0.0
    %2434 = vmatpush1.msra.mxu0 0.0
    %2435 = vmatprep.subr.mxu0 0.0
    %2436 = vmatpush1.msra.mxu0 0.0
    %2437 = vmatprep.subr.mxu0 0.0
    %2438 = vmatpush1.msra.mxu0 0.0
    %2439 = vmatprep.subr.mxu0 0.0
    %2440 = vmatpush1.msra.mxu0 0.0
    %2441 = vmatprep.subr.mxu0 0.0
    %2442 = vmatpush1.msra.mxu0 0.0
    %2443 = vmatprep.subr.mxu0 0.0
    %2444 = vmatpush1.msra.mxu0 0.0
    %2445 = vmatprep.subr.mxu0 0.0
    %2446 = vmatpush1.msra.mxu0 0.0
    %2447 = vmatprep.subr.mxu0 0.0
    %2448 = vmatpush1.msra.mxu0 0.0
    %2449 = vmatprep.subr.mxu0 0.0
    %2450 = vmatpush1.msra.mxu0 0.0
    %2451 = vmatprep.subr.mxu0 0.0
    %2452 = vmatpush1.msra.mxu0 %v2227
    %2453 = vmatprep.subr.mxu0 0.0
    %2454 = vmatpush1.msra.mxu0 %v2222
    %2455 = vmatprep.subr.mxu0 0.0
    %2456 = vmatpush2.msra.mxu0 0.0
    %2457 = vmatprep.subr.mxu0 0.0
    %2458 = vmatpush2.msra.mxu0 0.0
    %2459 = vmatprep.subr.mxu0 0.0
    %2460 = vmatpush2.msra.mxu0 0.0
    %2461 = vmatprep.subr.mxu0 0.0
    %2462 = vmatpush2.msra.mxu0 0.0
    %2463 = vmatprep.subr.mxu0 0.0
    %2464 = vmatpush2.msra.mxu0 0.0
    %2465 = vmatprep.subr.mxu0 0.0
    %2466 = vmatpush2.msra.mxu0 0.0
    %2467 = vmatprep.subr.mxu0 0.0
    %2468 = vmatpush2.msra.mxu0 0.0
    %2469 = vmatprep.subr.mxu0 0.0
    %2470 = vmatpush2.msra.mxu0 0.0
    %2471 = vmatprep.subr.mxu0 0.0
    %2472 = vmatpush2.msra.mxu0 0.0
    %2473 = vmatprep.subr.mxu0 0.0
    %2474 = vmatpush2.msra.mxu0 0.0
    %2475 = vmatprep.subr.mxu0 0.0
    %2476 = vmatpush2.msra.mxu0 0.0
    %2477 = vmatprep.subr.mxu0 0.0
    %2478 = vmatpush2.msra.mxu0 0.0
    %2479 = vmatprep.subr.mxu0 0.0
    %2480 = vmatpush2.msra.mxu0 0.0
    %2481 = vmatprep.subr.mxu0 0.0
    %2482 = vmatpush2.msra.mxu0 0.0
    %2483 = vmatprep.subr.mxu0 0.0
    %2484 = vmatpush2.msra.mxu0 0.0
    %2485 = vmatprep.subr.mxu0 0.0
    %2486 = vmatpush2.msra.mxu0 0.0
    %2487 = vmatprep.mubr.f32.mxu0 0.0
    %2488 = vmatmul.mubr.f32.gmra.mxu0 %v2421
    %v2489 = vpop.f32.mrf.mxu0
    %v2490 = vadd.f32 0.0, %v2489
    %v2491 = vpop.f32.mrf.mxu0
    %2492 = vdwg.mxu0
    %v2494 = vsel %vm1781, %v2419, 0
    %2496 = vmatprep.subr.mxu0 0.0
    %2497 = vmatpush1.msra.mxu0 0.0
    %2498 = vmatprep.subr.mxu0 0.0
    %2499 = vmatpush1.msra.mxu0 0.0
    %2500 = vmatprep.subr.mxu0 0.0
    %2501 = vmatpush1.msra.mxu0 0.0
    %2502 = vmatprep.subr.mxu0 0.0
    %2503 = vmatpush1.msra.mxu0 0.0
    %2504 = vmatprep.subr.mxu0 0.0
    %2505 = vmatpush1.msra.mxu0 0.0
    %2506 = vmatprep.subr.mxu0 0.0
    %2507 = vmatpush1.msra.mxu0 0.0
    %2508 = vmatprep.subr.mxu0 0.0
    %2509 = vmatpush1.msra.mxu0 0.0
    %2510 = vmatprep.subr.mxu0 0.0
    %2511 = vmatpush1.msra.mxu0 0.0
    %2512 = vmatprep.subr.mxu0 0.0
    %2513 = vmatpush1.msra.mxu0 0.0
    %2514 = vmatprep.subr.mxu0 0.0
    %2515 = vmatpush1.msra.mxu0 0.0
    %2516 = vmatprep.subr.mxu0 0.0
    %2517 = vmatpush1.msra.mxu0 0.0
    %2518 = vmatprep.subr.mxu0 0.0
    %2519 = vmatpush1.msra.mxu0 0.0
    %2520 = vmatprep.subr.mxu0 0.0
    %2521 = vmatpush1.msra.mxu0 0.0
    %2522 = vmatprep.subr.mxu0 0.0
    %2523 = vmatpush1.msra.mxu0 0.0
    %2524 = vmatprep.subr.mxu0 0.0
    %2525 = vmatpush1.msra.mxu0 %v2237
    %2526 = vmatprep.subr.mxu0 0.0
    %2527 = vmatpush1.msra.mxu0 %v2232
    %2528 = vmatprep.subr.mxu0 0.0
    %2529 = vmatpush2.msra.mxu0 0.0
    %2530 = vmatprep.subr.mxu0 0.0
    %2531 = vmatpush2.msra.mxu0 0.0
    %2532 = vmatprep.subr.mxu0 0.0
    %2533 = vmatpush2.msra.mxu0 0.0
    %2534 = vmatprep.subr.mxu0 0.0
    %2535 = vmatpush2.msra.mxu0 0.0
    %2536 = vmatprep.subr.mxu0 0.0
    %2537 = vmatpush2.msra.mxu0 0.0
    %2538 = vmatprep.subr.mxu0 0.0
    %2539 = vmatpush2.msra.mxu0 0.0
    %2540 = vmatprep.subr.mxu0 0.0
    %2541 = vmatpush2.msra.mxu0 0.0
    %2542 = vmatprep.subr.mxu0 0.0
    %2543 = vmatpush2.msra.mxu0 0.0
    %2544 = vmatprep.subr.mxu0 0.0
    %2545 = vmatpush2.msra.mxu0 0.0
    %2546 = vmatprep.subr.mxu0 0.0
    %2547 = vmatpush2.msra.mxu0 0.0
    %2548 = vmatprep.subr.mxu0 0.0
    %2549 = vmatpush2.msra.mxu0 0.0
    %2550 = vmatprep.subr.mxu0 0.0
    %2551 = vmatpush2.msra.mxu0 0.0
    %2552 = vmatprep.subr.mxu0 0.0
    %2553 = vmatpush2.msra.mxu0 0.0
    %2554 = vmatprep.subr.mxu0 0.0
    %2555 = vmatpush2.msra.mxu0 0.0
    %2556 = vmatprep.subr.mxu0 0.0
    %2557 = vmatpush2.msra.mxu0 0.0
    %2558 = vmatprep.subr.mxu0 0.0
    %2559 = vmatpush2.msra.mxu0 0.0
    %2560 = vmatprep.mubr.f32.mxu0 0.0
    %2561 = vmatmul.mubr.f32.gmra.mxu0 %v2494
    %v2562 = vpop.f32.mrf.mxu0
    %v2563 = vadd.f32 0.0, %v2562
    %v2564 = vpop.f32.mrf.mxu0
    %2565 = vdwg.mxu0
    %2566 = vrot.lane.b32.xlu0 %v2012, 120
    %v2567 = vpop.permute.xlu0 %2566
    %2568 = vrot.lane.b32.xlu0 %v2114, 120
    %v2569 = vpop.permute.xlu0 %2568
    %2570 = vrot.lane.b32.xlu0 %v2119, 120
    %v2571 = vpop.permute.xlu0 %2570
    %v2572 = vsel %vm443, %v2567, 0
    %v2574 = vsel %vm443, %v2569, 0
    %v2576 = vsel %vm443, %v2571, 0
    %2578 = vmatprep.subr.mxu0 0.0
    %2579 = vmatpush1.xpose.msra.mxu0 0.0
    %2580 = vmatprep.subr.mxu0 0.0
    %2581 = vmatpush1.xpose.msra.mxu0 0.0
    %2582 = vmatprep.subr.mxu0 0.0
    %2583 = vmatpush1.xpose.msra.mxu0 0.0
    %2584 = vmatprep.subr.mxu0 0.0
    %2585 = vmatpush1.xpose.msra.mxu0 0.0
    %2586 = vmatprep.subr.mxu0 0.0
    %2587 = vmatpush1.xpose.msra.mxu0 0.0
    %2588 = vmatprep.subr.mxu0 0.0
    %2589 = vmatpush1.xpose.msra.mxu0 0.0
    %2590 = vmatprep.subr.mxu0 0.0
    %2591 = vmatpush1.xpose.msra.mxu0 0.0
    %2592 = vmatprep.subr.mxu0 0.0
    %2593 = vmatpush1.xpose.msra.mxu0 0.0
    %2594 = vmatprep.subr.mxu0 0.0
    %2595 = vmatpush1.xpose.msra.mxu0 0.0
    %2596 = vmatprep.subr.mxu0 0.0
    %2597 = vmatpush1.xpose.msra.mxu0 0.0
    %2598 = vmatprep.subr.mxu0 0.0
    %2599 = vmatpush1.xpose.msra.mxu0 0.0
    %2600 = vmatprep.subr.mxu0 0.0
    %2601 = vmatpush1.xpose.msra.mxu0 0.0
    %2602 = vmatprep.subr.mxu0 0.0
    %2603 = vmatpush1.xpose.msra.mxu0 0.0
    %2604 = vmatprep.subr.mxu0 0.0
    %2605 = vmatpush1.xpose.msra.mxu0 0.0
    %2606 = vmatprep.subr.mxu0 0.0
    %2607 = vmatpush1.xpose.msra.mxu0 %v2576
    %2608 = vmatprep.subr.mxu0 0.0
    %2609 = vmatpush1.xpose.msra.mxu0 %v2574
    %2610 = vmatprep.subr.mxu0 0.0
    %2611 = vmatpush2.xpose.msra.mxu0 0.0
    %2612 = vmatprep.subr.mxu0 0.0
    %2613 = vmatpush2.xpose.msra.mxu0 0.0
    %2614 = vmatprep.subr.mxu0 0.0
    %2615 = vmatpush2.xpose.msra.mxu0 0.0
    %2616 = vmatprep.subr.mxu0 0.0
    %2617 = vmatpush2.xpose.msra.mxu0 0.0
    %2618 = vmatprep.subr.mxu0 0.0
    %2619 = vmatpush2.xpose.msra.mxu0 0.0
    %2620 = vmatprep.subr.mxu0 0.0
    %2621 = vmatpush2.xpose.msra.mxu0 0.0
    %2622 = vmatprep.subr.mxu0 0.0
    %2623 = vmatpush2.xpose.msra.mxu0 0.0
    %2624 = vmatprep.subr.mxu0 0.0
    %2625 = vmatpush2.xpose.msra.mxu0 0.0
    %2626 = vmatprep.subr.mxu0 0.0
    %2627 = vmatpush2.xpose.msra.mxu0 0.0
    %2628 = vmatprep.subr.mxu0 0.0
    %2629 = vmatpush2.xpose.msra.mxu0 0.0
    %2630 = vmatprep.subr.mxu0 0.0
    %2631 = vmatpush2.xpose.msra.mxu0 0.0
    %2632 = vmatprep.subr.mxu0 0.0
    %2633 = vmatpush2.xpose.msra.mxu0 0.0
    %2634 = vmatprep.subr.mxu0 0.0
    %2635 = vmatpush2.xpose.msra.mxu0 0.0
    %2636 = vmatprep.subr.mxu0 0.0
    %2637 = vmatpush2.xpose.msra.mxu0 0.0
    %2638 = vmatprep.subr.mxu0 0.0
    %2639 = vmatpush2.xpose.msra.mxu0 0.0
    %2640 = vmatprep.subr.mxu0 0.0
    %2641 = vmatpush2.xpose.msra.mxu0 0.0
    %2642 = vmatprep.mubr.f32.mxu0 0.0
    %2643 = vmatmul.mubr.f32.gmra.mxu0 %v2572
    %v2644 = vpop.f32.mrf.mxu0
    %v2645 = vadd.f32 0.0, %v2644
    %v2646 = vpop.f32.mrf.mxu0
    %2647 = vdwg.mxu0
    %2648 = vrot.lane.b32.xlu0 %v2017, 120
    %v2649 = vpop.permute.xlu0 %2648
    %2650 = vrot.lane.b32.xlu0 %v2124, 120
    %v2651 = vpop.permute.xlu0 %2650
    %2652 = vrot.lane.b32.xlu0 %v2129, 120
    %v2653 = vpop.permute.xlu0 %2652
    %v2654 = vsel %vm443, %v2649, 0
    %v2656 = vsel %vm443, %v2651, 0
    %v2658 = vsel %vm443, %v2653, 0
    %2660 = vmatprep.subr.mxu0 0.0
    %2661 = vmatpush1.xpose.msra.mxu0 0.0
    %2662 = vmatprep.subr.mxu0 0.0
    %2663 = vmatpush1.xpose.msra.mxu0 0.0
    %2664 = vmatprep.subr.mxu0 0.0
    %2665 = vmatpush1.xpose.msra.mxu0 0.0
    %2666 = vmatprep.subr.mxu0 0.0
    %2667 = vmatpush1.xpose.msra.mxu0 0.0
    %2668 = vmatprep.subr.mxu0 0.0
    %2669 = vmatpush1.xpose.msra.mxu0 0.0
    %2670 = vmatprep.subr.mxu0 0.0
    %2671 = vmatpush1.xpose.msra.mxu0 0.0
    %2672 = vmatprep.subr.mxu0 0.0
    %2673 = vmatpush1.xpose.msra.mxu0 0.0
    %2674 = vmatprep.subr.mxu0 0.0
    %2675 = vmatpush1.xpose.msra.mxu0 0.0
    %2676 = vmatprep.subr.mxu0 0.0
    %2677 = vmatpush1.xpose.msra.mxu0 0.0
    %2678 = vmatprep.subr.mxu0 0.0
    %2679 = vmatpush1.xpose.msra.mxu0 0.0
    %2680 = vmatprep.subr.mxu0 0.0
    %2681 = vmatpush1.xpose.msra.mxu0 0.0
    %2682 = vmatprep.subr.mxu0 0.0
    %2683 = vmatpush1.xpose.msra.mxu0 0.0
    %2684 = vmatprep.subr.mxu0 0.0
    %2685 = vmatpush1.xpose.msra.mxu0 0.0
    %2686 = vmatprep.subr.mxu0 0.0
    %2687 = vmatpush1.xpose.msra.mxu0 0.0
    %2688 = vmatprep.subr.mxu0 0.0
    %2689 = vmatpush1.xpose.msra.mxu0 %v2658
    %2690 = vmatprep.subr.mxu0 0.0
    %2691 = vmatpush1.xpose.msra.mxu0 %v2656
    %2692 = vmatprep.subr.mxu0 0.0
    %2693 = vmatpush2.xpose.msra.mxu0 0.0
    %2694 = vmatprep.subr.mxu0 0.0
    %2695 = vmatpush2.xpose.msra.mxu0 0.0
    %2696 = vmatprep.subr.mxu0 0.0
    %2697 = vmatpush2.xpose.msra.mxu0 0.0
    %2698 = vmatprep.subr.mxu0 0.0
    %2699 = vmatpush2.xpose.msra.mxu0 0.0
    %2700 = vmatprep.subr.mxu0 0.0
    %2701 = vmatpush2.xpose.msra.mxu0 0.0
    %2702 = vmatprep.subr.mxu0 0.0
    %2703 = vmatpush2.xpose.msra.mxu0 0.0
    %2704 = vmatprep.subr.mxu0 0.0
    %2705 = vmatpush2.xpose.msra.mxu0 0.0
    %2706 = vmatprep.subr.mxu0 0.0
    %2707 = vmatpush2.xpose.msra.mxu0 0.0
    %2708 = vmatprep.subr.mxu0 0.0
    %2709 = vmatpush2.xpose.msra.mxu0 0.0
    %2710 = vmatprep.subr.mxu0 0.0
    %2711 = vmatpush2.xpose.msra.mxu0 0.0
    %2712 = vmatprep.subr.mxu0 0.0
    %2713 = vmatpush2.xpose.msra.mxu0 0.0
    %2714 = vmatprep.subr.mxu0 0.0
    %2715 = vmatpush2.xpose.msra.mxu0 0.0
    %2716 = vmatprep.subr.mxu0 0.0
    %2717 = vmatpush2.xpose.msra.mxu0 0.0
    %2718 = vmatprep.subr.mxu0 0.0
    %2719 = vmatpush2.xpose.msra.mxu0 0.0
    %2720 = vmatprep.subr.mxu0 0.0
    %2721 = vmatpush2.xpose.msra.mxu0 0.0
    %2722 = vmatprep.subr.mxu0 0.0
    %2723 = vmatpush2.xpose.msra.mxu0 0.0
    %2724 = vmatprep.mubr.f32.mxu0 0.0
    %2725 = vmatmul.mubr.f32.gmra.mxu0 %v2654
    %v2726 = vpop.f32.mrf.mxu0
    %v2727 = vadd.f32 0.0, %v2726
    %v2728 = vpop.f32.mrf.mxu0
    %2729 = vdwg.mxu0
    %v2730 = vsel %vm1781, %v2645, -inf
    %2731 = vmax.xlane.f32.xlu0 %v2730
    %v2732 = vpop.xlane.xlu0 %2731
    %v2733 = vsel %vm1781, %v2727, -inf
    %2734 = vmax.xlane.f32.xlu0 %v2733
    %v2735 = vpop.xlane.xlu0 %2734
    %v2736 = vsub.f32 %v2645, %v2732
    %v2737 = vsub.f32 %v2727, %v2735
    %v2738 = vmul.f32 %v2736, 1.442695
    %v2739 = vpow.pop %v2738
    %v2740 = vmul.f32 %v2737, 1.442695
    %v2741 = vpow.pop %v2740
    %v2742 = vsel %vm1781, %v2739, 0.0
    %2743 = vadd.xlane.f32.xlu0 %v2742
    %v2744 = vpop.xlane.xlu0 %2743
    %v2745 = vsel %vm1781, %v2741, 0.0
    %2746 = vadd.xlane.f32.xlu0 %v2745
    %v2747 = vpop.xlane.xlu0 %2746
    %v2748 = vrcp.pop %v2744
    %v2749 = vrcp.pop %v2747
    %v2750 = vmul.f32 %v2739, %v2748
    %v2751 = vmul.f32 %v2741, %v2749
    %2754 = vrot.lane.b32.xlu0 %v2222, 120
    %v2755 = vpop.permute.xlu0 %2754
    %2756 = vrot.lane.b32.xlu0 %v2227, 120
    %v2757 = vpop.permute.xlu0 %2756
    %v2761 = vsel %vm1781, %v2750, 0
    %2763 = vmatprep.subr.mxu0 0.0
    %2764 = vmatpush1.msra.mxu0 0.0
    %2765 = vmatprep.subr.mxu0 0.0
    %2766 = vmatpush1.msra.mxu0 0.0
    %2767 = vmatprep.subr.mxu0 0.0
    %2768 = vmatpush1.msra.mxu0 0.0
    %2769 = vmatprep.subr.mxu0 0.0
    %2770 = vmatpush1.msra.mxu0 0.0
    %2771 = vmatprep.subr.mxu0 0.0
    %2772 = vmatpush1.msra.mxu0 0.0
    %2773 = vmatprep.subr.mxu0 0.0
    %2774 = vmatpush1.msra.mxu0 0.0
    %2775 = vmatprep.subr.mxu0 0.0
    %2776 = vmatpush1.msra.mxu0 0.0
    %2777 = vmatprep.subr.mxu0 0.0
    %2778 = vmatpush1.msra.mxu0 0.0
    %2779 = vmatprep.subr.mxu0 0.0
    %2780 = vmatpush1.msra.mxu0 0.0
    %2781 = vmatprep.subr.mxu0 0.0
    %2782 = vmatpush1.msra.mxu0 0.0
    %2783 = vmatprep.subr.mxu0 0.0
    %2784 = vmatpush1.msra.mxu0 0.0
    %2785 = vmatprep.subr.mxu0 0.0
    %2786 = vmatpush1.msra.mxu0 0.0
    %2787 = vmatprep.subr.mxu0 0.0
    %2788 = vmatpush1.msra.mxu0 0.0
    %2789 = vmatprep.subr.mxu0 0.0
    %2790 = vmatpush1.msra.mxu0 0.0
    %2791 = vmatprep.subr.mxu0 0.0
    %2792 = vmatpush1.msra.mxu0 %v2757
    %2793 = vmatprep.subr.mxu0 0.0
    %2794 = vmatpush1.msra.mxu0 %v2755
    %2795 = vmatprep.subr.mxu0 0.0
    %2796 = vmatpush2.msra.mxu0 0.0
    %2797 = vmatprep.subr.mxu0 0.0
    %2798 = vmatpush2.msra.mxu0 0.0
    %2799 = vmatprep.subr.mxu0 0.0
    %2800 = vmatpush2.msra.mxu0 0.0
    %2801 = vmatprep.subr.mxu0 0.0
    %2802 = vmatpush2.msra.mxu0 0.0
    %2803 = vmatprep.subr.mxu0 0.0
    %2804 = vmatpush2.msra.mxu0 0.0
    %2805 = vmatprep.subr.mxu0 0.0
    %2806 = vmatpush2.msra.mxu0 0.0
    %2807 = vmatprep.subr.mxu0 0.0
    %2808 = vmatpush2.msra.mxu0 0.0
    %2809 = vmatprep.subr.mxu0 0.0
    %2810 = vmatpush2.msra.mxu0 0.0
    %2811 = vmatprep.subr.mxu0 0.0
    %2812 = vmatpush2.msra.mxu0 0.0
    %2813 = vmatprep.subr.mxu0 0.0
    %2814 = vmatpush2.msra.mxu0 0.0
    %2815 = vmatprep.subr.mxu0 0.0
    %2816 = vmatpush2.msra.mxu0 0.0
    %2817 = vmatprep.subr.mxu0 0.0
    %2818 = vmatpush2.msra.mxu0 0.0
    %2819 = vmatprep.subr.mxu0 0.0
    %2820 = vmatpush2.msra.mxu0 0.0
    %2821 = vmatprep.subr.mxu0 0.0
    %2822 = vmatpush2.msra.mxu0 0.0
    %2823 = vmatprep.subr.mxu0 0.0
    %2824 = vmatpush2.msra.mxu0 0.0
    %2825 = vmatprep.subr.mxu0 0.0
    %2826 = vmatpush2.msra.mxu0 0.0
    %2827 = vmatprep.mubr.f32.mxu0 0.0
    %2828 = vmatmul.mubr.f32.gmra.mxu0 %v2761
    %v2829 = vpop.f32.mrf.mxu0
    %v2830 = vadd.f32 0.0, %v2829
    %v2831 = vpop.f32.mrf.mxu0
    %2832 = vdwg.mxu0
    %2835 = vrot.lane.b32.xlu0 %v2232, 120
    %v2836 = vpop.permute.xlu0 %2835
    %2837 = vrot.lane.b32.xlu0 %v2237, 120
    %v2838 = vpop.permute.xlu0 %2837
    %v2842 = vsel %vm1781, %v2751, 0
    %2844 = vmatprep.subr.mxu0 0.0
    %2845 = vmatpush1.msra.mxu0 0.0
    %2846 = vmatprep.subr.mxu0 0.0
    %2847 = vmatpush1.msra.mxu0 0.0
    %2848 = vmatprep.subr.mxu0 0.0
    %2849 = vmatpush1.msra.mxu0 0.0
    %2850 = vmatprep.subr.mxu0 0.0
    %2851 = vmatpush1.msra.mxu0 0.0
    %2852 = vmatprep.subr.mxu0 0.0
    %2853 = vmatpush1.msra.mxu0 0.0
    %2854 = vmatprep.subr.mxu0 0.0
    %2855 = vmatpush1.msra.mxu0 0.0
    %2856 = vmatprep.subr.mxu0 0.0
    %2857 = vmatpush1.msra.mxu0 0.0
    %2858 = vmatprep.subr.mxu0 0.0
    %2859 = vmatpush1.msra.mxu0 0.0
    %2860 = vmatprep.subr.mxu0 0.0
    %2861 = vmatpush1.msra.mxu0 0.0
    %2862 = vmatprep.subr.mxu0 0.0
    %2863 = vmatpush1.msra.mxu0 0.0
    %2864 = vmatprep.subr.mxu0 0.0
    %2865 = vmatpush1.msra.mxu0 0.0
    %2866 = vmatprep.subr.mxu0 0.0
    %2867 = vmatpush1.msra.mxu0 0.0
    %2868 = vmatprep.subr.mxu0 0.0
    %2869 = vmatpush1.msra.mxu0 0.0
    %2870 = vmatprep.subr.mxu0 0.0
    %2871 = vmatpush1.msra.mxu0 0.0
    %2872 = vmatprep.subr.mxu0 0.0
    %2873 = vmatpush1.msra.mxu0 %v2838
    %2874 = vmatprep.subr.mxu0 0.0
    %2875 = vmatpush1.msra.mxu0 %v2836
    %2876 = vmatprep.subr.mxu0 0.0
    %2877 = vmatpush2.msra.mxu0 0.0
    %2878 = vmatprep.subr.mxu0 0.0
    %2879 = vmatpush2.msra.mxu0 0.0
    %2880 = vmatprep.subr.mxu0 0.0
    %2881 = vmatpush2.msra.mxu0 0.0
    %2882 = vmatprep.subr.mxu0 0.0
    %2883 = vmatpush2.msra.mxu0 0.0
    %2884 = vmatprep.subr.mxu0 0.0
    %2885 = vmatpush2.msra.mxu0 0.0
    %2886 = vmatprep.subr.mxu0 0.0
    %2887 = vmatpush2.msra.mxu0 0.0
    %2888 = vmatprep.subr.mxu0 0.0
    %2889 = vmatpush2.msra.mxu0 0.0
    %2890 = vmatprep.subr.mxu0 0.0
    %2891 = vmatpush2.msra.mxu0 0.0
    %2892 = vmatprep.subr.mxu0 0.0
    %2893 = vmatpush2.msra.mxu0 0.0
    %2894 = vmatprep.subr.mxu0 0.0
    %2895 = vmatpush2.msra.mxu0 0.0
    %2896 = vmatprep.subr.mxu0 0.0
    %2897 = vmatpush2.msra.mxu0 0.0
    %2898 = vmatprep.subr.mxu0 0.0
    %2899 = vmatpush2.msra.mxu0 0.0
    %2900 = vmatprep.subr.mxu0 0.0
    %2901 = vmatpush2.msra.mxu0 0.0
    %2902 = vmatprep.subr.mxu0 0.0
    %2903 = vmatpush2.msra.mxu0 0.0
    %2904 = vmatprep.subr.mxu0 0.0
    %2905 = vmatpush2.msra.mxu0 0.0
    %2906 = vmatprep.subr.mxu0 0.0
    %2907 = vmatpush2.msra.mxu0 0.0
    %2908 = vmatprep.mubr.f32.mxu0 0.0
    %2909 = vmatmul.mubr.f32.gmra.mxu0 %v2842
    %v2910 = vpop.f32.mrf.mxu0
    %v2911 = vadd.f32 0.0, %v2910
    %v2912 = vpop.f32.mrf.mxu0
    %2913 = vdwg.mxu0
    %2914 = vrot.lane.b32.xlu0 %v2012, 112
    %v2915 = vpop.permute.xlu0 %2914
    %2916 = vrot.lane.b32.xlu0 %v2114, 112
    %v2917 = vpop.permute.xlu0 %2916
    %2918 = vrot.lane.b32.xlu0 %v2119, 112
    %v2919 = vpop.permute.xlu0 %2918
    %v2920 = vsel %vm443, %v2915, 0
    %v2922 = vsel %vm443, %v2917, 0
    %v2924 = vsel %vm443, %v2919, 0
    %2926 = vmatprep.subr.mxu0 0.0
    %2927 = vmatpush1.xpose.msra.mxu0 0.0
    %2928 = vmatprep.subr.mxu0 0.0
    %2929 = vmatpush1.xpose.msra.mxu0 0.0
    %2930 = vmatprep.subr.mxu0 0.0
    %2931 = vmatpush1.xpose.msra.mxu0 0.0
    %2932 = vmatprep.subr.mxu0 0.0
    %2933 = vmatpush1.xpose.msra.mxu0 0.0
    %2934 = vmatprep.subr.mxu0 0.0
    %2935 = vmatpush1.xpose.msra.mxu0 0.0
    %2936 = vmatprep.subr.mxu0 0.0
    %2937 = vmatpush1.xpose.msra.mxu0 0.0
    %2938 = vmatprep.subr.mxu0 0.0
    %2939 = vmatpush1.xpose.msra.mxu0 0.0
    %2940 = vmatprep.subr.mxu0 0.0
    %2941 = vmatpush1.xpose.msra.mxu0 0.0
    %2942 = vmatprep.subr.mxu0 0.0
    %2943 = vmatpush1.xpose.msra.mxu0 0.0
    %2944 = vmatprep.subr.mxu0 0.0
    %2945 = vmatpush1.xpose.msra.mxu0 0.0
    %2946 = vmatprep.subr.mxu0 0.0
    %2947 = vmatpush1.xpose.msra.mxu0 0.0
    %2948 = vmatprep.subr.mxu0 0.0
    %2949 = vmatpush1.xpose.msra.mxu0 0.0
    %2950 = vmatprep.subr.mxu0 0.0
    %2951 = vmatpush1.xpose.msra.mxu0 0.0
    %2952 = vmatprep.subr.mxu0 0.0
    %2953 = vmatpush1.xpose.msra.mxu0 0.0
    %2954 = vmatprep.subr.mxu0 0.0
    %2955 = vmatpush1.xpose.msra.mxu0 %v2924
    %2956 = vmatprep.subr.mxu0 0.0
    %2957 = vmatpush1.xpose.msra.mxu0 %v2922
    %2958 = vmatprep.subr.mxu0 0.0
    %2959 = vmatpush2.xpose.msra.mxu0 0.0
    %2960 = vmatprep.subr.mxu0 0.0
    %2961 = vmatpush2.xpose.msra.mxu0 0.0
    %2962 = vmatprep.subr.mxu0 0.0
    %2963 = vmatpush2.xpose.msra.mxu0 0.0
    %2964 = vmatprep.subr.mxu0 0.0
    %2965 = vmatpush2.xpose.msra.mxu0 0.0
    %2966 = vmatprep.subr.mxu0 0.0
    %2967 = vmatpush2.xpose.msra.mxu0 0.0
    %2968 = vmatprep.subr.mxu0 0.0
    %2969 = vmatpush2.xpose.msra.mxu0 0.0
    %2970 = vmatprep.subr.mxu0 0.0
    %2971 = vmatpush2.xpose.msra.mxu0 0.0
    %2972 = vmatprep.subr.mxu0 0.0
    %2973 = vmatpush2.xpose.msra.mxu0 0.0
    %2974 = vmatprep.subr.mxu0 0.0
    %2975 = vmatpush2.xpose.msra.mxu0 0.0
    %2976 = vmatprep.subr.mxu0 0.0
    %2977 = vmatpush2.xpose.msra.mxu0 0.0
    %2978 = vmatprep.subr.mxu0 0.0
    %2979 = vmatpush2.xpose.msra.mxu0 0.0
    %2980 = vmatprep.subr.mxu0 0.0
    %2981 = vmatpush2.xpose.msra.mxu0 0.0
    %2982 = vmatprep.subr.mxu0 0.0
    %2983 = vmatpush2.xpose.msra.mxu0 0.0
    %2984 = vmatprep.subr.mxu0 0.0
    %2985 = vmatpush2.xpose.msra.mxu0 0.0
    %2986 = vmatprep.subr.mxu0 0.0
    %2987 = vmatpush2.xpose.msra.mxu0 0.0
    %2988 = vmatprep.subr.mxu0 0.0
    %2989 = vmatpush2.xpose.msra.mxu0 0.0
    %2990 = vmatprep.mubr.f32.mxu0 0.0
    %2991 = vmatmul.mubr.f32.gmra.mxu0 %v2920
    %v2992 = vpop.f32.mrf.mxu0
    %v2993 = vadd.f32 0.0, %v2992
    %v2994 = vpop.f32.mrf.mxu0
    %2995 = vdwg.mxu0
    %2996 = vrot.lane.b32.xlu0 %v2017, 112
    %v2997 = vpop.permute.xlu0 %2996
    %2998 = vrot.lane.b32.xlu0 %v2124, 112
    %v2999 = vpop.permute.xlu0 %2998
    %3000 = vrot.lane.b32.xlu0 %v2129, 112
    %v3001 = vpop.permute.xlu0 %3000
    %v3002 = vsel %vm443, %v2997, 0
    %v3004 = vsel %vm443, %v2999, 0
    %v3006 = vsel %vm443, %v3001, 0
    %3008 = vmatprep.subr.mxu0 0.0
    %3009 = vmatpush1.xpose.msra.mxu0 0.0
    %3010 = vmatprep.subr.mxu0 0.0
    %3011 = vmatpush1.xpose.msra.mxu0 0.0
    %3012 = vmatprep.subr.mxu0 0.0
    %3013 = vmatpush1.xpose.msra.mxu0 0.0
    %3014 = vmatprep.subr.mxu0 0.0
    %3015 = vmatpush1.xpose.msra.mxu0 0.0
    %3016 = vmatprep.subr.mxu0 0.0
    %3017 = vmatpush1.xpose.msra.mxu0 0.0
    %3018 = vmatprep.subr.mxu0 0.0
    %3019 = vmatpush1.xpose.msra.mxu0 0.0
    %3020 = vmatprep.subr.mxu0 0.0
    %3021 = vmatpush1.xpose.msra.mxu0 0.0
    %3022 = vmatprep.subr.mxu0 0.0
    %3023 = vmatpush1.xpose.msra.mxu0 0.0
    %3024 = vmatprep.subr.mxu0 0.0
    %3025 = vmatpush1.xpose.msra.mxu0 0.0
    %3026 = vmatprep.subr.mxu0 0.0
    %3027 = vmatpush1.xpose.msra.mxu0 0.0
    %3028 = vmatprep.subr.mxu0 0.0
    %3029 = vmatpush1.xpose.msra.mxu0 0.0
    %3030 = vmatprep.subr.mxu0 0.0
    %3031 = vmatpush1.xpose.msra.mxu0 0.0
    %3032 = vmatprep.subr.mxu0 0.0
    %3033 = vmatpush1.xpose.msra.mxu0 0.0
    %3034 = vmatprep.subr.mxu0 0.0
    %3035 = vmatpush1.xpose.msra.mxu0 0.0
    %3036 = vmatprep.subr.mxu0 0.0
    %3037 = vmatpush1.xpose.msra.mxu0 %v3006
    %3038 = vmatprep.subr.mxu0 0.0
    %3039 = vmatpush1.xpose.msra.mxu0 %v3004
    %3040 = vmatprep.subr.mxu0 0.0
    %3041 = vmatpush2.xpose.msra.mxu0 0.0
    %3042 = vmatprep.subr.mxu0 0.0
    %3043 = vmatpush2.xpose.msra.mxu0 0.0
    %3044 = vmatprep.subr.mxu0 0.0
    %3045 = vmatpush2.xpose.msra.mxu0 0.0
    %3046 = vmatprep.subr.mxu0 0.0
    %3047 = vmatpush2.xpose.msra.mxu0 0.0
    %3048 = vmatprep.subr.mxu0 0.0
    %3049 = vmatpush2.xpose.msra.mxu0 0.0
    %3050 = vmatprep.subr.mxu0 0.0
    %3051 = vmatpush2.xpose.msra.mxu0 0.0
    %3052 = vmatprep.subr.mxu0 0.0
    %3053 = vmatpush2.xpose.msra.mxu0 0.0
    %3054 = vmatprep.subr.mxu0 0.0
    %3055 = vmatpush2.xpose.msra.mxu0 0.0
    %3056 = vmatprep.subr.mxu0 0.0
    %3057 = vmatpush2.xpose.msra.mxu0 0.0
    %3058 = vmatprep.subr.mxu0 0.0
    %3059 = vmatpush2.xpose.msra.mxu0 0.0
    %3060 = vmatprep.subr.mxu0 0.0
    %3061 = vmatpush2.xpose.msra.mxu0 0.0
    %3062 = vmatprep.subr.mxu0 0.0
    %3063 = vmatpush2.xpose.msra.mxu0 0.0
    %3064 = vmatprep.subr.mxu0 0.0
    %3065 = vmatpush2.xpose.msra.mxu0 0.0
    %3066 = vmatprep.subr.mxu0 0.0
    %3067 = vmatpush2.xpose.msra.mxu0 0.0
    %3068 = vmatprep.subr.mxu0 0.0
    %3069 = vmatpush2.xpose.msra.mxu0 0.0
    %3070 = vmatprep.subr.mxu0 0.0
    %3071 = vmatpush2.xpose.msra.mxu0 0.0
    %3072 = vmatprep.mubr.f32.mxu0 0.0
    %3073 = vmatmul.mubr.f32.gmra.mxu0 %v3002
    %v3074 = vpop.f32.mrf.mxu0
    %v3075 = vadd.f32 0.0, %v3074
    %v3076 = vpop.f32.mrf.mxu0
    %3077 = vdwg.mxu0
    %v3078 = vsel %vm1781, %v2993, -inf
    %3079 = vmax.xlane.f32.xlu0 %v3078
    %v3080 = vpop.xlane.xlu0 %3079
    %v3081 = vsel %vm1781, %v3075, -inf
    %3082 = vmax.xlane.f32.xlu0 %v3081
    %v3083 = vpop.xlane.xlu0 %3082
    %v3084 = vsub.f32 %v2993, %v3080
    %v3085 = vsub.f32 %v3075, %v3083
    %v3086 = vmul.f32 %v3084, 1.442695
    %v3087 = vpow.pop %v3086
    %v3088 = vmul.f32 %v3085, 1.442695
    %v3089 = vpow.pop %v3088
    %v3090 = vsel %vm1781, %v3087, 0.0
    %3091 = vadd.xlane.f32.xlu0 %v3090
    %v3092 = vpop.xlane.xlu0 %3091
    %v3093 = vsel %vm1781, %v3089, 0.0
    %3094 = vadd.xlane.f32.xlu0 %v3093
    %v3095 = vpop.xlane.xlu0 %3094
    %v3096 = vrcp.pop %v3092
    %v3097 = vrcp.pop %v3095
    %v3098 = vmul.f32 %v3087, %v3096
    %v3099 = vmul.f32 %v3089, %v3097
    %3100 = vrot.lane.b32.xlu0 %v2222, 112
    %v3101 = vpop.permute.xlu0 %3100
    %3102 = vrot.lane.b32.xlu0 %v2227, 112
    %v3103 = vpop.permute.xlu0 %3102
    %v3107 = vsel %vm1781, %v3098, 0
    %3109 = vmatprep.subr.mxu0 0.0
    %3110 = vmatpush1.msra.mxu0 0.0
    %3111 = vmatprep.subr.mxu0 0.0
    %3112 = vmatpush1.msra.mxu0 0.0
    %3113 = vmatprep.subr.mxu0 0.0
    %3114 = vmatpush1.msra.mxu0 0.0
    %3115 = vmatprep.subr.mxu0 0.0
    %3116 = vmatpush1.msra.mxu0 0.0
    %3117 = vmatprep.subr.mxu0 0.0
    %3118 = vmatpush1.msra.mxu0 0.0
    %3119 = vmatprep.subr.mxu0 0.0
    %3120 = vmatpush1.msra.mxu0 0.0
    %3121 = vmatprep.subr.mxu0 0.0
    %3122 = vmatpush1.msra.mxu0 0.0
    %3123 = vmatprep.subr.mxu0 0.0
    %3124 = vmatpush1.msra.mxu0 0.0
    %3125 = vmatprep.subr.mxu0 0.0
    %3126 = vmatpush1.msra.mxu0 0.0
    %3127 = vmatprep.subr.mxu0 0.0
    %3128 = vmatpush1.msra.mxu0 0.0
    %3129 = vmatprep.subr.mxu0 0.0
    %3130 = vmatpush1.msra.mxu0 0.0
    %3131 = vmatprep.subr.mxu0 0.0
    %3132 = vmatpush1.msra.mxu0 0.0
    %3133 = vmatprep.subr.mxu0 0.0
    %3134 = vmatpush1.msra.mxu0 0.0
    %3135 = vmatprep.subr.mxu0 0.0
    %3136 = vmatpush1.msra.mxu0 0.0
    %3137 = vmatprep.subr.mxu0 0.0
    %3138 = vmatpush1.msra.mxu0 %v3103
    %3139 = vmatprep.subr.mxu0 0.0
    %3140 = vmatpush1.msra.mxu0 %v3101
    %3141 = vmatprep.subr.mxu0 0.0
    %3142 = vmatpush2.msra.mxu0 0.0
    %3143 = vmatprep.subr.mxu0 0.0
    %3144 = vmatpush2.msra.mxu0 0.0
    %3145 = vmatprep.subr.mxu0 0.0
    %3146 = vmatpush2.msra.mxu0 0.0
    %3147 = vmatprep.subr.mxu0 0.0
    %3148 = vmatpush2.msra.mxu0 0.0
    %3149 = vmatprep.subr.mxu0 0.0
    %3150 = vmatpush2.msra.mxu0 0.0
    %3151 = vmatprep.subr.mxu0 0.0
    %3152 = vmatpush2.msra.mxu0 0.0
    %3153 = vmatprep.subr.mxu0 0.0
    %3154 = vmatpush2.msra.mxu0 0.0
    %3155 = vmatprep.subr.mxu0 0.0
    %3156 = vmatpush2.msra.mxu0 0.0
    %3157 = vmatprep.subr.mxu0 0.0
    %3158 = vmatpush2.msra.mxu0 0.0
    %3159 = vmatprep.subr.mxu0 0.0
    %3160 = vmatpush2.msra.mxu0 0.0
    %3161 = vmatprep.subr.mxu0 0.0
    %3162 = vmatpush2.msra.mxu0 0.0
    %3163 = vmatprep.subr.mxu0 0.0
    %3164 = vmatpush2.msra.mxu0 0.0
    %3165 = vmatprep.subr.mxu0 0.0
    %3166 = vmatpush2.msra.mxu0 0.0
    %3167 = vmatprep.subr.mxu0 0.0
    %3168 = vmatpush2.msra.mxu0 0.0
    %3169 = vmatprep.subr.mxu0 0.0
    %3170 = vmatpush2.msra.mxu0 0.0
    %3171 = vmatprep.subr.mxu0 0.0
    %3172 = vmatpush2.msra.mxu0 0.0
    %3173 = vmatprep.mubr.f32.mxu0 0.0
    %3174 = vmatmul.mubr.f32.gmra.mxu0 %v3107
    %v3175 = vpop.f32.mrf.mxu0
    %v3176 = vadd.f32 0.0, %v3175
    %v3177 = vpop.f32.mrf.mxu0
    %3178 = vdwg.mxu0
    %3179 = vrot.lane.b32.xlu0 %v2232, 112
    %v3180 = vpop.permute.xlu0 %3179
    %3181 = vrot.lane.b32.xlu0 %v2237, 112
    %v3182 = vpop.permute.xlu0 %3181
    %v3186 = vsel %vm1781, %v3099, 0
    %3188 = vmatprep.subr.mxu0 0.0
    %3189 = vmatpush1.msra.mxu0 0.0
    %3190 = vmatprep.subr.mxu0 0.0
    %3191 = vmatpush1.msra.mxu0 0.0
    %3192 = vmatprep.subr.mxu0 0.0
    %3193 = vmatpush1.msra.mxu0 0.0
    %3194 = vmatprep.subr.mxu0 0.0
    %3195 = vmatpush1.msra.mxu0 0.0
    %3196 = vmatprep.subr.mxu0 0.0
    %3197 = vmatpush1.msra.mxu0 0.0
    %3198 = vmatprep.subr.mxu0 0.0
    %3199 = vmatpush1.msra.mxu0 0.0
    %3200 = vmatprep.subr.mxu0 0.0
    %3201 = vmatpush1.msra.mxu0 0.0
    %3202 = vmatprep.subr.mxu0 0.0
    %3203 = vmatpush1.msra.mxu0 0.0
    %3204 = vmatprep.subr.mxu0 0.0
    %3205 = vmatpush1.msra.mxu0 0.0
    %3206 = vmatprep.subr.mxu0 0.0
    %3207 = vmatpush1.msra.mxu0 0.0
    %3208 = vmatprep.subr.mxu0 0.0
    %3209 = vmatpush1.msra.mxu0 0.0
    %3210 = vmatprep.subr.mxu0 0.0
    %3211 = vmatpush1.msra.mxu0 0.0
    %3212 = vmatprep.subr.mxu0 0.0
    %3213 = vmatpush1.msra.mxu0 0.0
    %3214 = vmatprep.subr.mxu0 0.0
    %3215 = vmatpush1.msra.mxu0 0.0
    %3216 = vmatprep.subr.mxu0 0.0
    %3217 = vmatpush1.msra.mxu0 %v3182
    %3218 = vmatprep.subr.mxu0 0.0
    %3219 = vmatpush1.msra.mxu0 %v3180
    %3220 = vmatprep.subr.mxu0 0.0
    %3221 = vmatpush2.msra.mxu0 0.0
    %3222 = vmatprep.subr.mxu0 0.0
    %3223 = vmatpush2.msra.mxu0 0.0
    %3224 = vmatprep.subr.mxu0 0.0
    %3225 = vmatpush2.msra.mxu0 0.0
    %3226 = vmatprep.subr.mxu0 0.0
    %3227 = vmatpush2.msra.mxu0 0.0
    %3228 = vmatprep.subr.mxu0 0.0
    %3229 = vmatpush2.msra.mxu0 0.0
    %3230 = vmatprep.subr.mxu0 0.0
    %3231 = vmatpush2.msra.mxu0 0.0
    %3232 = vmatprep.subr.mxu0 0.0
    %3233 = vmatpush2.msra.mxu0 0.0
    %3234 = vmatprep.subr.mxu0 0.0
    %3235 = vmatpush2.msra.mxu0 0.0
    %3236 = vmatprep.subr.mxu0 0.0
    %3237 = vmatpush2.msra.mxu0 0.0
    %3238 = vmatprep.subr.mxu0 0.0
    %3239 = vmatpush2.msra.mxu0 0.0
    %3240 = vmatprep.subr.mxu0 0.0
    %3241 = vmatpush2.msra.mxu0 0.0
    %3242 = vmatprep.subr.mxu0 0.0
    %3243 = vmatpush2.msra.mxu0 0.0
    %3244 = vmatprep.subr.mxu0 0.0
    %3245 = vmatpush2.msra.mxu0 0.0
    %3246 = vmatprep.subr.mxu0 0.0
    %3247 = vmatpush2.msra.mxu0 0.0
    %3248 = vmatprep.subr.mxu0 0.0
    %3249 = vmatpush2.msra.mxu0 0.0
    %3250 = vmatprep.subr.mxu0 0.0
    %3251 = vmatpush2.msra.mxu0 0.0
    %3252 = vmatprep.mubr.f32.mxu0 0.0
    %3253 = vmatmul.mubr.f32.gmra.mxu0 %v3186
    %v3254 = vpop.f32.mrf.mxu0
    %v3255 = vadd.f32 0.0, %v3254
    %v3256 = vpop.f32.mrf.mxu0
    %3257 = vdwg.mxu0
    %3258 = vrot.lane.b32.xlu0 %v2012, 104
    %v3259 = vpop.permute.xlu0 %3258
    %3260 = vrot.lane.b32.xlu0 %v2114, 104
    %v3261 = vpop.permute.xlu0 %3260
    %3262 = vrot.lane.b32.xlu0 %v2119, 104
    %v3263 = vpop.permute.xlu0 %3262
    %v3264 = vsel %vm443, %v3259, 0
    %v3266 = vsel %vm443, %v3261, 0
    %v3268 = vsel %vm443, %v3263, 0
    %3270 = vmatprep.subr.mxu0 0.0
    %3271 = vmatpush1.xpose.msra.mxu0 0.0
    %3272 = vmatprep.subr.mxu0 0.0
    %3273 = vmatpush1.xpose.msra.mxu0 0.0
    %3274 = vmatprep.subr.mxu0 0.0
    %3275 = vmatpush1.xpose.msra.mxu0 0.0
    %3276 = vmatprep.subr.mxu0 0.0
    %3277 = vmatpush1.xpose.msra.mxu0 0.0
    %3278 = vmatprep.subr.mxu0 0.0
    %3279 = vmatpush1.xpose.msra.mxu0 0.0
    %3280 = vmatprep.subr.mxu0 0.0
    %3281 = vmatpush1.xpose.msra.mxu0 0.0
    %3282 = vmatprep.subr.mxu0 0.0
    %3283 = vmatpush1.xpose.msra.mxu0 0.0
    %3284 = vmatprep.subr.mxu0 0.0
    %3285 = vmatpush1.xpose.msra.mxu0 0.0
    %3286 = vmatprep.subr.mxu0 0.0
    %3287 = vmatpush1.xpose.msra.mxu0 0.0
    %3288 = vmatprep.subr.mxu0 0.0
    %3289 = vmatpush1.xpose.msra.mxu0 0.0
    %3290 = vmatprep.subr.mxu0 0.0
    %3291 = vmatpush1.xpose.msra.mxu0 0.0
    %3292 = vmatprep.subr.mxu0 0.0
    %3293 = vmatpush1.xpose.msra.mxu0 0.0
    %3294 = vmatprep.subr.mxu0 0.0
    %3295 = vmatpush1.xpose.msra.mxu0 0.0
    %3296 = vmatprep.subr.mxu0 0.0
    %3297 = vmatpush1.xpose.msra.mxu0 0.0
    %3298 = vmatprep.subr.mxu0 0.0
    %3299 = vmatpush1.xpose.msra.mxu0 %v3268
    %3300 = vmatprep.subr.mxu0 0.0
    %3301 = vmatpush1.xpose.msra.mxu0 %v3266
    %3302 = vmatprep.subr.mxu0 0.0
    %3303 = vmatpush2.xpose.msra.mxu0 0.0
    %3304 = vmatprep.subr.mxu0 0.0
    %3305 = vmatpush2.xpose.msra.mxu0 0.0
    %3306 = vmatprep.subr.mxu0 0.0
    %3307 = vmatpush2.xpose.msra.mxu0 0.0
    %3308 = vmatprep.subr.mxu0 0.0
    %3309 = vmatpush2.xpose.msra.mxu0 0.0
    %3310 = vmatprep.subr.mxu0 0.0
    %3311 = vmatpush2.xpose.msra.mxu0 0.0
    %3312 = vmatprep.subr.mxu0 0.0
    %3313 = vmatpush2.xpose.msra.mxu0 0.0
    %3314 = vmatprep.subr.mxu0 0.0
    %3315 = vmatpush2.xpose.msra.mxu0 0.0
    %3316 = vmatprep.subr.mxu0 0.0
    %3317 = vmatpush2.xpose.msra.mxu0 0.0
    %3318 = vmatprep.subr.mxu0 0.0
    %3319 = vmatpush2.xpose.msra.mxu0 0.0
    %3320 = vmatprep.subr.mxu0 0.0
    %3321 = vmatpush2.xpose.msra.mxu0 0.0
    %3322 = vmatprep.subr.mxu0 0.0
    %3323 = vmatpush2.xpose.msra.mxu0 0.0
    %3324 = vmatprep.subr.mxu0 0.0
    %3325 = vmatpush2.xpose.msra.mxu0 0.0
    %3326 = vmatprep.subr.mxu0 0.0
    %3327 = vmatpush2.xpose.msra.mxu0 0.0
    %3328 = vmatprep.subr.mxu0 0.0
    %3329 = vmatpush2.xpose.msra.mxu0 0.0
    %3330 = vmatprep.subr.mxu0 0.0
    %3331 = vmatpush2.xpose.msra.mxu0 0.0
    %3332 = vmatprep.subr.mxu0 0.0
    %3333 = vmatpush2.xpose.msra.mxu0 0.0
    %3334 = vmatprep.mubr.f32.mxu0 0.0
    %3335 = vmatmul.mubr.f32.gmra.mxu0 %v3264
    %v3336 = vpop.f32.mrf.mxu0
    %v3337 = vadd.f32 0.0, %v3336
    %v3338 = vpop.f32.mrf.mxu0
    %3339 = vdwg.mxu0
    %3340 = vrot.lane.b32.xlu0 %v2017, 104
    %v3341 = vpop.permute.xlu0 %3340
    %3342 = vrot.lane.b32.xlu0 %v2124, 104
    %v3343 = vpop.permute.xlu0 %3342
    %3344 = vrot.lane.b32.xlu0 %v2129, 104
    %v3345 = vpop.permute.xlu0 %3344
    %v3346 = vsel %vm443, %v3341, 0
    %v3348 = vsel %vm443, %v3343, 0
    %v3350 = vsel %vm443, %v3345, 0
    %3352 = vmatprep.subr.mxu0 0.0
    %3353 = vmatpush1.xpose.msra.mxu0 0.0
    %3354 = vmatprep.subr.mxu0 0.0
    %3355 = vmatpush1.xpose.msra.mxu0 0.0
    %3356 = vmatprep.subr.mxu0 0.0
    %3357 = vmatpush1.xpose.msra.mxu0 0.0
    %3358 = vmatprep.subr.mxu0 0.0
    %3359 = vmatpush1.xpose.msra.mxu0 0.0
    %3360 = vmatprep.subr.mxu0 0.0
    %3361 = vmatpush1.xpose.msra.mxu0 0.0
    %3362 = vmatprep.subr.mxu0 0.0
    %3363 = vmatpush1.xpose.msra.mxu0 0.0
    %3364 = vmatprep.subr.mxu0 0.0
    %3365 = vmatpush1.xpose.msra.mxu0 0.0
    %3366 = vmatprep.subr.mxu0 0.0
    %3367 = vmatpush1.xpose.msra.mxu0 0.0
    %3368 = vmatprep.subr.mxu0 0.0
    %3369 = vmatpush1.xpose.msra.mxu0 0.0
    %3370 = vmatprep.subr.mxu0 0.0
    %3371 = vmatpush1.xpose.msra.mxu0 0.0
    %3372 = vmatprep.subr.mxu0 0.0
    %3373 = vmatpush1.xpose.msra.mxu0 0.0
    %3374 = vmatprep.subr.mxu0 0.0
    %3375 = vmatpush1.xpose.msra.mxu0 0.0
    %3376 = vmatprep.subr.mxu0 0.0
    %3377 = vmatpush1.xpose.msra.mxu0 0.0
    %3378 = vmatprep.subr.mxu0 0.0
    %3379 = vmatpush1.xpose.msra.mxu0 0.0
    %3380 = vmatprep.subr.mxu0 0.0
    %3381 = vmatpush1.xpose.msra.mxu0 %v3350
    %3382 = vmatprep.subr.mxu0 0.0
    %3383 = vmatpush1.xpose.msra.mxu0 %v3348
    %3384 = vmatprep.subr.mxu0 0.0
    %3385 = vmatpush2.xpose.msra.mxu0 0.0
    %3386 = vmatprep.subr.mxu0 0.0
    %3387 = vmatpush2.xpose.msra.mxu0 0.0
    %3388 = vmatprep.subr.mxu0 0.0
    %3389 = vmatpush2.xpose.msra.mxu0 0.0
    %3390 = vmatprep.subr.mxu0 0.0
    %3391 = vmatpush2.xpose.msra.mxu0 0.0
    %3392 = vmatprep.subr.mxu0 0.0
    %3393 = vmatpush2.xpose.msra.mxu0 0.0
    %3394 = vmatprep.subr.mxu0 0.0
    %3395 = vmatpush2.xpose.msra.mxu0 0.0
    %3396 = vmatprep.subr.mxu0 0.0
    %3397 = vmatpush2.xpose.msra.mxu0 0.0
    %3398 = vmatprep.subr.mxu0 0.0
    %3399 = vmatpush2.xpose.msra.mxu0 0.0
    %3400 = vmatprep.subr.mxu0 0.0
    %3401 = vmatpush2.xpose.msra.mxu0 0.0
    %3402 = vmatprep.subr.mxu0 0.0
    %3403 = vmatpush2.xpose.msra.mxu0 0.0
    %3404 = vmatprep.subr.mxu0 0.0
    %3405 = vmatpush2.xpose.msra.mxu0 0.0
    %3406 = vmatprep.subr.mxu0 0.0
    %3407 = vmatpush2.xpose.msra.mxu0 0.0
    %3408 = vmatprep.subr.mxu0 0.0
    %3409 = vmatpush2.xpose.msra.mxu0 0.0
    %3410 = vmatprep.subr.mxu0 0.0
    %3411 = vmatpush2.xpose.msra.mxu0 0.0
    %3412 = vmatprep.subr.mxu0 0.0
    %3413 = vmatpush2.xpose.msra.mxu0 0.0
    %3414 = vmatprep.subr.mxu0 0.0
    %3415 = vmatpush2.xpose.msra.mxu0 0.0
    %3416 = vmatprep.mubr.f32.mxu0 0.0
    %3417 = vmatmul.mubr.f32.gmra.mxu0 %v3346
    %v3418 = vpop.f32.mrf.mxu0
    %v3419 = vadd.f32 0.0, %v3418
    %v3420 = vpop.f32.mrf.mxu0
    %3421 = vdwg.mxu0
    %v3422 = vsel %vm1781, %v3337, -inf
    %3423 = vmax.xlane.f32.xlu0 %v3422
    %v3424 = vpop.xlane.xlu0 %3423
    %v3425 = vsel %vm1781, %v3419, -inf
    %3426 = vmax.xlane.f32.xlu0 %v3425
    %v3427 = vpop.xlane.xlu0 %3426
    %v3428 = vsub.f32 %v3337, %v3424
    %v3429 = vsub.f32 %v3419, %v3427
    %v3430 = vmul.f32 %v3428, 1.442695
    %v3431 = vpow.pop %v3430
    %v3432 = vmul.f32 %v3429, 1.442695
    %v3433 = vpow.pop %v3432
    %v3434 = vsel %vm1781, %v3431, 0.0
    %3435 = vadd.xlane.f32.xlu0 %v3434
    %v3436 = vpop.xlane.xlu0 %3435
    %v3437 = vsel %vm1781, %v3433, 0.0
    %3438 = vadd.xlane.f32.xlu0 %v3437
    %v3439 = vpop.xlane.xlu0 %3438
    %v3440 = vrcp.pop %v3436
    %v3441 = vrcp.pop %v3439
    %v3442 = vmul.f32 %v3431, %v3440
    %v3443 = vmul.f32 %v3433, %v3441
    %3444 = vrot.lane.b32.xlu0 %v2222, 104
    %v3445 = vpop.permute.xlu0 %3444
    %3446 = vrot.lane.b32.xlu0 %v2227, 104
    %v3447 = vpop.permute.xlu0 %3446
    %v3451 = vsel %vm1781, %v3442, 0
    %3453 = vmatprep.subr.mxu0 0.0
    %3454 = vmatpush1.msra.mxu0 0.0
    %3455 = vmatprep.subr.mxu0 0.0
    %3456 = vmatpush1.msra.mxu0 0.0
    %3457 = vmatprep.subr.mxu0 0.0
    %3458 = vmatpush1.msra.mxu0 0.0
    %3459 = vmatprep.subr.mxu0 0.0
    %3460 = vmatpush1.msra.mxu0 0.0
    %3461 = vmatprep.subr.mxu0 0.0
    %3462 = vmatpush1.msra.mxu0 0.0
    %3463 = vmatprep.subr.mxu0 0.0
    %3464 = vmatpush1.msra.mxu0 0.0
    %3465 = vmatprep.subr.mxu0 0.0
    %3466 = vmatpush1.msra.mxu0 0.0
    %3467 = vmatprep.subr.mxu0 0.0
    %3468 = vmatpush1.msra.mxu0 0.0
    %3469 = vmatprep.subr.mxu0 0.0
    %3470 = vmatpush1.msra.mxu0 0.0
    %3471 = vmatprep.subr.mxu0 0.0
    %3472 = vmatpush1.msra.mxu0 0.0
    %3473 = vmatprep.subr.mxu0 0.0
    %3474 = vmatpush1.msra.mxu0 0.0
    %3475 = vmatprep.subr.mxu0 0.0
    %3476 = vmatpush1.msra.mxu0 0.0
    %3477 = vmatprep.subr.mxu0 0.0
    %3478 = vmatpush1.msra.mxu0 0.0
    %3479 = vmatprep.subr.mxu0 0.0
    %3480 = vmatpush1.msra.mxu0 0.0
    %3481 = vmatprep.subr.mxu0 0.0
    %3482 = vmatpush1.msra.mxu0 %v3447
    %3483 = vmatprep.subr.mxu0 0.0
    %3484 = vmatpush1.msra.mxu0 %v3445
    %3485 = vmatprep.subr.mxu0 0.0
    %3486 = vmatpush2.msra.mxu0 0.0
    %3487 = vmatprep.subr.mxu0 0.0
    %3488 = vmatpush2.msra.mxu0 0.0
    %3489 = vmatprep.subr.mxu0 0.0
    %3490 = vmatpush2.msra.mxu0 0.0
    %3491 = vmatprep.subr.mxu0 0.0
    %3492 = vmatpush2.msra.mxu0 0.0
    %3493 = vmatprep.subr.mxu0 0.0
    %3494 = vmatpush2.msra.mxu0 0.0
    %3495 = vmatprep.subr.mxu0 0.0
    %3496 = vmatpush2.msra.mxu0 0.0
    %3497 = vmatprep.subr.mxu0 0.0
    %3498 = vmatpush2.msra.mxu0 0.0
    %3499 = vmatprep.subr.mxu0 0.0
    %3500 = vmatpush2.msra.mxu0 0.0
    %3501 = vmatprep.subr.mxu0 0.0
    %3502 = vmatpush2.msra.mxu0 0.0
    %3503 = vmatprep.subr.mxu0 0.0
    %3504 = vmatpush2.msra.mxu0 0.0
    %3505 = vmatprep.subr.mxu0 0.0
    %3506 = vmatpush2.msra.mxu0 0.0
    %3507 = vmatprep.subr.mxu0 0.0
    %3508 = vmatpush2.msra.mxu0 0.0
    %3509 = vmatprep.subr.mxu0 0.0
    %3510 = vmatpush2.msra.mxu0 0.0
    %3511 = vmatprep.subr.mxu0 0.0
    %3512 = vmatpush2.msra.mxu0 0.0
    %3513 = vmatprep.subr.mxu0 0.0
    %3514 = vmatpush2.msra.mxu0 0.0
    %3515 = vmatprep.subr.mxu0 0.0
    %3516 = vmatpush2.msra.mxu0 0.0
    %3517 = vmatprep.mubr.f32.mxu0 0.0
    %3518 = vmatmul.mubr.f32.gmra.mxu0 %v3451
    %v3519 = vpop.f32.mrf.mxu0
    %v3520 = vadd.f32 0.0, %v3519
    %v3521 = vpop.f32.mrf.mxu0
    %3522 = vdwg.mxu0
    %3523 = vrot.lane.b32.xlu0 %v2232, 104
    %v3524 = vpop.permute.xlu0 %3523
    %3525 = vrot.lane.b32.xlu0 %v2237, 104
    %v3526 = vpop.permute.xlu0 %3525
    %v3530 = vsel %vm1781, %v3443, 0
    %3532 = vmatprep.subr.mxu0 0.0
    %3533 = vmatpush1.msra.mxu0 0.0
    %3534 = vmatprep.subr.mxu0 0.0
    %3535 = vmatpush1.msra.mxu0 0.0
    %3536 = vmatprep.subr.mxu0 0.0
    %3537 = vmatpush1.msra.mxu0 0.0
    %3538 = vmatprep.subr.mxu0 0.0
    %3539 = vmatpush1.msra.mxu0 0.0
    %3540 = vmatprep.subr.mxu0 0.0
    %3541 = vmatpush1.msra.mxu0 0.0
    %3542 = vmatprep.subr.mxu0 0.0
    %3543 = vmatpush1.msra.mxu0 0.0
    %3544 = vmatprep.subr.mxu0 0.0
    %3545 = vmatpush1.msra.mxu0 0.0
    %3546 = vmatprep.subr.mxu0 0.0
    %3547 = vmatpush1.msra.mxu0 0.0
    %3548 = vmatprep.subr.mxu0 0.0
    %3549 = vmatpush1.msra.mxu0 0.0
    %3550 = vmatprep.subr.mxu0 0.0
    %3551 = vmatpush1.msra.mxu0 0.0
    %3552 = vmatprep.subr.mxu0 0.0
    %3553 = vmatpush1.msra.mxu0 0.0
    %3554 = vmatprep.subr.mxu0 0.0
    %3555 = vmatpush1.msra.mxu0 0.0
    %3556 = vmatprep.subr.mxu0 0.0
    %3557 = vmatpush1.msra.mxu0 0.0
    %3558 = vmatprep.subr.mxu0 0.0
    %3559 = vmatpush1.msra.mxu0 0.0
    %3560 = vmatprep.subr.mxu0 0.0
    %3561 = vmatpush1.msra.mxu0 %v3526
    %3562 = vmatprep.subr.mxu0 0.0
    %3563 = vmatpush1.msra.mxu0 %v3524
    %3564 = vmatprep.subr.mxu0 0.0
    %3565 = vmatpush2.msra.mxu0 0.0
    %3566 = vmatprep.subr.mxu0 0.0
    %3567 = vmatpush2.msra.mxu0 0.0
    %3568 = vmatprep.subr.mxu0 0.0
    %3569 = vmatpush2.msra.mxu0 0.0
    %3570 = vmatprep.subr.mxu0 0.0
    %3571 = vmatpush2.msra.mxu0 0.0
    %3572 = vmatprep.subr.mxu0 0.0
    %3573 = vmatpush2.msra.mxu0 0.0
    %3574 = vmatprep.subr.mxu0 0.0
    %3575 = vmatpush2.msra.mxu0 0.0
    %3576 = vmatprep.subr.mxu0 0.0
    %3577 = vmatpush2.msra.mxu0 0.0
    %3578 = vmatprep.subr.mxu0 0.0
    %3579 = vmatpush2.msra.mxu0 0.0
    %3580 = vmatprep.subr.mxu0 0.0
    %3581 = vmatpush2.msra.mxu0 0.0
    %3582 = vmatprep.subr.mxu0 0.0
    %3583 = vmatpush2.msra.mxu0 0.0
    %3584 = vmatprep.subr.mxu0 0.0
    %3585 = vmatpush2.msra.mxu0 0.0
    %3586 = vmatprep.subr.mxu0 0.0
    %3587 = vmatpush2.msra.mxu0 0.0
    %3588 = vmatprep.subr.mxu0 0.0
    %3589 = vmatpush2.msra.mxu0 0.0
    %3590 = vmatprep.subr.mxu0 0.0
    %3591 = vmatpush2.msra.mxu0 0.0
    %3592 = vmatprep.subr.mxu0 0.0
    %3593 = vmatpush2.msra.mxu0 0.0
    %3594 = vmatprep.subr.mxu0 0.0
    %3595 = vmatpush2.msra.mxu0 0.0
    %3596 = vmatprep.mubr.f32.mxu0 0.0
    %3597 = vmatmul.mubr.f32.gmra.mxu0 %v3530
    %v3598 = vpop.f32.mrf.mxu0
    %v3599 = vadd.f32 0.0, %v3598
    %v3600 = vpop.f32.mrf.mxu0
    %3601 = vdwg.mxu0
    %3604 = vrot.lane.b32.xlu0 %v2830, 8
    %v3605 = vpop.permute.xlu0 %3604
    %3606 = vrot.lane.b32.xlu0 %v2911, 8
    %v3607 = vpop.permute.xlu0 %3606
    %3612 = vrot.lane.b32.xlu0 %v3176, 16
    %v3613 = vpop.permute.xlu0 %3612
    %3614 = vrot.lane.b32.xlu0 %v3255, 16
    %v3615 = vpop.permute.xlu0 %3614
    %3620 = vrot.lane.b32.xlu0 %v3520, 24
    %v3621 = vpop.permute.xlu0 %3620
    %3622 = vrot.lane.b32.xlu0 %v3599, 24
    %v3623 = vpop.permute.xlu0 %3622
    %v3626 = vsel %vm443, %v2490, %v3605
    %v3627 = vsel %vm443, %v2563, %v3607
    %v3628 = vsel %vm1781, %v3626, %v3613
    %v3629 = vsel %vm1781, %v3627, %v3615
    %v3630 = vsel %vm1784, %v3628, %v3621
    %v3631 = vsel %vm1784, %v3629, %v3623
    %v3632 = vld [vmem:[%s16] sm:$0xff]
    %v3633 = vld [vmem:[%s16 + $0x8] sm:$0xff]
    %v3634 = vld [vmem:[%s16 + $0x10] sm:$0xff]
    %v3635 = vld [vmem:[%s16 + $0x18] sm:$0xff]
    %v3636 = vld [vmem:[#allocation12] sm:$0x1]
    %v3638 = vlaneseq
    %v3639 = vshrl.u32 %v3638, 7
    %v3640 = vsub.s32 0, %v3639
    %v3641 = vrot.slane %v3636, %v3640
    %v3644 = vsel %vm266, %v3630, 0
    %v3647 = vsel %vm266, %v3631, 0
    %3649 = vmatprep.subr.mxu0 0.0
    %3650 = vmatpush1.msra.mxu0 0.0
    %3651 = vmatprep.subr.mxu0 0.0
    %3652 = vmatpush1.msra.mxu0 0.0
    %3653 = vmatprep.subr.mxu0 0.0
    %3654 = vmatpush1.msra.mxu0 0.0
    %3655 = vmatprep.subr.mxu0 0.0
    %3656 = vmatpush1.msra.mxu0 0.0
    %3657 = vmatprep.subr.mxu0 0.0
    %3658 = vmatpush1.msra.mxu0 0.0
    %3659 = vmatprep.subr.mxu0 0.0
    %3660 = vmatpush1.msra.mxu0 0.0
    %3661 = vmatprep.subr.mxu0 0.0
    %3662 = vmatpush1.msra.mxu0 0.0
    %3663 = vmatprep.subr.mxu0 0.0
    %3664 = vmatpush1.msra.mxu0 0.0
    %3665 = vmatprep.subr.mxu0 0.0
    %3666 = vmatpush1.msra.mxu0 0.0
    %3667 = vmatprep.subr.mxu0 0.0
    %3668 = vmatpush1.msra.mxu0 0.0
    %3669 = vmatprep.subr.mxu0 0.0
    %3670 = vmatpush1.msra.mxu0 0.0
    %3671 = vmatprep.subr.mxu0 0.0
    %3672 = vmatpush1.msra.mxu0 0.0
    %3673 = vmatprep.subr.mxu0 0.0
    %3674 = vmatpush1.msra.mxu0 %v3635
    %3675 = vmatprep.subr.mxu0 0.0
    %3676 = vmatpush1.msra.mxu0 %v3634
    %3677 = vmatprep.subr.mxu0 0.0
    %3678 = vmatpush1.msra.mxu0 %v3633
    %3679 = vmatprep.subr.mxu0 0.0
    %3680 = vmatpush1.msra.mxu0 %v3632
    %3681 = vmatprep.subr.mxu0 0.0
    %3682 = vmatpush2.msra.mxu0 0.0
    %3683 = vmatprep.subr.mxu0 0.0
    %3684 = vmatpush2.msra.mxu0 0.0
    %3685 = vmatprep.subr.mxu0 0.0
    %3686 = vmatpush2.msra.mxu0 0.0
    %3687 = vmatprep.subr.mxu0 0.0
    %3688 = vmatpush2.msra.mxu0 0.0
    %3689 = vmatprep.subr.mxu0 0.0
    %3690 = vmatpush2.msra.mxu0 0.0
    %3691 = vmatprep.subr.mxu0 0.0
    %3692 = vmatpush2.msra.mxu0 0.0
    %3693 = vmatprep.subr.mxu0 0.0
    %3694 = vmatpush2.msra.mxu0 0.0
    %3695 = vmatprep.subr.mxu0 0.0
    %3696 = vmatpush2.msra.mxu0 0.0
    %3697 = vmatprep.subr.mxu0 0.0
    %3698 = vmatpush2.msra.mxu0 0.0
    %3699 = vmatprep.subr.mxu0 0.0
    %3700 = vmatpush2.msra.mxu0 0.0
    %3701 = vmatprep.subr.mxu0 0.0
    %3702 = vmatpush2.msra.mxu0 0.0
    %3703 = vmatprep.subr.mxu0 0.0
    %3704 = vmatpush2.msra.mxu0 0.0
    %3705 = vmatprep.subr.mxu0 0.0
    %3706 = vmatpush2.msra.mxu0 0.0
    %3707 = vmatprep.subr.mxu0 0.0
    %3708 = vmatpush2.msra.mxu0 0.0
    %3709 = vmatprep.subr.mxu0 0.0
    %3710 = vmatpush2.msra.mxu0 0.0
    %3711 = vmatprep.subr.mxu0 0.0
    %3712 = vmatpush2.msra.mxu0 0.0
    %3713 = vmatprep.mubr.f32.mxu0 0.0
    %3714 = vmatmul.mubr.f32.gmra.mxu0 %v3644
    %v3715 = vpop.f32.mrf.mxu0
    %v3716 = vadd.f32 %v3641, %v3715
    %v3717 = vpop.f32.mrf.mxu0
    %3718 = vmatprep.mubr.f32.mxu0 0.0
    %3719 = vmatmul.mubr.f32.gmra.mxu0 %v3647
    %v3720 = vpop.f32.mrf.mxu0
    %v3721 = vadd.f32 %v3641, %v3720
    %v3722 = vpop.f32.mrf.mxu0
    %3723 = vdwg.mxu0
    %v3724 = vadd.f32 %v3716, %v1924
    %v3725 = vadd.f32 %v3721, %v1925
    %v3726 = vsel %vm266, %v3724, 0.0
    %3727 = vadd.xlane.f32.xlu0 %v3726
    %v3728 = vpop.xlane.xlu0 %3727
    %v3729 = vsel %vm266, %v3725, 0.0
    %3730 = vadd.xlane.f32.xlu0 %v3729
    %v3731 = vpop.xlane.xlu0 %3730
    %v3732 = vmul.f32 %v3728, %v1887
    %v3733 = vmul.f32 %v3731, %v1887
    %v3734 = vsub.f32 %v3724, %v3732
    %v3735 = vsub.f32 %v3725, %v3733
    %v3736 = vmul.f32 %v3734, %v3734
    %v3737 = vmul.f32 %v3735, %v3735
    %v3738 = vsel %vm266, %v3736, 0.0
    %3739 = vadd.xlane.f32.xlu0 %v3738
    %v3740 = vpop.xlane.xlu0 %3739
    %v3741 = vsel %vm266, %v3737, 0.0
    %3742 = vadd.xlane.f32.xlu0 %v3741
    %v3743 = vpop.xlane.xlu0 %3742
    %v3744 = vmul.f32 %v3740, %v1887
    %v3745 = vmul.f32 %v3743, %v1887
    %v3746 = vadd.f32 %v3744, 1e-05
    %v3747 = vadd.f32 %v3745, 1e-05
    %v3748 = vrsqrt.pop %v3746
    %v3749 = vrsqrt.pop %v3747
    %v3750 = vmul.f32 %v3734, %v3748
    %v3751 = vmul.f32 %v3735, %v3749
    %v3752 = vld [vmem:[#allocation19] sm:$0x1]
    %v3754 = vlaneseq
    %v3755 = vshrl.u32 %v3754, 7
    %v3756 = vsub.s32 0, %v3755
    %v3757 = vrot.slane %v3752, %v3756
    %v3759 = vmul.f32 %v3750, %v3757
    %v3760 = vmul.f32 %v3751, %v3757
    %v3761 = vld [vmem:[#allocation21] sm:$0x1]
    %v3763 = vlaneseq
    %v3764 = vshrl.u32 %v3763, 7
    %v3765 = vsub.s32 0, %v3764
    %v3766 = vrot.slane %v3761, %v3765
    %v3768 = vadd.f32 %v3759, %v3766
    %v3769 = vadd.f32 %v3760, %v3766
    %v3770 = vld [vmem:[#allocation13] sm:$0xff]
    %v3771 = vld [vmem:[#allocation13 + $0x8] sm:$0xff]
    %v3772 = vld [vmem:[#allocation13 + $0x10] sm:$0xff]
    %v3773 = vld [vmem:[#allocation13 + $0x18] sm:$0xff]
    %v3774 = vld [vmem:[%s19] sm:$0x1]
    %v3776 = vlaneseq
    %v3777 = vshrl.u32 %v3776, 7
    %v3778 = vsub.s32 0, %v3777
    %v3779 = vrot.slane %v3774, %v3778
    %v3782 = vsel %vm266, %v3768, 0
    %v3785 = vsel %vm266, %v3769, 0
    %3787 = vmatprep.subr.mxu0 0.0
    %3788 = vmatpush1.msra.mxu0 0.0
    %3789 = vmatprep.subr.mxu0 0.0
    %3790 = vmatpush1.msra.mxu0 0.0
    %3791 = vmatprep.subr.mxu0 0.0
    %3792 = vmatpush1.msra.mxu0 0.0
    %3793 = vmatprep.subr.mxu0 0.0
    %3794 = vmatpush1.msra.mxu0 0.0
    %3795 = vmatprep.subr.mxu0 0.0
    %3796 = vmatpush1.msra.mxu0 0.0
    %3797 = vmatprep.subr.mxu0 0.0
    %3798 = vmatpush1.msra.mxu0 0.0
    %3799 = vmatprep.subr.mxu0 0.0
    %3800 = vmatpush1.msra.mxu0 0.0
    %3801 = vmatprep.subr.mxu0 0.0
    %3802 = vmatpush1.msra.mxu0 0.0
    %3803 = vmatprep.subr.mxu0 0.0
    %3804 = vmatpush1.msra.mxu0 0.0
    %3805 = vmatprep.subr.mxu0 0.0
    %3806 = vmatpush1.msra.mxu0 0.0
    %3807 = vmatprep.subr.mxu0 0.0
    %3808 = vmatpush1.msra.mxu0 0.0
    %3809 = vmatprep.subr.mxu0 0.0
    %3810 = vmatpush1.msra.mxu0 0.0
    %3811 = vmatprep.subr.mxu0 0.0
    %3812 = vmatpush1.msra.mxu0 %v3773
    %3813 = vmatprep.subr.mxu0 0.0
    %3814 = vmatpush1.msra.mxu0 %v3772
    %3815 = vmatprep.subr.mxu0 0.0
    %3816 = vmatpush1.msra.mxu0 %v3771
    %3817 = vmatprep.subr.mxu0 0.0
    %3818 = vmatpush1.msra.mxu0 %v3770
    %3819 = vmatprep.subr.mxu0 0.0
    %3820 = vmatpush2.msra.mxu0 0.0
    %3821 = vmatprep.subr.mxu0 0.0
    %3822 = vmatpush2.msra.mxu0 0.0
    %3823 = vmatprep.subr.mxu0 0.0
    %3824 = vmatpush2.msra.mxu0 0.0
    %3825 = vmatprep.subr.mxu0 0.0
    %3826 = vmatpush2.msra.mxu0 0.0
    %3827 = vmatprep.subr.mxu0 0.0
    %3828 = vmatpush2.msra.mxu0 0.0
    %3829 = vmatprep.subr.mxu0 0.0
    %3830 = vmatpush2.msra.mxu0 0.0
    %3831 = vmatprep.subr.mxu0 0.0
    %3832 = vmatpush2.msra.mxu0 0.0
    %3833 = vmatprep.subr.mxu0 0.0
    %3834 = vmatpush2.msra.mxu0 0.0
    %3835 = vmatprep.subr.mxu0 0.0
    %3836 = vmatpush2.msra.mxu0 0.0
    %3837 = vmatprep.subr.mxu0 0.0
    %3838 = vmatpush2.msra.mxu0 0.0
    %3839 = vmatprep.subr.mxu0 0.0
    %3840 = vmatpush2.msra.mxu0 0.0
    %3841 = vmatprep.subr.mxu0 0.0
    %3842 = vmatpush2.msra.mxu0 0.0
    %3843 = vmatprep.subr.mxu0 0.0
    %3844 = vmatpush2.msra.mxu0 0.0
    %3845 = vmatprep.subr.mxu0 0.0
    %3846 = vmatpush2.msra.mxu0 0.0
    %3847 = vmatprep.subr.mxu0 0.0
    %3848 = vmatpush2.msra.mxu0 0.0
    %3849 = vmatprep.subr.mxu0 0.0
    %3850 = vmatpush2.msra.mxu0 0.0
    %3851 = vmatprep.mubr.f32.mxu0 0.0
    %3852 = vmatmul.mubr.f32.gmra.mxu0 %v3782
    %v3853 = vpop.f32.mrf.mxu0
    %v3854 = vadd.f32 %v3779, %v3853
    %v3855 = vpop.f32.mrf.mxu0
    %3856 = vmatprep.mubr.f32.mxu0 0.0
    %3857 = vmatmul.mubr.f32.gmra.mxu0 %v3785
    %v3858 = vpop.f32.mrf.mxu0
    %v3859 = vadd.f32 %v3779, %v3858
    %v3860 = vpop.f32.mrf.mxu0
    %3861 = vdwg.mxu0
    %v3862 = vmax.f32 %v3854, 0.0
    %v3863 = vmax.f32 %v3859, 0.0
    %v3864 = vld [vmem:[%s20] sm:$0xff]
    %v3865 = vld [vmem:[%s20 + $0x8] sm:$0xff]
    %v3866 = vld [vmem:[%s20 + $0x10] sm:$0xff]
    %v3867 = vld [vmem:[%s20 + $0x18] sm:$0xff]
    %v3868 = vld [vmem:[%s20 + $0x20] sm:$0xff]
    %v3869 = vld [vmem:[%s20 + $0x28] sm:$0xff]
    %v3870 = vld [vmem:[%s20 + $0x30] sm:$0xff]
    %v3871 = vld [vmem:[%s20 + $0x38] sm:$0xff]
    %v3872 = vld [vmem:[#allocation15] sm:$0x1]
    %v3874 = vlaneseq
    %v3875 = vshrl.u32 %v3874, 7
    %v3876 = vsub.s32 0, %v3875
    %v3877 = vrot.slane %v3872, %v3876
    %vm3879 = vcmask 523264
    %v3881 = vsel %vm3879, %v3862, 0
    %v3884 = vsel %vm3879, %v3863, 0
    %3886 = vmatprep.subr.mxu0 0.0
    %3887 = vmatpush1.msra.mxu0 0.0
    %3888 = vmatprep.subr.mxu0 0.0
    %3889 = vmatpush1.msra.mxu0 0.0
    %3890 = vmatprep.subr.mxu0 0.0
    %3891 = vmatpush1.msra.mxu0 0.0
    %3892 = vmatprep.subr.mxu0 0.0
    %3893 = vmatpush1.msra.mxu0 0.0
    %3894 = vmatprep.subr.mxu0 0.0
    %3895 = vmatpush1.msra.mxu0 0.0
    %3896 = vmatprep.subr.mxu0 0.0
    %3897 = vmatpush1.msra.mxu0 0.0
    %3898 = vmatprep.subr.mxu0 0.0
    %3899 = vmatpush1.msra.mxu0 0.0
    %3900 = vmatprep.subr.mxu0 0.0
    %3901 = vmatpush1.msra.mxu0 0.0
    %3902 = vmatprep.subr.mxu0 0.0
    %3903 = vmatpush1.msra.mxu0 %v3871
    %3904 = vmatprep.subr.mxu0 0.0
    %3905 = vmatpush1.msra.mxu0 %v3870
    %3906 = vmatprep.subr.mxu0 0.0
    %3907 = vmatpush1.msra.mxu0 %v3869
    %3908 = vmatprep.subr.mxu0 0.0
    %3909 = vmatpush1.msra.mxu0 %v3868
    %3910 = vmatprep.subr.mxu0 0.0
    %3911 = vmatpush1.msra.mxu0 %v3867
    %3912 = vmatprep.subr.mxu0 0.0
    %3913 = vmatpush1.msra.mxu0 %v3866
    %3914 = vmatprep.subr.mxu0 0.0
    %3915 = vmatpush1.msra.mxu0 %v3865
    %3916 = vmatprep.subr.mxu0 0.0
    %3917 = vmatpush1.msra.mxu0 %v3864
    %3918 = vmatprep.subr.mxu0 0.0
    %3919 = vmatpush2.msra.mxu0 0.0
    %3920 = vmatprep.subr.mxu0 0.0
    %3921 = vmatpush2.msra.mxu0 0.0
    %3922 = vmatprep.subr.mxu0 0.0
    %3923 = vmatpush2.msra.mxu0 0.0
    %3924 = vmatprep.subr.mxu0 0.0
    %3925 = vmatpush2.msra.mxu0 0.0
    %3926 = vmatprep.subr.mxu0 0.0
    %3927 = vmatpush2.msra.mxu0 0.0
    %3928 = vmatprep.subr.mxu0 0.0
    %3929 = vmatpush2.msra.mxu0 0.0
    %3930 = vmatprep.subr.mxu0 0.0
    %3931 = vmatpush2.msra.mxu0 0.0
    %3932 = vmatprep.subr.mxu0 0.0
    %3933 = vmatpush2.msra.mxu0 0.0
    %3934 = vmatprep.subr.mxu0 0.0
    %3935 = vmatpush2.msra.mxu0 0.0
    %3936 = vmatprep.subr.mxu0 0.0
    %3937 = vmatpush2.msra.mxu0 0.0
    %3938 = vmatprep.subr.mxu0 0.0
    %3939 = vmatpush2.msra.mxu0 0.0
    %3940 = vmatprep.subr.mxu0 0.0
    %3941 = vmatpush2.msra.mxu0 0.0
    %3942 = vmatprep.subr.mxu0 0.0
    %3943 = vmatpush2.msra.mxu0 0.0
    %3944 = vmatprep.subr.mxu0 0.0
    %3945 = vmatpush2.msra.mxu0 0.0
    %3946 = vmatprep.subr.mxu0 0.0
    %3947 = vmatpush2.msra.mxu0 0.0
    %3948 = vmatprep.subr.mxu0 0.0
    %3949 = vmatpush2.msra.mxu0 0.0
    %3950 = vmatprep.mubr.f32.mxu0 0.0
    %3951 = vmatmul.mubr.f32.gmra.mxu0 %v3881
    %v3952 = vpop.f32.mrf.mxu0
    %v3953 = vadd.f32 %v3877, %v3952
    %v3954 = vpop.f32.mrf.mxu0
    %3955 = vmatprep.mubr.f32.mxu0 0.0
    %3956 = vmatmul.mubr.f32.gmra.mxu0 %v3884
    %v3957 = vpop.f32.mrf.mxu0
    %v3958 = vadd.f32 %v3877, %v3957
    %v3959 = vpop.f32.mrf.mxu0
    %3960 = vdwg.mxu0
    %v3961 = vadd.f32 %v3953, %v3768
    %v3962 = vadd.f32 %v3958, %v3769
    %v3963 = vsel %vm266, %v3961, 0.0
    %3964 = vadd.xlane.f32.xlu0 %v3963
    %v3965 = vpop.xlane.xlu0 %3964
    %v3966 = vsel %vm266, %v3962, 0.0
    %3967 = vadd.xlane.f32.xlu0 %v3966
    %v3968 = vpop.xlane.xlu0 %3967
    %v3969 = vmul.f32 %v3965, %v1887
    %v3970 = vmul.f32 %v3968, %v1887
    %v3971 = vsub.f32 %v3961, %v3969
    %v3972 = vsub.f32 %v3962, %v3970
    %v3973 = vmul.f32 %v3971, %v3971
    %v3974 = vmul.f32 %v3972, %v3972
    %v3975 = vsel %vm266, %v3973, 0.0
    %3976 = vadd.xlane.f32.xlu0 %v3975
    %v3977 = vpop.xlane.xlu0 %3976
    %v3978 = vsel %vm266, %v3974, 0.0
    %3979 = vadd.xlane.f32.xlu0 %v3978
    %v3980 = vpop.xlane.xlu0 %3979
    %v3981 = vmul.f32 %v3977, %v1887
    %v3982 = vmul.f32 %v3980, %v1887
    %v3983 = vadd.f32 %v3981, 1e-05
    %v3984 = vadd.f32 %v3982, 1e-05
    %v3985 = vrsqrt.pop %v3983
    %v3986 = vrsqrt.pop %v3984
    %v3987 = vmul.f32 %v3971, %v3985
    %v3988 = vmul.f32 %v3972, %v3986
    %v3989 = vld [vmem:[%s26] sm:$0x1]
    %v3991 = vlaneseq
    %v3992 = vshrl.u32 %v3991, 7
    %v3993 = vsub.s32 0, %v3992
    %v3994 = vrot.slane %v3989, %v3993
    %v3996 = vmul.f32 %v3987, %v3994
    %v3997 = vmul.f32 %v3988, %v3994
    %v3998 = vld [vmem:[%s27] sm:$0x1]
    %v4000 = vlaneseq
    %v4001 = vshrl.u32 %v4000, 7
    %v4002 = vsub.s32 0, %v4001
    %v4003 = vrot.slane %v3998, %v4002
    %v4005 = vadd.f32 %v3996, %v4003
    %v4006 = vadd.f32 %v3997, %v4003
    %4007 = vst.msk [vmem:[%s28] sm:$0xff] %vm266, %v4005
    %4008 = vst.msk [vmem:[%s28 + $0x8] sm:$0xff] %vm266, %v4006
    // Predicated region
    $region166: #{decoder_layer_forward.1} parent=1 // pred_check
      _
    $region167: #{decoder_layer_forward.1} parent=1 // pred_check_branch
      %4010 = sbr.rel (0) target = $region169
    $region168: #{decoder_layer_forward.1} parent=1 // pred_region
      _
    $region169: #{decoder_layer_forward.1} parent=1 // pred_fallthru
      _
    // Predicated region
    $region170: #{decoder_layer_forward.1} parent=1 // pred_check
      _
    $region171: #{decoder_layer_forward.1} parent=1 // pred_check_branch
      %4012 = sbr.rel (0) target = $region173
    $region172: #{decoder_layer_forward.1} parent=1 // pred_region
      _
    $region173: #{decoder_layer_forward.1} parent=1 // pred_fallthru
      _
    %4013 = vsyncpa [#allocation3], 1
    %4014 = vsyncpa [#allocation5], 1
    %4015 = vsyncpa [#allocation8], 1
    %4016 = vsyncpa [#allocation11], 1
    %4017 = vsyncpa [#allocation14], 1
    %4018 = vsyncpa [#allocation17], 1
    %4019 = vsyncpa [#allocation20], 1

</llo_original>
